<compile_context>
chip_gen: v6e
topology: v6e:2x2x1
jax: 0.10.0
libtpu: 0.0.40
codegen_flags: <defaults>
</compile_context>

<pallas_src>
import math
import numpy as np
import jax
import jax.numpy as jnp
from jax.experimental import pallas as pl
from jax.experimental.pallas import tpu as pltpu

GATE_PITCH = 128                 # each gate gets its own 128-lane group
SLAB_W = 3 * GATE_PITCH          # packed-weight slab width (r | z | n groups)


# ----------------------------------------------------------------------------
# Packed-weight slab layout (shared by the host-side packer and the kernel).
# ----------------------------------------------------------------------------
def _slab_layout(num_layers, input_size, hidden_size):
    """Row offsets of every parameter block inside the packed weight slab."""
    def r8(n):  # keep every block 8-row (sublane) aligned
        return -(-n // 8) * 8

    rows, off = {}, 0
    for l in range(num_layers):
        d_in = input_size if l == 0 else hidden_size
        rows[("wih", l)] = off; off += r8(d_in)
        rows[("whh", l)] = off; off += r8(hidden_size)
        rows[("bias", l)] = off; off += 8   # row 0: b_ih + b_hh[r,z]; row 1: b_hh[n]
    rows["wfc"] = off; off += r8(hidden_size)
    rows["bfc"] = off; off += 8
    return rows, off


def pack_params(params, input_size):
    """Pack all GRU layers + FC params into one lane-aligned f32 slab (host, once)."""
    layers = params["layers"]
    num_layers = len(layers)
    H = layers[0]["w_hh_t"].shape[0]
    O = params["w_fc_t"].shape[1]
    rows, n_rows = _slab_layout(num_layers, input_size, H)
    slab = np.zeros((n_rows, SLAB_W), np.float32)
    GP = GATE_PITCH
    for l, lp in enumerate(layers):
        wih = np.asarray(lp["w_ih_t"], np.float32)          # (d_in, 3H)
        whh = np.asarray(lp["w_hh_t"], np.float32)          # (H,    3H)
        bih = np.asarray(lp["b_ih"], np.float32).reshape(-1)
        bhh = np.asarray(lp["b_hh"], np.float32).reshape(-1)
        r0, r1, rb = rows[("wih", l)], rows[("whh", l)], rows[("bias", l)]
        for g in range(3):                                   # lane-align each gate
            slab[r0:r0 + wih.shape[0], g * GP:g * GP + H] = wih[:, g * H:(g + 1) * H]
            slab[r1:r1 + H, g * GP:g * GP + H] = whh[:, g * H:(g + 1) * H]
            slab[rb, g * GP:g * GP + H] = bih[g * H:(g + 1) * H]
        # Fold the r/z halves of b_hh into the hoisted input-projection bias.
        slab[rb, 0:H] += bhh[0:H]
        slab[rb, GP:GP + H] += bhh[H:2 * H]
        # n-gate half of b_hh stays separate (sits inside r * (...)).
        slab[rb + 1, 0:H] = bhh[2 * H:3 * H]
    slab[rows["wfc"]:rows["wfc"] + H, 0:O] = np.asarray(params["w_fc_t"], np.float32)
    slab[rows["bfc"], 0:O] = np.asarray(params["b_fc"], np.float32).reshape(-1)
    return jnp.asarray(slab)


# ----------------------------------------------------------------------------
# Fused Pallas kernel: all GRU layers + relu + fc + log_softmax in one call.
# ----------------------------------------------------------------------------
def make_fused_kernel(num_layers, T, B, D, H, O):
    rows, _ = _slab_layout(num_layers, D, H)
    GP = GATE_PITCH

    def kernel(x_ref, w_ref, out_ref):
        inp = x_ref[...]                                   # (T*B, D) time-major
        h = jnp.zeros((B, H), jnp.float32)

        for l in range(num_layers):
            d_in = D if l == 0 else H
            r0, r1, rb = rows[("wih", l)], rows[("whh", l)], rows[("bias", l)]
            wih = w_ref[r0:r0 + d_in, :]                   # (d_in, 3*GP)
            whh = w_ref[r1:r1 + H, :]                      # (H,    3*GP)
            b_comb = w_ref[rb:rb + 1, :]                   # b_ih (+ b_hh[r,z]) lane-aligned
            b_hn = jnp.broadcast_to(w_ref[rb + 1:rb + 2, 0:H], (B, H))  # hoisted bcast

            # Hoisted input projection: ONE MXU matmul covers all T steps.
            gi_all = jnp.dot(inp, wih, preferred_element_type=jnp.float32) + b_comb
            gi_r_all = gi_all[:, 0:H]                      # lane-0 aligned gate views
            gi_z_all = gi_all[:, GP:GP + H]
            gi_n_all = gi_all[:, 2 * GP:2 * GP + H]

            h = jnp.zeros((B, H), jnp.float32)             # init_h = zeros (as in Model)
            hs = []
            last = (l == num_layers - 1)

            # T is small & static -> fully unrolled; only (B,H)@(H,3*GP) sits on
            # the serial recurrence path (whh stays loop-invariant).
            # TODO(synk): use explicit pltpu.matmul_push_rhs/acc_lhs/pop to pin
            #             whh in the MXU if the loop-invariant push is not hoisted.
            for t in range(T):
                lo = t * B
                gh = jnp.dot(h, whh, preferred_element_type=jnp.float32)   # (B, 3*GP)
                r = jax.nn.sigmoid(gi_r_all[lo:lo + B, :] + gh[:, 0:H])
                z = jax.nn.sigmoid(gi_z_all[lo:lo + B, :] + gh[:, GP:GP + H])
                n = jnp.tanh(gi_n_all[lo:lo + B, :] + r * (gh[:, 2 * GP:2 * GP + H] + b_hn))
                h = (1.0 - z) * n + z * h
                if not last:
                    hs.append(h)

            if not last:
                # Inter-layer sequence stays in vregs; never touches VMEM scratch/HBM.
                inp = jnp.concatenate(hs, axis=0)          # (T*B, H)

        # Head on the final hidden state only: fc(relu(h_T)) then log_softmax.
        wfc = w_ref[rows["wfc"]:rows["wfc"] + H, 0:O]
        bfc = w_ref[rows["bfc"]:rows["bfc"] + 1, 0:O]
        y = jnp.dot(jnp.maximum(h, 0.0), wfc, preferred_element_type=jnp.float32) + bfc
        m = jnp.max(y, axis=1, keepdims=True)
        s = y - m
        lse = jnp.log(jnp.sum(jnp.exp(s), axis=1, keepdims=True))
        out_ref[...] = (s - lse).astype(out_ref.dtype)

    return kernel


# ----------------------------------------------------------------------------
# Wrapper
# ----------------------------------------------------------------------------
def model_forward(w_slab, x_btd, *, num_layers, hidden_size, output_size):
    """x_btd: (B, T, input_size), batch_first like the PyTorch module."""
    B, T, D = x_btd.shape
    # Time-major 2-D slab so the hoisted input projection is one clean matmul.
    x_2d = jnp.transpose(x_btd, (1, 0, 2)).reshape(T * B, D)

    vmem = pltpu.MemorySpace.VMEM
    kernel = make_fused_kernel(num_layers, T, B, D, hidden_size, output_size)
    return pl.pallas_call(
        kernel,
        out_shape=jax.ShapeDtypeStruct((B, output_size), jnp.float32),
        in_specs=[pl.BlockSpec(memory_space=vmem),       # x slab
                  pl.BlockSpec(memory_space=vmem)],      # packed weight slab
        out_specs=pl.BlockSpec(memory_space=vmem),
    )(x_2d, w_slab)


def init_params(key, input_size, hidden_size, output_size, num_layers):
    """Deterministic params mirroring nn.GRU / nn.Linear shapes (uniform +-1/sqrt(H))."""
    params = {"layers": []}
    k = 1.0 / math.sqrt(hidden_size)
    for layer in range(num_layers):
        d_in = input_size if layer == 0 else hidden_size
        key, k1, k2, k3, k4 = jax.random.split(key, 5)
        params["layers"].append({
            # stored pre-transposed for x @ W, gate order (r, z, n)
            "w_ih_t": jax.random.uniform(k1, (d_in, 3 * hidden_size), jnp.float32, -k, k),
            "w_hh_t": jax.random.uniform(k2, (hidden_size, 3 * hidden_size), jnp.float32, -k, k),
            "b_ih": jax.random.uniform(k3, (1, 3 * hidden_size), jnp.float32, -k, k),
            "b_hh": jax.random.uniform(k4, (1, 3 * hidden_size), jnp.float32, -k, k),
        })
    key, k5, k6 = jax.random.split(key, 3)
    kf = 1.0 / math.sqrt(hidden_size)
    params["w_fc_t"] = jax.random.uniform(k5, (hidden_size, output_size), jnp.float32, -kf, kf)
    params["b_fc"] = jax.random.uniform(k6, (1, output_size), jnp.float32, -kf, kf)
    return params


# Pure-JAX reference (uses the unpacked params) for the correctness check.
def reference_forward(params, x_btd):
    B = x_btd.shape[0]
    H = params["layers"][0]["w_hh_t"].shape[0]
    seq = x_btd
    for lp in params["layers"]:
        h = jnp.zeros((B, H), jnp.float32)
        outs = []
        for t in range(seq.shape[1]):
            gi = seq[:, t, :] @ lp["w_ih_t"] + lp["b_ih"]
            gh = h @ lp["w_hh_t"] + lp["b_hh"]
            r = jax.nn.sigmoid(gi[:, :H] + gh[:, :H])
            z = jax.nn.sigmoid(gi[:, H:2 * H] + gh[:, H:2 * H])
            n = jnp.tanh(gi[:, 2 * H:] + r * gh[:, 2 * H:])
            h = (1.0 - z) * n + z * h
            outs.append(h)
        seq = jnp.stack(outs, axis=1)
    y = jnp.maximum(seq[:, -1, :], 0.0) @ params["w_fc_t"] + params["b_fc"]
    return jax.nn.log_softmax(y, axis=1)


if __name__ == "__main__":
    B, T = 2, 8
    input_size, hidden_size, output_size, num_layers = 16, 32, 10, 2

    key = jax.random.PRNGKey(0)
    kx, kp = jax.random.split(key)
    x = jax.random.normal(kx, (B, T, input_size), jnp.float32)
    params = init_params(kp, input_size, hidden_size, output_size, num_layers)

    # Pack all weights into one lane-aligned slab ONCE (host side).
    w_slab = pack_params(params, input_size)

    out = model_forward(w_slab, x, num_layers=num_layers,
                        hidden_size=hidden_size, output_size=output_size)
    out = jax.block_until_ready(out)

    ref = jax.block_until_ready(reference_forward(params, x))
    np.testing.assert_allclose(np.asarray(out), np.asarray(ref), rtol=1e-5, atol=1e-5)

    print("KERNEL_OK")
</pallas_src>

<mosaic_0001>
module attributes {stable_mosaic.version = 11 : i64} {
  func.func @kernel(%arg0: memref<16x16xf32, #tpu.memory_space<vmem>>, %arg1: memref<168x384xf32, #tpu.memory_space<vmem>>, %arg2: memref<2x10xf32, #tpu.memory_space<vmem>>) attributes {dimension_semantics = [], scalar_prefetch = 0 : i64, scratch_operands = 0 : i64, tpu.core_type = #tpu.core_type<tc>} {
    %c0 = arith.constant 0 : index
    %c0_0 = arith.constant 0 : index
    %0 = vector.load %arg0[%c0, %c0_0] : memref<16x16xf32, #tpu.memory_space<vmem>>, vector<16x16xf32>
    %c0_1 = arith.constant 0 : index
    %c0_2 = arith.constant 0 : index
    %1 = vector.load %arg1[%c0_1, %c0_2] : memref<168x384xf32, #tpu.memory_space<vmem>>, vector<16x384xf32>
    %c16 = arith.constant 16 : index
    %c0_3 = arith.constant 0 : index
    %2 = vector.load %arg1[%c16, %c0_3] : memref<168x384xf32, #tpu.memory_space<vmem>>, vector<32x384xf32>
    %c48 = arith.constant 48 : index
    %c0_4 = arith.constant 0 : index
    %3 = vector.load %arg1[%c48, %c0_4] : memref<168x384xf32, #tpu.memory_space<vmem>>, vector<1x384xf32>
    %c49 = arith.constant 49 : index
    %c0_5 = arith.constant 0 : index
    %4 = vector.load %arg1[%c49, %c0_5] : memref<168x384xf32, #tpu.memory_space<vmem>>, vector<1x32xf32>
    %5 = vector.shape_cast %4 : vector<1x32xf32> to vector<1x32xf32>
    %6 = vector.broadcast %5 : vector<1x32xf32> to vector<2x32xf32>
    %cst = arith.constant dense<0.000000e+00> : vector<16x384xf32>
    %7 = tpu.matmul %0, %1, %cst {dimension_numbers = #tpu.dot_dimension_numbers<[1], [0], [0], [1], [0, 0, 1, 1], [], []>} : vector<16x16xf32>, vector<16x384xf32>, vector<16x384xf32> -> vector<16x384xf32>
    %8 = vector.broadcast %3 : vector<1x384xf32> to vector<16x384xf32>
    %9 = arith.addf %7, %8 : vector<16x384xf32>
    %10 = vector.extract_strided_slice %9 {offsets = [0, 0], sizes = [16, 32], strides = [1, 1]} : vector<16x384xf32> to vector<16x32xf32>
    %11 = vector.extract_strided_slice %9 {offsets = [0, 128], sizes = [16, 32], strides = [1, 1]} : vector<16x384xf32> to vector<16x32xf32>
    %12 = vector.extract_strided_slice %9 {offsets = [0, 256], sizes = [16, 32], strides = [1, 1]} : vector<16x384xf32> to vector<16x32xf32>
    %cst_6 = arith.constant 0.000000e+00 : f32
    %13 = vector.broadcast %cst_6 : f32 to vector<2x32xf32>
    %cst_7 = arith.constant dense<0.000000e+00> : vector<2x384xf32>
    %14 = tpu.matmul %13, %2, %cst_7 {dimension_numbers = #tpu.dot_dimension_numbers<[1], [0], [0], [1], [0, 0, 1, 1], [], []>} : vector<2x32xf32>, vector<32x384xf32>, vector<2x384xf32> -> vector<2x384xf32>
    %15 = vector.extract_strided_slice %10 {offsets = [0, 0], sizes = [2, 32], strides = [1, 1]} : vector<16x32xf32> to vector<2x32xf32>
    %16 = vector.extract_strided_slice %14 {offsets = [0, 0], sizes = [2, 32], strides = [1, 1]} : vector<2x384xf32> to vector<2x32xf32>
    %17 = arith.addf %15, %16 : vector<2x32xf32>
    %18 = arith.negf %17 : vector<2x32xf32>
    %19 = math.exp %18 : vector<2x32xf32>
    %cst_8 = arith.constant 1.000000e+00 : f32
    %20 = vector.broadcast %cst_8 : f32 to vector<2x32xf32>
    %21 = arith.addf %20, %19 : vector<2x32xf32>
    %22 = arith.divf %20, %21 : vector<2x32xf32>
    %23 = vector.extract_strided_slice %11 {offsets = [0, 0], sizes = [2, 32], strides = [1, 1]} : vector<16x32xf32> to vector<2x32xf32>
    %24 = vector.extract_strided_slice %14 {offsets = [0, 128], sizes = [2, 32], strides = [1, 1]} : vector<2x384xf32> to vector<2x32xf32>
    %25 = arith.addf %23, %24 : vector<2x32xf32>
    %26 = arith.negf %25 : vector<2x32xf32>
    %27 = math.exp %26 : vector<2x32xf32>
    %cst_9 = arith.constant 1.000000e+00 : f32
    %28 = vector.broadcast %cst_9 : f32 to vector<2x32xf32>
    %29 = arith.addf %28, %27 : vector<2x32xf32>
    %30 = arith.divf %28, %29 : vector<2x32xf32>
    %31 = vector.extract_strided_slice %12 {offsets = [0, 0], sizes = [2, 32], strides = [1, 1]} : vector<16x32xf32> to vector<2x32xf32>
    %32 = vector.extract_strided_slice %14 {offsets = [0, 256], sizes = [2, 32], strides = [1, 1]} : vector<2x384xf32> to vector<2x32xf32>
    %33 = arith.addf %32, %6 : vector<2x32xf32>
    %34 = arith.mulf %22, %33 : vector<2x32xf32>
    %35 = arith.addf %31, %34 : vector<2x32xf32>
    %36 = math.tanh %35 : vector<2x32xf32>
    %cst_10 = arith.constant 1.000000e+00 : f32
    %37 = vector.broadcast %cst_10 : f32 to vector<2x32xf32>
    %38 = arith.subf %37, %30 : vector<2x32xf32>
    %39 = arith.mulf %38, %36 : vector<2x32xf32>
    %40 = arith.mulf %30, %13 : vector<2x32xf32>
    %41 = arith.addf %39, %40 : vector<2x32xf32>
    %cst_11 = arith.constant dense<0.000000e+00> : vector<2x384xf32>
    %42 = tpu.matmul %41, %2, %cst_11 {dimension_numbers = #tpu.dot_dimension_numbers<[1], [0], [0], [1], [0, 0, 1, 1], [], []>} : vector<2x32xf32>, vector<32x384xf32>, vector<2x384xf32> -> vector<2x384xf32>
    %43 = vector.extract_strided_slice %10 {offsets = [2, 0], sizes = [2, 32], strides = [1, 1]} : vector<16x32xf32> to vector<2x32xf32>
    %44 = vector.extract_strided_slice %42 {offsets = [0, 0], sizes = [2, 32], strides = [1, 1]} : vector<2x384xf32> to vector<2x32xf32>
    %45 = arith.addf %43, %44 : vector<2x32xf32>
    %46 = arith.negf %45 : vector<2x32xf32>
    %47 = math.exp %46 : vector<2x32xf32>
    %cst_12 = arith.constant 1.000000e+00 : f32
    %48 = vector.broadcast %cst_12 : f32 to vector<2x32xf32>
    %49 = arith.addf %48, %47 : vector<2x32xf32>
    %50 = arith.divf %48, %49 : vector<2x32xf32>
    %51 = vector.extract_strided_slice %11 {offsets = [2, 0], sizes = [2, 32], strides = [1, 1]} : vector<16x32xf32> to vector<2x32xf32>
    %52 = vector.extract_strided_slice %42 {offsets = [0, 128], sizes = [2, 32], strides = [1, 1]} : vector<2x384xf32> to vector<2x32xf32>
    %53 = arith.addf %51, %52 : vector<2x32xf32>
    %54 = arith.negf %53 : vector<2x32xf32>
    %55 = math.exp %54 : vector<2x32xf32>
    %cst_13 = arith.constant 1.000000e+00 : f32
    %56 = vector.broadcast %cst_13 : f32 to vector<2x32xf32>
    %57 = arith.addf %56, %55 : vector<2x32xf32>
    %58 = arith.divf %56, %57 : vector<2x32xf32>
    %59 = vector.extract_strided_slice %12 {offsets = [2, 0], sizes = [2, 32], strides = [1, 1]} : vector<16x32xf32> to vector<2x32xf32>
    %60 = vector.extract_strided_slice %42 {offsets = [0, 256], sizes = [2, 32], strides = [1, 1]} : vector<2x384xf32> to vector<2x32xf32>
    %61 = arith.addf %60, %6 : vector<2x32xf32>
    %62 = arith.mulf %50, %61 : vector<2x32xf32>
    %63 = arith.addf %59, %62 : vector<2x32xf32>
    %64 = math.tanh %63 : vector<2x32xf32>
    %cst_14 = arith.constant 1.000000e+00 : f32
    %65 = vector.broadcast %cst_14 : f32 to vector<2x32xf32>
    %66 = arith.subf %65, %58 : vector<2x32xf32>
    %67 = arith.mulf %66, %64 : vector<2x32xf32>
    %68 = arith.mulf %58, %41 : vector<2x32xf32>
    %69 = arith.addf %67, %68 : vector<2x32xf32>
    %cst_15 = arith.constant dense<0.000000e+00> : vector<2x384xf32>
    %70 = tpu.matmul %69, %2, %cst_15 {dimension_numbers = #tpu.dot_dimension_numbers<[1], [0], [0], [1], [0, 0, 1, 1], [], []>} : vector<2x32xf32>, vector<32x384xf32>, vector<2x384xf32> -> vector<2x384xf32>
    %71 = vector.extract_strided_slice %10 {offsets = [4, 0], sizes = [2, 32], strides = [1, 1]} : vector<16x32xf32> to vector<2x32xf32>
    %72 = vector.extract_strided_slice %70 {offsets = [0, 0], sizes = [2, 32], strides = [1, 1]} : vector<2x384xf32> to vector<2x32xf32>
    %73 = arith.addf %71, %72 : vector<2x32xf32>
    %74 = arith.negf %73 : vector<2x32xf32>
    %75 = math.exp %74 : vector<2x32xf32>
    %cst_16 = arith.constant 1.000000e+00 : f32
    %76 = vector.broadcast %cst_16 : f32 to vector<2x32xf32>
    %77 = arith.addf %76, %75 : vector<2x32xf32>
    %78 = arith.divf %76, %77 : vector<2x32xf32>
    %79 = vector.extract_strided_slice %11 {offsets = [4, 0], sizes = [2, 32], strides = [1, 1]} : vector<16x32xf32> to vector<2x32xf32>
    %80 = vector.extract_strided_slice %70 {offsets = [0, 128], sizes = [2, 32], strides = [1, 1]} : vector<2x384xf32> to vector<2x32xf32>
    %81 = arith.addf %79, %80 : vector<2x32xf32>
    %82 = arith.negf %81 : vector<2x32xf32>
    %83 = math.exp %82 : vector<2x32xf32>
    %cst_17 = arith.constant 1.000000e+00 : f32
    %84 = vector.broadcast %cst_17 : f32 to vector<2x32xf32>
    %85 = arith.addf %84, %83 : vector<2x32xf32>
    %86 = arith.divf %84, %85 : vector<2x32xf32>
    %87 = vector.extract_strided_slice %12 {offsets = [4, 0], sizes = [2, 32], strides = [1, 1]} : vector<16x32xf32> to vector<2x32xf32>
    %88 = vector.extract_strided_slice %70 {offsets = [0, 256], sizes = [2, 32], strides = [1, 1]} : vector<2x384xf32> to vector<2x32xf32>
    %89 = arith.addf %88, %6 : vector<2x32xf32>
    %90 = arith.mulf %78, %89 : vector<2x32xf32>
    %91 = arith.addf %87, %90 : vector<2x32xf32>
    %92 = math.tanh %91 : vector<2x32xf32>
    %cst_18 = arith.constant 1.000000e+00 : f32
    %93 = vector.broadcast %cst_18 : f32 to vector<2x32xf32>
    %94 = arith.subf %93, %86 : vector<2x32xf32>
    %95 = arith.mulf %94, %92 : vector<2x32xf32>
    %96 = arith.mulf %86, %69 : vector<2x32xf32>
    %97 = arith.addf %95, %96 : vector<2x32xf32>
    %cst_19 = arith.constant dense<0.000000e+00> : vector<2x384xf32>
    %98 = tpu.matmul %97, %2, %cst_19 {dimension_numbers = #tpu.dot_dimension_numbers<[1], [0], [0], [1], [0, 0, 1, 1], [], []>} : vector<2x32xf32>, vector<32x384xf32>, vector<2x384xf32> -> vector<2x384xf32>
    %99 = vector.extract_strided_slice %10 {offsets = [6, 0], sizes = [2, 32], strides = [1, 1]} : vector<16x32xf32> to vector<2x32xf32>
    %100 = vector.extract_strided_slice %98 {offsets = [0, 0], sizes = [2, 32], strides = [1, 1]} : vector<2x384xf32> to vector<2x32xf32>
    %101 = arith.addf %99, %100 : vector<2x32xf32>
    %102 = arith.negf %101 : vector<2x32xf32>
    %103 = math.exp %102 : vector<2x32xf32>
    %cst_20 = arith.constant 1.000000e+00 : f32
    %104 = vector.broadcast %cst_20 : f32 to vector<2x32xf32>
    %105 = arith.addf %104, %103 : vector<2x32xf32>
    %106 = arith.divf %104, %105 : vector<2x32xf32>
    %107 = vector.extract_strided_slice %11 {offsets = [6, 0], sizes = [2, 32], strides = [1, 1]} : vector<16x32xf32> to vector<2x32xf32>
    %108 = vector.extract_strided_slice %98 {offsets = [0, 128], sizes = [2, 32], strides = [1, 1]} : vector<2x384xf32> to vector<2x32xf32>
    %109 = arith.addf %107, %108 : vector<2x32xf32>
    %110 = arith.negf %109 : vector<2x32xf32>
    %111 = math.exp %110 : vector<2x32xf32>
    %cst_21 = arith.constant 1.000000e+00 : f32
    %112 = vector.broadcast %cst_21 : f32 to vector<2x32xf32>
    %113 = arith.addf %112, %111 : vector<2x32xf32>
    %114 = arith.divf %112, %113 : vector<2x32xf32>
    %115 = vector.extract_strided_slice %12 {offsets = [6, 0], sizes = [2, 32], strides = [1, 1]} : vector<16x32xf32> to vector<2x32xf32>
    %116 = vector.extract_strided_slice %98 {offsets = [0, 256], sizes = [2, 32], strides = [1, 1]} : vector<2x384xf32> to vector<2x32xf32>
    %117 = arith.addf %116, %6 : vector<2x32xf32>
    %118 = arith.mulf %106, %117 : vector<2x32xf32>
    %119 = arith.addf %115, %118 : vector<2x32xf32>
    %120 = math.tanh %119 : vector<2x32xf32>
    %cst_22 = arith.constant 1.000000e+00 : f32
    %121 = vector.broadcast %cst_22 : f32 to vector<2x32xf32>
    %122 = arith.subf %121, %114 : vector<2x32xf32>
    %123 = arith.mulf %122, %120 : vector<2x32xf32>
    %124 = arith.mulf %114, %97 : vector<2x32xf32>
    %125 = arith.addf %123, %124 : vector<2x32xf32>
    %cst_23 = arith.constant dense<0.000000e+00> : vector<2x384xf32>
    %126 = tpu.matmul %125, %2, %cst_23 {dimension_numbers = #tpu.dot_dimension_numbers<[1], [0], [0], [1], [0, 0, 1, 1], [], []>} : vector<2x32xf32>, vector<32x384xf32>, vector<2x384xf32> -> vector<2x384xf32>
    %127 = vector.extract_strided_slice %10 {offsets = [8, 0], sizes = [2, 32], strides = [1, 1]} : vector<16x32xf32> to vector<2x32xf32>
    %128 = vector.extract_strided_slice %126 {offsets = [0, 0], sizes = [2, 32], strides = [1, 1]} : vector<2x384xf32> to vector<2x32xf32>
    %129 = arith.addf %127, %128 : vector<2x32xf32>
    %130 = arith.negf %129 : vector<2x32xf32>
    %131 = math.exp %130 : vector<2x32xf32>
    %cst_24 = arith.constant 1.000000e+00 : f32
    %132 = vector.broadcast %cst_24 : f32 to vector<2x32xf32>
    %133 = arith.addf %132, %131 : vector<2x32xf32>
    %134 = arith.divf %132, %133 : vector<2x32xf32>
    %135 = vector.extract_strided_slice %11 {offsets = [8, 0], sizes = [2, 32], strides = [1, 1]} : vector<16x32xf32> to vector<2x32xf32>
    %136 = vector.extract_strided_slice %126 {offsets = [0, 128], sizes = [2, 32], strides = [1, 1]} : vector<2x384xf32> to vector<2x32xf32>
    %137 = arith.addf %135, %136 : vector<2x32xf32>
    %138 = arith.negf %137 : vector<2x32xf32>
    %139 = math.exp %138 : vector<2x32xf32>
    %cst_25 = arith.constant 1.000000e+00 : f32
    %140 = vector.broadcast %cst_25 : f32 to vector<2x32xf32>
    %141 = arith.addf %140, %139 : vector<2x32xf32>
    %142 = arith.divf %140, %141 : vector<2x32xf32>
    %143 = vector.extract_strided_slice %12 {offsets = [8, 0], sizes = [2, 32], strides = [1, 1]} : vector<16x32xf32> to vector<2x32xf32>
    %144 = vector.extract_strided_slice %126 {offsets = [0, 256], sizes = [2, 32], strides = [1, 1]} : vector<2x384xf32> to vector<2x32xf32>
    %145 = arith.addf %144, %6 : vector<2x32xf32>
    %146 = arith.mulf %134, %145 : vector<2x32xf32>
    %147 = arith.addf %143, %146 : vector<2x32xf32>
    %148 = math.tanh %147 : vector<2x32xf32>
    %cst_26 = arith.constant 1.000000e+00 : f32
    %149 = vector.broadcast %cst_26 : f32 to vector<2x32xf32>
    %150 = arith.subf %149, %142 : vector<2x32xf32>
    %151 = arith.mulf %150, %148 : vector<2x32xf32>
    %152 = arith.mulf %142, %125 : vector<2x32xf32>
    %153 = arith.addf %151, %152 : vector<2x32xf32>
    %cst_27 = arith.constant dense<0.000000e+00> : vector<2x384xf32>
    %154 = tpu.matmul %153, %2, %cst_27 {dimension_numbers = #tpu.dot_dimension_numbers<[1], [0], [0], [1], [0, 0, 1, 1], [], []>} : vector<2x32xf32>, vector<32x384xf32>, vector<2x384xf32> -> vector<2x384xf32>
    %155 = vector.extract_strided_slice %10 {offsets = [10, 0], sizes = [2, 32], strides = [1, 1]} : vector<16x32xf32> to vector<2x32xf32>
    %156 = vector.extract_strided_slice %154 {offsets = [0, 0], sizes = [2, 32], strides = [1, 1]} : vector<2x384xf32> to vector<2x32xf32>
    %157 = arith.addf %155, %156 : vector<2x32xf32>
    %158 = arith.negf %157 : vector<2x32xf32>
    %159 = math.exp %158 : vector<2x32xf32>
    %cst_28 = arith.constant 1.000000e+00 : f32
    %160 = vector.broadcast %cst_28 : f32 to vector<2x32xf32>
    %161 = arith.addf %160, %159 : vector<2x32xf32>
    %162 = arith.divf %160, %161 : vector<2x32xf32>
    %163 = vector.extract_strided_slice %11 {offsets = [10, 0], sizes = [2, 32], strides = [1, 1]} : vector<16x32xf32> to vector<2x32xf32>
    %164 = vector.extract_strided_slice %154 {offsets = [0, 128], sizes = [2, 32], strides = [1, 1]} : vector<2x384xf32> to vector<2x32xf32>
    %165 = arith.addf %163, %164 : vector<2x32xf32>
    %166 = arith.negf %165 : vector<2x32xf32>
    %167 = math.exp %166 : vector<2x32xf32>
    %cst_29 = arith.constant 1.000000e+00 : f32
    %168 = vector.broadcast %cst_29 : f32 to vector<2x32xf32>
    %169 = arith.addf %168, %167 : vector<2x32xf32>
    %170 = arith.divf %168, %169 : vector<2x32xf32>
    %171 = vector.extract_strided_slice %12 {offsets = [10, 0], sizes = [2, 32], strides = [1, 1]} : vector<16x32xf32> to vector<2x32xf32>
    %172 = vector.extract_strided_slice %154 {offsets = [0, 256], sizes = [2, 32], strides = [1, 1]} : vector<2x384xf32> to vector<2x32xf32>
    %173 = arith.addf %172, %6 : vector<2x32xf32>
    %174 = arith.mulf %162, %173 : vector<2x32xf32>
    %175 = arith.addf %171, %174 : vector<2x32xf32>
    %176 = math.tanh %175 : vector<2x32xf32>
    %cst_30 = arith.constant 1.000000e+00 : f32
    %177 = vector.broadcast %cst_30 : f32 to vector<2x32xf32>
    %178 = arith.subf %177, %170 : vector<2x32xf32>
    %179 = arith.mulf %178, %176 : vector<2x32xf32>
    %180 = arith.mulf %170, %153 : vector<2x32xf32>
    %181 = arith.addf %179, %180 : vector<2x32xf32>
    %cst_31 = arith.constant dense<0.000000e+00> : vector<2x384xf32>
    %182 = tpu.matmul %181, %2, %cst_31 {dimension_numbers = #tpu.dot_dimension_numbers<[1], [0], [0], [1], [0, 0, 1, 1], [], []>} : vector<2x32xf32>, vector<32x384xf32>, vector<2x384xf32> -> vector<2x384xf32>
    %183 = vector.extract_strided_slice %10 {offsets = [12, 0], sizes = [2, 32], strides = [1, 1]} : vector<16x32xf32> to vector<2x32xf32>
    %184 = vector.extract_strided_slice %182 {offsets = [0, 0], sizes = [2, 32], strides = [1, 1]} : vector<2x384xf32> to vector<2x32xf32>
    %185 = arith.addf %183, %184 : vector<2x32xf32>
    %186 = arith.negf %185 : vector<2x32xf32>
    %187 = math.exp %186 : vector<2x32xf32>
    %cst_32 = arith.constant 1.000000e+00 : f32
    %188 = vector.broadcast %cst_32 : f32 to vector<2x32xf32>
    %189 = arith.addf %188, %187 : vector<2x32xf32>
    %190 = arith.divf %188, %189 : vector<2x32xf32>
    %191 = vector.extract_strided_slice %11 {offsets = [12, 0], sizes = [2, 32], strides = [1, 1]} : vector<16x32xf32> to vector<2x32xf32>
    %192 = vector.extract_strided_slice %182 {offsets = [0, 128], sizes = [2, 32], strides = [1, 1]} : vector<2x384xf32> to vector<2x32xf32>
    %193 = arith.addf %191, %192 : vector<2x32xf32>
    %194 = arith.negf %193 : vector<2x32xf32>
    %195 = math.exp %194 : vector<2x32xf32>
    %cst_33 = arith.constant 1.000000e+00 : f32
    %196 = vector.broadcast %cst_33 : f32 to vector<2x32xf32>
    %197 = arith.addf %196, %195 : vector<2x32xf32>
    %198 = arith.divf %196, %197 : vector<2x32xf32>
    %199 = vector.extract_strided_slice %12 {offsets = [12, 0], sizes = [2, 32], strides = [1, 1]} : vector<16x32xf32> to vector<2x32xf32>
    %200 = vector.extract_strided_slice %182 {offsets = [0, 256], sizes = [2, 32], strides = [1, 1]} : vector<2x384xf32> to vector<2x32xf32>
    %201 = arith.addf %200, %6 : vector<2x32xf32>
    %202 = arith.mulf %190, %201 : vector<2x32xf32>
    %203 = arith.addf %199, %202 : vector<2x32xf32>
    %204 = math.tanh %203 : vector<2x32xf32>
    %cst_34 = arith.constant 1.000000e+00 : f32
    %205 = vector.broadcast %cst_34 : f32 to vector<2x32xf32>
    %206 = arith.subf %205, %198 : vector<2x32xf32>
    %207 = arith.mulf %206, %204 : vector<2x32xf32>
    %208 = arith.mulf %198, %181 : vector<2x32xf32>
    %209 = arith.addf %207, %208 : vector<2x32xf32>
    %cst_35 = arith.constant dense<0.000000e+00> : vector<2x384xf32>
    %210 = tpu.matmul %209, %2, %cst_35 {dimension_numbers = #tpu.dot_dimension_numbers<[1], [0], [0], [1], [0, 0, 1, 1], [], []>} : vector<2x32xf32>, vector<32x384xf32>, vector<2x384xf32> -> vector<2x384xf32>
    %211 = vector.extract_strided_slice %10 {offsets = [14, 0], sizes = [2, 32], strides = [1, 1]} : vector<16x32xf32> to vector<2x32xf32>
    %212 = vector.extract_strided_slice %210 {offsets = [0, 0], sizes = [2, 32], strides = [1, 1]} : vector<2x384xf32> to vector<2x32xf32>
    %213 = arith.addf %211, %212 : vector<2x32xf32>
    %214 = arith.negf %213 : vector<2x32xf32>
    %215 = math.exp %214 : vector<2x32xf32>
    %cst_36 = arith.constant 1.000000e+00 : f32
    %216 = vector.broadcast %cst_36 : f32 to vector<2x32xf32>
    %217 = arith.addf %216, %215 : vector<2x32xf32>
    %218 = arith.divf %216, %217 : vector<2x32xf32>
    %219 = vector.extract_strided_slice %11 {offsets = [14, 0], sizes = [2, 32], strides = [1, 1]} : vector<16x32xf32> to vector<2x32xf32>
    %220 = vector.extract_strided_slice %210 {offsets = [0, 128], sizes = [2, 32], strides = [1, 1]} : vector<2x384xf32> to vector<2x32xf32>
    %221 = arith.addf %219, %220 : vector<2x32xf32>
    %222 = arith.negf %221 : vector<2x32xf32>
    %223 = math.exp %222 : vector<2x32xf32>
    %cst_37 = arith.constant 1.000000e+00 : f32
    %224 = vector.broadcast %cst_37 : f32 to vector<2x32xf32>
    %225 = arith.addf %224, %223 : vector<2x32xf32>
    %226 = arith.divf %224, %225 : vector<2x32xf32>
    %227 = vector.extract_strided_slice %12 {offsets = [14, 0], sizes = [2, 32], strides = [1, 1]} : vector<16x32xf32> to vector<2x32xf32>
    %228 = vector.extract_strided_slice %210 {offsets = [0, 256], sizes = [2, 32], strides = [1, 1]} : vector<2x384xf32> to vector<2x32xf32>
    %229 = arith.addf %228, %6 : vector<2x32xf32>
    %230 = arith.mulf %218, %229 : vector<2x32xf32>
    %231 = arith.addf %227, %230 : vector<2x32xf32>
    %232 = math.tanh %231 : vector<2x32xf32>
    %cst_38 = arith.constant 1.000000e+00 : f32
    %233 = vector.broadcast %cst_38 : f32 to vector<2x32xf32>
    %234 = arith.subf %233, %226 : vector<2x32xf32>
    %235 = arith.mulf %234, %232 : vector<2x32xf32>
    %236 = arith.mulf %226, %209 : vector<2x32xf32>
    %237 = arith.addf %235, %236 : vector<2x32xf32>
    %238 = tpu.concatenate %41, %69, %97, %125, %153, %181, %209, %237 in 0 : vector<2x32xf32>, vector<2x32xf32>, vector<2x32xf32>, vector<2x32xf32>, vector<2x32xf32>, vector<2x32xf32>, vector<2x32xf32>, vector<2x32xf32> -> vector<16x32xf32>
    %c56 = arith.constant 56 : index
    %c0_39 = arith.constant 0 : index
    %239 = vector.load %arg1[%c56, %c0_39] : memref<168x384xf32, #tpu.memory_space<vmem>>, vector<32x384xf32>
    %c88 = arith.constant 88 : index
    %c0_40 = arith.constant 0 : index
    %240 = vector.load %arg1[%c88, %c0_40] : memref<168x384xf32, #tpu.memory_space<vmem>>, vector<32x384xf32>
    %c120 = arith.constant 120 : index
    %c0_41 = arith.constant 0 : index
    %241 = vector.load %arg1[%c120, %c0_41] : memref<168x384xf32, #tpu.memory_space<vmem>>, vector<1x384xf32>
    %c121 = arith.constant 121 : index
    %c0_42 = arith.constant 0 : index
    %242 = vector.load %arg1[%c121, %c0_42] : memref<168x384xf32, #tpu.memory_space<vmem>>, vector<1x32xf32>
    %243 = vector.shape_cast %242 : vector<1x32xf32> to vector<1x32xf32>
    %244 = vector.broadcast %243 : vector<1x32xf32> to vector<2x32xf32>
    %cst_43 = arith.constant dense<0.000000e+00> : vector<16x384xf32>
    %245 = tpu.matmul %238, %239, %cst_43 {dimension_numbers = #tpu.dot_dimension_numbers<[1], [0], [0], [1], [0, 0, 1, 1], [], []>} : vector<16x32xf32>, vector<32x384xf32>, vector<16x384xf32> -> vector<16x384xf32>
    %246 = vector.broadcast %241 : vector<1x384xf32> to vector<16x384xf32>
    %247 = arith.addf %245, %246 : vector<16x384xf32>
    %248 = vector.extract_strided_slice %247 {offsets = [0, 0], sizes = [16, 32], strides = [1, 1]} : vector<16x384xf32> to vector<16x32xf32>
    %249 = vector.extract_strided_slice %247 {offsets = [0, 128], sizes = [16, 32], strides = [1, 1]} : vector<16x384xf32> to vector<16x32xf32>
    %250 = vector.extract_strided_slice %247 {offsets = [0, 256], sizes = [16, 32], strides = [1, 1]} : vector<16x384xf32> to vector<16x32xf32>
    %cst_44 = arith.constant 0.000000e+00 : f32
    %251 = vector.broadcast %cst_44 : f32 to vector<2x32xf32>
    %cst_45 = arith.constant dense<0.000000e+00> : vector<2x384xf32>
    %252 = tpu.matmul %251, %240, %cst_45 {dimension_numbers = #tpu.dot_dimension_numbers<[1], [0], [0], [1], [0, 0, 1, 1], [], []>} : vector<2x32xf32>, vector<32x384xf32>, vector<2x384xf32> -> vector<2x384xf32>
    %253 = vector.extract_strided_slice %248 {offsets = [0, 0], sizes = [2, 32], strides = [1, 1]} : vector<16x32xf32> to vector<2x32xf32>
    %254 = vector.extract_strided_slice %252 {offsets = [0, 0], sizes = [2, 32], strides = [1, 1]} : vector<2x384xf32> to vector<2x32xf32>
    %255 = arith.addf %253, %254 : vector<2x32xf32>
    %256 = arith.negf %255 : vector<2x32xf32>
    %257 = math.exp %256 : vector<2x32xf32>
    %cst_46 = arith.constant 1.000000e+00 : f32
    %258 = vector.broadcast %cst_46 : f32 to vector<2x32xf32>
    %259 = arith.addf %258, %257 : vector<2x32xf32>
    %260 = arith.divf %258, %259 : vector<2x32xf32>
    %261 = vector.extract_strided_slice %249 {offsets = [0, 0], sizes = [2, 32], strides = [1, 1]} : vector<16x32xf32> to vector<2x32xf32>
    %262 = vector.extract_strided_slice %252 {offsets = [0, 128], sizes = [2, 32], strides = [1, 1]} : vector<2x384xf32> to vector<2x32xf32>
    %263 = arith.addf %261, %262 : vector<2x32xf32>
    %264 = arith.negf %263 : vector<2x32xf32>
    %265 = math.exp %264 : vector<2x32xf32>
    %cst_47 = arith.constant 1.000000e+00 : f32
    %266 = vector.broadcast %cst_47 : f32 to vector<2x32xf32>
    %267 = arith.addf %266, %265 : vector<2x32xf32>
    %268 = arith.divf %266, %267 : vector<2x32xf32>
    %269 = vector.extract_strided_slice %250 {offsets = [0, 0], sizes = [2, 32], strides = [1, 1]} : vector<16x32xf32> to vector<2x32xf32>
    %270 = vector.extract_strided_slice %252 {offsets = [0, 256], sizes = [2, 32], strides = [1, 1]} : vector<2x384xf32> to vector<2x32xf32>
    %271 = arith.addf %270, %244 : vector<2x32xf32>
    %272 = arith.mulf %260, %271 : vector<2x32xf32>
    %273 = arith.addf %269, %272 : vector<2x32xf32>
    %274 = math.tanh %273 : vector<2x32xf32>
    %cst_48 = arith.constant 1.000000e+00 : f32
    %275 = vector.broadcast %cst_48 : f32 to vector<2x32xf32>
    %276 = arith.subf %275, %268 : vector<2x32xf32>
    %277 = arith.mulf %276, %274 : vector<2x32xf32>
    %278 = arith.mulf %268, %251 : vector<2x32xf32>
    %279 = arith.addf %277, %278 : vector<2x32xf32>
    %cst_49 = arith.constant dense<0.000000e+00> : vector<2x384xf32>
    %280 = tpu.matmul %279, %240, %cst_49 {dimension_numbers = #tpu.dot_dimension_numbers<[1], [0], [0], [1], [0, 0, 1, 1], [], []>} : vector<2x32xf32>, vector<32x384xf32>, vector<2x384xf32> -> vector<2x384xf32>
    %281 = vector.extract_strided_slice %248 {offsets = [2, 0], sizes = [2, 32], strides = [1, 1]} : vector<16x32xf32> to vector<2x32xf32>
    %282 = vector.extract_strided_slice %280 {offsets = [0, 0], sizes = [2, 32], strides = [1, 1]} : vector<2x384xf32> to vector<2x32xf32>
    %283 = arith.addf %281, %282 : vector<2x32xf32>
    %284 = arith.negf %283 : vector<2x32xf32>
    %285 = math.exp %284 : vector<2x32xf32>
    %cst_50 = arith.constant 1.000000e+00 : f32
    %286 = vector.broadcast %cst_50 : f32 to vector<2x32xf32>
    %287 = arith.addf %286, %285 : vector<2x32xf32>
    %288 = arith.divf %286, %287 : vector<2x32xf32>
    %289 = vector.extract_strided_slice %249 {offsets = [2, 0], sizes = [2, 32], strides = [1, 1]} : vector<16x32xf32> to vector<2x32xf32>
    %290 = vector.extract_strided_slice %280 {offsets = [0, 128], sizes = [2, 32], strides = [1, 1]} : vector<2x384xf32> to vector<2x32xf32>
    %291 = arith.addf %289, %290 : vector<2x32xf32>
    %292 = arith.negf %291 : vector<2x32xf32>
    %293 = math.exp %292 : vector<2x32xf32>
    %cst_51 = arith.constant 1.000000e+00 : f32
    %294 = vector.broadcast %cst_51 : f32 to vector<2x32xf32>
    %295 = arith.addf %294, %293 : vector<2x32xf32>
    %296 = arith.divf %294, %295 : vector<2x32xf32>
    %297 = vector.extract_strided_slice %250 {offsets = [2, 0], sizes = [2, 32], strides = [1, 1]} : vector<16x32xf32> to vector<2x32xf32>
    %298 = vector.extract_strided_slice %280 {offsets = [0, 256], sizes = [2, 32], strides = [1, 1]} : vector<2x384xf32> to vector<2x32xf32>
    %299 = arith.addf %298, %244 : vector<2x32xf32>
    %300 = arith.mulf %288, %299 : vector<2x32xf32>
    %301 = arith.addf %297, %300 : vector<2x32xf32>
    %302 = math.tanh %301 : vector<2x32xf32>
    %cst_52 = arith.constant 1.000000e+00 : f32
    %303 = vector.broadcast %cst_52 : f32 to vector<2x32xf32>
    %304 = arith.subf %303, %296 : vector<2x32xf32>
    %305 = arith.mulf %304, %302 : vector<2x32xf32>
    %306 = arith.mulf %296, %279 : vector<2x32xf32>
    %307 = arith.addf %305, %306 : vector<2x32xf32>
    %cst_53 = arith.constant dense<0.000000e+00> : vector<2x384xf32>
    %308 = tpu.matmul %307, %240, %cst_53 {dimension_numbers = #tpu.dot_dimension_numbers<[1], [0], [0], [1], [0, 0, 1, 1], [], []>} : vector<2x32xf32>, vector<32x384xf32>, vector<2x384xf32> -> vector<2x384xf32>
    %309 = vector.extract_strided_slice %248 {offsets = [4, 0], sizes = [2, 32], strides = [1, 1]} : vector<16x32xf32> to vector<2x32xf32>
    %310 = vector.extract_strided_slice %308 {offsets = [0, 0], sizes = [2, 32], strides = [1, 1]} : vector<2x384xf32> to vector<2x32xf32>
    %311 = arith.addf %309, %310 : vector<2x32xf32>
    %312 = arith.negf %311 : vector<2x32xf32>
    %313 = math.exp %312 : vector<2x32xf32>
    %cst_54 = arith.constant 1.000000e+00 : f32
    %314 = vector.broadcast %cst_54 : f32 to vector<2x32xf32>
    %315 = arith.addf %314, %313 : vector<2x32xf32>
    %316 = arith.divf %314, %315 : vector<2x32xf32>
    %317 = vector.extract_strided_slice %249 {offsets = [4, 0], sizes = [2, 32], strides = [1, 1]} : vector<16x32xf32> to vector<2x32xf32>
    %318 = vector.extract_strided_slice %308 {offsets = [0, 128], sizes = [2, 32], strides = [1, 1]} : vector<2x384xf32> to vector<2x32xf32>
    %319 = arith.addf %317, %318 : vector<2x32xf32>
    %320 = arith.negf %319 : vector<2x32xf32>
    %321 = math.exp %320 : vector<2x32xf32>
    %cst_55 = arith.constant 1.000000e+00 : f32
    %322 = vector.broadcast %cst_55 : f32 to vector<2x32xf32>
    %323 = arith.addf %322, %321 : vector<2x32xf32>
    %324 = arith.divf %322, %323 : vector<2x32xf32>
    %325 = vector.extract_strided_slice %250 {offsets = [4, 0], sizes = [2, 32], strides = [1, 1]} : vector<16x32xf32> to vector<2x32xf32>
    %326 = vector.extract_strided_slice %308 {offsets = [0, 256], sizes = [2, 32], strides = [1, 1]} : vector<2x384xf32> to vector<2x32xf32>
    %327 = arith.addf %326, %244 : vector<2x32xf32>
    %328 = arith.mulf %316, %327 : vector<2x32xf32>
    %329 = arith.addf %325, %328 : vector<2x32xf32>
    %330 = math.tanh %329 : vector<2x32xf32>
    %cst_56 = arith.constant 1.000000e+00 : f32
    %331 = vector.broadcast %cst_56 : f32 to vector<2x32xf32>
    %332 = arith.subf %331, %324 : vector<2x32xf32>
    %333 = arith.mulf %332, %330 : vector<2x32xf32>
    %334 = arith.mulf %324, %307 : vector<2x32xf32>
    %335 = arith.addf %333, %334 : vector<2x32xf32>
    %cst_57 = arith.constant dense<0.000000e+00> : vector<2x384xf32>
    %336 = tpu.matmul %335, %240, %cst_57 {dimension_numbers = #tpu.dot_dimension_numbers<[1], [0], [0], [1], [0, 0, 1, 1], [], []>} : vector<2x32xf32>, vector<32x384xf32>, vector<2x384xf32> -> vector<2x384xf32>
    %337 = vector.extract_strided_slice %248 {offsets = [6, 0], sizes = [2, 32], strides = [1, 1]} : vector<16x32xf32> to vector<2x32xf32>
    %338 = vector.extract_strided_slice %336 {offsets = [0, 0], sizes = [2, 32], strides = [1, 1]} : vector<2x384xf32> to vector<2x32xf32>
    %339 = arith.addf %337, %338 : vector<2x32xf32>
    %340 = arith.negf %339 : vector<2x32xf32>
    %341 = math.exp %340 : vector<2x32xf32>
    %cst_58 = arith.constant 1.000000e+00 : f32
    %342 = vector.broadcast %cst_58 : f32 to vector<2x32xf32>
    %343 = arith.addf %342, %341 : vector<2x32xf32>
    %344 = arith.divf %342, %343 : vector<2x32xf32>
    %345 = vector.extract_strided_slice %249 {offsets = [6, 0], sizes = [2, 32], strides = [1, 1]} : vector<16x32xf32> to vector<2x32xf32>
    %346 = vector.extract_strided_slice %336 {offsets = [0, 128], sizes = [2, 32], strides = [1, 1]} : vector<2x384xf32> to vector<2x32xf32>
    %347 = arith.addf %345, %346 : vector<2x32xf32>
    %348 = arith.negf %347 : vector<2x32xf32>
    %349 = math.exp %348 : vector<2x32xf32>
    %cst_59 = arith.constant 1.000000e+00 : f32
    %350 = vector.broadcast %cst_59 : f32 to vector<2x32xf32>
    %351 = arith.addf %350, %349 : vector<2x32xf32>
    %352 = arith.divf %350, %351 : vector<2x32xf32>
    %353 = vector.extract_strided_slice %250 {offsets = [6, 0], sizes = [2, 32], strides = [1, 1]} : vector<16x32xf32> to vector<2x32xf32>
    %354 = vector.extract_strided_slice %336 {offsets = [0, 256], sizes = [2, 32], strides = [1, 1]} : vector<2x384xf32> to vector<2x32xf32>
    %355 = arith.addf %354, %244 : vector<2x32xf32>
    %356 = arith.mulf %344, %355 : vector<2x32xf32>
    %357 = arith.addf %353, %356 : vector<2x32xf32>
    %358 = math.tanh %357 : vector<2x32xf32>
    %cst_60 = arith.constant 1.000000e+00 : f32
    %359 = vector.broadcast %cst_60 : f32 to vector<2x32xf32>
    %360 = arith.subf %359, %352 : vector<2x32xf32>
    %361 = arith.mulf %360, %358 : vector<2x32xf32>
    %362 = arith.mulf %352, %335 : vector<2x32xf32>
    %363 = arith.addf %361, %362 : vector<2x32xf32>
    %cst_61 = arith.constant dense<0.000000e+00> : vector<2x384xf32>
    %364 = tpu.matmul %363, %240, %cst_61 {dimension_numbers = #tpu.dot_dimension_numbers<[1], [0], [0], [1], [0, 0, 1, 1], [], []>} : vector<2x32xf32>, vector<32x384xf32>, vector<2x384xf32> -> vector<2x384xf32>
    %365 = vector.extract_strided_slice %248 {offsets = [8, 0], sizes = [2, 32], strides = [1, 1]} : vector<16x32xf32> to vector<2x32xf32>
    %366 = vector.extract_strided_slice %364 {offsets = [0, 0], sizes = [2, 32], strides = [1, 1]} : vector<2x384xf32> to vector<2x32xf32>
    %367 = arith.addf %365, %366 : vector<2x32xf32>
    %368 = arith.negf %367 : vector<2x32xf32>
    %369 = math.exp %368 : vector<2x32xf32>
    %cst_62 = arith.constant 1.000000e+00 : f32
    %370 = vector.broadcast %cst_62 : f32 to vector<2x32xf32>
    %371 = arith.addf %370, %369 : vector<2x32xf32>
    %372 = arith.divf %370, %371 : vector<2x32xf32>
    %373 = vector.extract_strided_slice %249 {offsets = [8, 0], sizes = [2, 32], strides = [1, 1]} : vector<16x32xf32> to vector<2x32xf32>
    %374 = vector.extract_strided_slice %364 {offsets = [0, 128], sizes = [2, 32], strides = [1, 1]} : vector<2x384xf32> to vector<2x32xf32>
    %375 = arith.addf %373, %374 : vector<2x32xf32>
    %376 = arith.negf %375 : vector<2x32xf32>
    %377 = math.exp %376 : vector<2x32xf32>
    %cst_63 = arith.constant 1.000000e+00 : f32
    %378 = vector.broadcast %cst_63 : f32 to vector<2x32xf32>
    %379 = arith.addf %378, %377 : vector<2x32xf32>
    %380 = arith.divf %378, %379 : vector<2x32xf32>
    %381 = vector.extract_strided_slice %250 {offsets = [8, 0], sizes = [2, 32], strides = [1, 1]} : vector<16x32xf32> to vector<2x32xf32>
    %382 = vector.extract_strided_slice %364 {offsets = [0, 256], sizes = [2, 32], strides = [1, 1]} : vector<2x384xf32> to vector<2x32xf32>
    %383 = arith.addf %382, %244 : vector<2x32xf32>
    %384 = arith.mulf %372, %383 : vector<2x32xf32>
    %385 = arith.addf %381, %384 : vector<2x32xf32>
    %386 = math.tanh %385 : vector<2x32xf32>
    %cst_64 = arith.constant 1.000000e+00 : f32
    %387 = vector.broadcast %cst_64 : f32 to vector<2x32xf32>
    %388 = arith.subf %387, %380 : vector<2x32xf32>
    %389 = arith.mulf %388, %386 : vector<2x32xf32>
    %390 = arith.mulf %380, %363 : vector<2x32xf32>
    %391 = arith.addf %389, %390 : vector<2x32xf32>
    %cst_65 = arith.constant dense<0.000000e+00> : vector<2x384xf32>
    %392 = tpu.matmul %391, %240, %cst_65 {dimension_numbers = #tpu.dot_dimension_numbers<[1], [0], [0], [1], [0, 0, 1, 1], [], []>} : vector<2x32xf32>, vector<32x384xf32>, vector<2x384xf32> -> vector<2x384xf32>
    %393 = vector.extract_strided_slice %248 {offsets = [10, 0], sizes = [2, 32], strides = [1, 1]} : vector<16x32xf32> to vector<2x32xf32>
    %394 = vector.extract_strided_slice %392 {offsets = [0, 0], sizes = [2, 32], strides = [1, 1]} : vector<2x384xf32> to vector<2x32xf32>
    %395 = arith.addf %393, %394 : vector<2x32xf32>
    %396 = arith.negf %395 : vector<2x32xf32>
    %397 = math.exp %396 : vector<2x32xf32>
    %cst_66 = arith.constant 1.000000e+00 : f32
    %398 = vector.broadcast %cst_66 : f32 to vector<2x32xf32>
    %399 = arith.addf %398, %397 : vector<2x32xf32>
    %400 = arith.divf %398, %399 : vector<2x32xf32>
    %401 = vector.extract_strided_slice %249 {offsets = [10, 0], sizes = [2, 32], strides = [1, 1]} : vector<16x32xf32> to vector<2x32xf32>
    %402 = vector.extract_strided_slice %392 {offsets = [0, 128], sizes = [2, 32], strides = [1, 1]} : vector<2x384xf32> to vector<2x32xf32>
    %403 = arith.addf %401, %402 : vector<2x32xf32>
    %404 = arith.negf %403 : vector<2x32xf32>
    %405 = math.exp %404 : vector<2x32xf32>
    %cst_67 = arith.constant 1.000000e+00 : f32
    %406 = vector.broadcast %cst_67 : f32 to vector<2x32xf32>
    %407 = arith.addf %406, %405 : vector<2x32xf32>
    %408 = arith.divf %406, %407 : vector<2x32xf32>
    %409 = vector.extract_strided_slice %250 {offsets = [10, 0], sizes = [2, 32], strides = [1, 1]} : vector<16x32xf32> to vector<2x32xf32>
    %410 = vector.extract_strided_slice %392 {offsets = [0, 256], sizes = [2, 32], strides = [1, 1]} : vector<2x384xf32> to vector<2x32xf32>
    %411 = arith.addf %410, %244 : vector<2x32xf32>
    %412 = arith.mulf %400, %411 : vector<2x32xf32>
    %413 = arith.addf %409, %412 : vector<2x32xf32>
    %414 = math.tanh %413 : vector<2x32xf32>
    %cst_68 = arith.constant 1.000000e+00 : f32
    %415 = vector.broadcast %cst_68 : f32 to vector<2x32xf32>
    %416 = arith.subf %415, %408 : vector<2x32xf32>
    %417 = arith.mulf %416, %414 : vector<2x32xf32>
    %418 = arith.mulf %408, %391 : vector<2x32xf32>
    %419 = arith.addf %417, %418 : vector<2x32xf32>
    %cst_69 = arith.constant dense<0.000000e+00> : vector<2x384xf32>
    %420 = tpu.matmul %419, %240, %cst_69 {dimension_numbers = #tpu.dot_dimension_numbers<[1], [0], [0], [1], [0, 0, 1, 1], [], []>} : vector<2x32xf32>, vector<32x384xf32>, vector<2x384xf32> -> vector<2x384xf32>
    %421 = vector.extract_strided_slice %248 {offsets = [12, 0], sizes = [2, 32], strides = [1, 1]} : vector<16x32xf32> to vector<2x32xf32>
    %422 = vector.extract_strided_slice %420 {offsets = [0, 0], sizes = [2, 32], strides = [1, 1]} : vector<2x384xf32> to vector<2x32xf32>
    %423 = arith.addf %421, %422 : vector<2x32xf32>
    %424 = arith.negf %423 : vector<2x32xf32>
    %425 = math.exp %424 : vector<2x32xf32>
    %cst_70 = arith.constant 1.000000e+00 : f32
    %426 = vector.broadcast %cst_70 : f32 to vector<2x32xf32>
    %427 = arith.addf %426, %425 : vector<2x32xf32>
    %428 = arith.divf %426, %427 : vector<2x32xf32>
    %429 = vector.extract_strided_slice %249 {offsets = [12, 0], sizes = [2, 32], strides = [1, 1]} : vector<16x32xf32> to vector<2x32xf32>
    %430 = vector.extract_strided_slice %420 {offsets = [0, 128], sizes = [2, 32], strides = [1, 1]} : vector<2x384xf32> to vector<2x32xf32>
    %431 = arith.addf %429, %430 : vector<2x32xf32>
    %432 = arith.negf %431 : vector<2x32xf32>
    %433 = math.exp %432 : vector<2x32xf32>
    %cst_71 = arith.constant 1.000000e+00 : f32
    %434 = vector.broadcast %cst_71 : f32 to vector<2x32xf32>
    %435 = arith.addf %434, %433 : vector<2x32xf32>
    %436 = arith.divf %434, %435 : vector<2x32xf32>
    %437 = vector.extract_strided_slice %250 {offsets = [12, 0], sizes = [2, 32], strides = [1, 1]} : vector<16x32xf32> to vector<2x32xf32>
    %438 = vector.extract_strided_slice %420 {offsets = [0, 256], sizes = [2, 32], strides = [1, 1]} : vector<2x384xf32> to vector<2x32xf32>
    %439 = arith.addf %438, %244 : vector<2x32xf32>
    %440 = arith.mulf %428, %439 : vector<2x32xf32>
    %441 = arith.addf %437, %440 : vector<2x32xf32>
    %442 = math.tanh %441 : vector<2x32xf32>
    %cst_72 = arith.constant 1.000000e+00 : f32
    %443 = vector.broadcast %cst_72 : f32 to vector<2x32xf32>
    %444 = arith.subf %443, %436 : vector<2x32xf32>
    %445 = arith.mulf %444, %442 : vector<2x32xf32>
    %446 = arith.mulf %436, %419 : vector<2x32xf32>
    %447 = arith.addf %445, %446 : vector<2x32xf32>
    %cst_73 = arith.constant dense<0.000000e+00> : vector<2x384xf32>
    %448 = tpu.matmul %447, %240, %cst_73 {dimension_numbers = #tpu.dot_dimension_numbers<[1], [0], [0], [1], [0, 0, 1, 1], [], []>} : vector<2x32xf32>, vector<32x384xf32>, vector<2x384xf32> -> vector<2x384xf32>
    %449 = vector.extract_strided_slice %248 {offsets = [14, 0], sizes = [2, 32], strides = [1, 1]} : vector<16x32xf32> to vector<2x32xf32>
    %450 = vector.extract_strided_slice %448 {offsets = [0, 0], sizes = [2, 32], strides = [1, 1]} : vector<2x384xf32> to vector<2x32xf32>
    %451 = arith.addf %449, %450 : vector<2x32xf32>
    %452 = arith.negf %451 : vector<2x32xf32>
    %453 = math.exp %452 : vector<2x32xf32>
    %cst_74 = arith.constant 1.000000e+00 : f32
    %454 = vector.broadcast %cst_74 : f32 to vector<2x32xf32>
    %455 = arith.addf %454, %453 : vector<2x32xf32>
    %456 = arith.divf %454, %455 : vector<2x32xf32>
    %457 = vector.extract_strided_slice %249 {offsets = [14, 0], sizes = [2, 32], strides = [1, 1]} : vector<16x32xf32> to vector<2x32xf32>
    %458 = vector.extract_strided_slice %448 {offsets = [0, 128], sizes = [2, 32], strides = [1, 1]} : vector<2x384xf32> to vector<2x32xf32>
    %459 = arith.addf %457, %458 : vector<2x32xf32>
    %460 = arith.negf %459 : vector<2x32xf32>
    %461 = math.exp %460 : vector<2x32xf32>
    %cst_75 = arith.constant 1.000000e+00 : f32
    %462 = vector.broadcast %cst_75 : f32 to vector<2x32xf32>
    %463 = arith.addf %462, %461 : vector<2x32xf32>
    %464 = arith.divf %462, %463 : vector<2x32xf32>
    %465 = vector.extract_strided_slice %250 {offsets = [14, 0], sizes = [2, 32], strides = [1, 1]} : vector<16x32xf32> to vector<2x32xf32>
    %466 = vector.extract_strided_slice %448 {offsets = [0, 256], sizes = [2, 32], strides = [1, 1]} : vector<2x384xf32> to vector<2x32xf32>
    %467 = arith.addf %466, %244 : vector<2x32xf32>
    %468 = arith.mulf %456, %467 : vector<2x32xf32>
    %469 = arith.addf %465, %468 : vector<2x32xf32>
    %470 = math.tanh %469 : vector<2x32xf32>
    %cst_76 = arith.constant 1.000000e+00 : f32
    %471 = vector.broadcast %cst_76 : f32 to vector<2x32xf32>
    %472 = arith.subf %471, %464 : vector<2x32xf32>
    %473 = arith.mulf %472, %470 : vector<2x32xf32>
    %474 = arith.mulf %464, %447 : vector<2x32xf32>
    %475 = arith.addf %473, %474 : vector<2x32xf32>
    %c128 = arith.constant 128 : index
    %c0_77 = arith.constant 0 : index
    %476 = vector.load %arg1[%c128, %c0_77] : memref<168x384xf32, #tpu.memory_space<vmem>>, vector<32x10xf32>
    %c160 = arith.constant 160 : index
    %c0_78 = arith.constant 0 : index
    %477 = vector.load %arg1[%c160, %c0_78] : memref<168x384xf32, #tpu.memory_space<vmem>>, vector<1x10xf32>
    %cst_79 = arith.constant 0.000000e+00 : f32
    %478 = vector.broadcast %cst_79 : f32 to vector<2x32xf32>
    %479 = arith.maximumf %475, %478 : vector<2x32xf32>
    %cst_80 = arith.constant dense<0.000000e+00> : vector<2x10xf32>
    %480 = tpu.matmul %479, %476, %cst_80 {dimension_numbers = #tpu.dot_dimension_numbers<[1], [0], [0], [1], [0, 0, 1, 1], [], []>} : vector<2x32xf32>, vector<32x10xf32>, vector<2x10xf32> -> vector<2x10xf32>
    %481 = vector.broadcast %477 : vector<1x10xf32> to vector<2x10xf32>
    %482 = arith.addf %480, %481 : vector<2x10xf32>
    %cst_81 = arith.constant dense<0xFF800000> : vector<2xf32>
    %483 = vector.multi_reduction <maximumf>, %482, %cst_81 [1] : vector<2x10xf32> to vector<2xf32>
    %484 = vector.shape_cast %483 : vector<2xf32> to vector<2x1xf32>
    %485 = vector.broadcast %484 : vector<2x1xf32> to vector<2x10xf32>
    %486 = arith.subf %482, %485 : vector<2x10xf32>
    %487 = math.exp %486 : vector<2x10xf32>
    %cst_82 = arith.constant dense<0.000000e+00> : vector<2xf32>
    %488 = vector.multi_reduction <add>, %487, %cst_82 [1] : vector<2x10xf32> to vector<2xf32>
    %489 = vector.shape_cast %488 : vector<2xf32> to vector<2x1xf32>
    %490 = math.log %489 : vector<2x1xf32>
    %491 = vector.broadcast %490 : vector<2x1xf32> to vector<2x10xf32>
    %492 = arith.subf %486, %491 : vector<2x10xf32>
    %c0_83 = arith.constant 0 : index
    %c0_84 = arith.constant 0 : index
    %493 = vector.load %arg2[%c0_83, %c0_84] : memref<2x10xf32, #tpu.memory_space<vmem>>, vector<2x10xf32>
    tpu.vector_store %arg2[%c0_83, %c0_84], %492 {strides = array<i32>} : memref<2x10xf32, #tpu.memory_space<vmem>>, vector<2x10xf32>,
    return
  }
}

</mosaic_0001>

<llo_original>
// kernel: tpu_custom_call.1
$region0: #{tpu_custom_call.1}
  #allocation0 [shape = 'u32[]', space=smem, size = 0x4, offset = 0x4, fixed_abs, tag = 'smem constant byte address 0x4 - core index']
  #allocation1 [shape = 'u32[144,128]{1,0:T(1,128)}', space=vmem, size = 0x12000, scoped, tag = 'internal scratch']
  %s0 = inlined_call_operand.hbm [shape: f32[16,16], index: 0, kind: input, shape index: {}]
  %s1 = inlined_call_operand.hbm [shape: f32[168,384], index: 1, kind: input, shape index: {}]
  %s2 = inlined_call_operand.hbm [shape: f32[2,10], index: 2, kind: output, shape index: {}]
  %s3 = sld [smem:[#allocation0]]
  $region26: #{tpu_custom_call.1} parent=0
    _
  %s5 = ssub.s32 1, %s3
  %s6 = scalar_select 0, %s5, %s3
  $region1: #{tpu_custom_call.1} parent=0
    #allocation2 [shape = 'u8[8192]{0}', space=vmem, size = 0x2000, scoped, tag = 'input window, operand 0, single buffered']
    #allocation3 [shape = 's32[1]{0}', space=sflag, size = 0x4, scoped, tag = 'scoped memory for tpu_custom_call.1']
    #allocation4 [shape = 's32[1]{0}', space=sflag, size = 0x4, scoped, tag = 'scoped memory for tpu_custom_call.1']
    #allocation5 [shape = 'u8[258048]{0}', space=vmem, size = 0x3f000, scoped, tag = 'input window, operand 1, single buffered']
    #allocation6 [shape = 's32[1]{0}', space=sflag, size = 0x4, scoped, tag = 'scoped memory for tpu_custom_call.1']
    #allocation7 [shape = 'u8[1024]{0}', space=vmem, size = 0x400, scoped, tag = 'output window, operand 0, single buffered']
    %7 = vsyncpa [#allocation3], 0
    %8 = vsyncpa [#allocation6], 0
    %9 = vsyncpa [#allocation4], 0
    // Predicated region
    $region2: #{tpu_custom_call.1} parent=1 // pred_check
      _
    $region3: #{tpu_custom_call.1} parent=1 // pred_check_branch
      %11 = sbr.rel (0) target = $region5
    $region4: #{tpu_custom_call.1} parent=1 // pred_region
      %s13 = ssub.s32 256, 256
      %14 = vsyncadd [#allocation3], %s13
      %s15 = sshll.u32 [#allocation2], 4
      %s16 = int_to_ptr.vmem [resolvable:$true] %s15
      %21 = dma.hbm_to_vmem [thread:$0]  %s0, 256, %s16, [#allocation3], 128, 128, 8
    $region5: #{tpu_custom_call.1} parent=1 // pred_fallthru
      _
    // Predicated region
    $region6: #{tpu_custom_call.1} parent=1 // pred_check
      _
    $region7: #{tpu_custom_call.1} parent=1 // pred_check_branch
      %23 = sbr.rel (0) target = $region9
    $region8: #{tpu_custom_call.1} parent=1 // pred_region
      %s25 = ssub.s32 8064, 8064
      %26 = vsyncadd [#allocation6], %s25
      %s27 = sshll.u32 [#allocation5], 4
      %s28 = int_to_ptr.vmem [resolvable:$true] %s27
      %33 = dma.hbm_to_vmem [thread:$0]  %s1, 8064, %s28, [#allocation6], 384, 384, 24
    $region9: #{tpu_custom_call.1} parent=1 // pred_fallthru
      _
    // Predicated region
    $region10: #{tpu_custom_call.1} parent=1 // pred_check
      _
    $region11: #{tpu_custom_call.1} parent=1 // pred_check_branch
      %35 = sbr.rel (0) target = $region13
    $region12: #{tpu_custom_call.1} parent=1 // pred_region
      %36 = dma.done [#allocation3], 256
    $region13: #{tpu_custom_call.1} parent=1 // pred_fallthru
      _
    // Predicated region
    $region14: #{tpu_custom_call.1} parent=1 // pred_check
      _
    $region15: #{tpu_custom_call.1} parent=1 // pred_check_branch
      %38 = sbr.rel (0) target = $region17
    $region16: #{tpu_custom_call.1} parent=1 // pred_region
      %39 = dma.done [#allocation6], 8064
    $region17: #{tpu_custom_call.1} parent=1 // pred_fallthru
      _
    %v40 = vld [vmem:[#allocation2] sm:$0xff]
    %v41 = vld [vmem:[#allocation2 + $0x8] sm:$0xff]
    %v42 = vld [vmem:[#allocation5] sm:$0xff]
    %v43 = vld [vmem:[#allocation5 + $0x8] sm:$0xff]
    %v44 = vld [vmem:[#allocation5 + $0x10] sm:$0xff]
    %v45 = vld [vmem:[#allocation5 + $0x18] sm:$0xff]
    %v46 = vld [vmem:[#allocation5 + $0x20] sm:$0xff]
    %v47 = vld [vmem:[#allocation5 + $0x28] sm:$0xff]
    %v48 = vld [vmem:[#allocation5 + $0x30] sm:$0xff]
    %v49 = vld [vmem:[#allocation5 + $0x38] sm:$0xff]
    %v50 = vld [vmem:[#allocation5 + $0x40] sm:$0xff]
    %v51 = vld [vmem:[#allocation5 + $0x48] sm:$0xff]
    %v52 = vld [vmem:[#allocation5 + $0x50] sm:$0xff]
    %v53 = vld [vmem:[#allocation5 + $0x58] sm:$0xff]
    %v54 = vld [vmem:[#allocation5 + $0x60] sm:$0xff]
    %v55 = vld [vmem:[#allocation5 + $0x68] sm:$0xff]
    %v56 = vld [vmem:[#allocation5 + $0x70] sm:$0xff]
    %v57 = vld [vmem:[#allocation5 + $0x78] sm:$0xff]
    %v58 = vld [vmem:[#allocation5 + $0x80] sm:$0xff]
    %v59 = vld [vmem:[#allocation5 + $0x88] sm:$0xff]
    %s60 = scalar_lea.vmem [#allocation5], 144
    %v61 = vld [vmem:[%s60] ss:$8 sm:$0x7]
    %v62 = vld [vmem:[#allocation5 + $0x91] ss:$0 sm:$0xff]
    %v64 = vlaneseq
    %v65 = vshrl.u32 %v64, 7
    %v66 = vsub.s32 0, %v65
    %v67 = vrot.slane %v61, %v66
    %v68 = vlaneseq
    %v69 = vshrl.u32 %v68, 7
    %v70 = vsub.s32 1, %v69
    %v71 = vrot.slane %v61, %v70
    %v72 = vlaneseq
    %v73 = vshrl.u32 %v72, 7
    %v74 = vsub.s32 2, %v73
    %v75 = vrot.slane %v61, %v74
    %vm79 = vcmask 130048
    %v81 = vsel %vm79, %v40, 0
    %v84 = vsel %vm79, %v41, 0
    %86 = vmatprep.subr.mxu0 0.0
    %87 = vmatpush1.msra.mxu0 0.0
    %88 = vmatprep.subr.mxu0 0.0
    %89 = vmatpush1.msra.mxu0 0.0
    %90 = vmatprep.subr.mxu0 0.0
    %91 = vmatpush1.msra.mxu0 0.0
    %92 = vmatprep.subr.mxu0 0.0
    %93 = vmatpush1.msra.mxu0 0.0
    %94 = vmatprep.subr.mxu0 0.0
    %95 = vmatpush1.msra.mxu0 0.0
    %96 = vmatprep.subr.mxu0 0.0
    %97 = vmatpush1.msra.mxu0 0.0
    %98 = vmatprep.subr.mxu0 0.0
    %99 = vmatpush1.msra.mxu0 0.0
    %100 = vmatprep.subr.mxu0 0.0
    %101 = vmatpush1.msra.mxu0 0.0
    %102 = vmatprep.subr.mxu0 0.0
    %103 = vmatpush1.msra.mxu0 0.0
    %104 = vmatprep.subr.mxu0 0.0
    %105 = vmatpush1.msra.mxu0 0.0
    %106 = vmatprep.subr.mxu0 0.0
    %107 = vmatpush1.msra.mxu0 0.0
    %108 = vmatprep.subr.mxu0 0.0
    %109 = vmatpush1.msra.mxu0 0.0
    %110 = vmatprep.subr.mxu0 0.0
    %111 = vmatpush1.msra.mxu0 0.0
    %112 = vmatprep.subr.mxu0 0.0
    %113 = vmatpush1.msra.mxu0 0.0
    %114 = vmatprep.subr.mxu0 %v46
    %115 = vmatpush1.msra.mxu0 %v45
    %116 = vmatprep.subr.mxu0 %v43
    %117 = vmatpush1.msra.mxu0 %v42
    %118 = vmatprep.subr.mxu0 0.0
    %119 = vmatpush2.msra.mxu0 0.0
    %120 = vmatprep.subr.mxu0 0.0
    %121 = vmatpush2.msra.mxu0 0.0
    %122 = vmatprep.subr.mxu0 0.0
    %123 = vmatpush2.msra.mxu0 0.0
    %124 = vmatprep.subr.mxu0 0.0
    %125 = vmatpush2.msra.mxu0 0.0
    %126 = vmatprep.subr.mxu0 0.0
    %127 = vmatpush2.msra.mxu0 0.0
    %128 = vmatprep.subr.mxu0 0.0
    %129 = vmatpush2.msra.mxu0 0.0
    %130 = vmatprep.subr.mxu0 0.0
    %131 = vmatpush2.msra.mxu0 0.0
    %132 = vmatprep.subr.mxu0 0.0
    %133 = vmatpush2.msra.mxu0 0.0
    %134 = vmatprep.subr.mxu0 0.0
    %135 = vmatpush2.msra.mxu0 0.0
    %136 = vmatprep.subr.mxu0 0.0
    %137 = vmatpush2.msra.mxu0 0.0
    %138 = vmatprep.subr.mxu0 0.0
    %139 = vmatpush2.msra.mxu0 0.0
    %140 = vmatprep.subr.mxu0 0.0
    %141 = vmatpush2.msra.mxu0 0.0
    %142 = vmatprep.subr.mxu0 0.0
    %143 = vmatpush2.msra.mxu0 0.0
    %144 = vmatprep.subr.mxu0 0.0
    %145 = vmatpush2.msra.mxu0 0.0
    %146 = vmatprep.subr.mxu0 0.0
    %147 = vmatpush2.msra.mxu0 0.0
    %148 = vmatprep.subr.mxu0 0.0
    %149 = vmatpush2.msra.mxu0 0.0
    %150 = vmatprep.mubr.f32.mxu0 0.0
    %151 = vmatmul.mubr.f32.gmra.mxu0 %v81
    %v152 = vpop.f32.mrf.mxu0
    %v153 = vadd.f32 %v67, %v152
    %v154 = vpop.f32.mrf.mxu0
    %v155 = vadd.f32 %v71, %v154
    %156 = vmatprep.mubr.f32.mxu0 0.0
    %157 = vmatmul.mubr.f32.gmra.mxu0 %v84
    %v158 = vpop.f32.mrf.mxu0
    %v159 = vadd.f32 %v67, %v158
    %v160 = vpop.f32.mrf.mxu0
    %v161 = vadd.f32 %v71, %v160
    %162 = vdwg.mxu0
    %163 = vmatprep.subr.mxu0 0.0
    %164 = vmatpush1.msra.mxu0 0.0
    %165 = vmatprep.subr.mxu0 0.0
    %166 = vmatpush1.msra.mxu0 0.0
    %167 = vmatprep.subr.mxu0 0.0
    %168 = vmatpush1.msra.mxu0 0.0
    %169 = vmatprep.subr.mxu0 0.0
    %170 = vmatpush1.msra.mxu0 0.0
    %171 = vmatprep.subr.mxu0 0.0
    %172 = vmatpush1.msra.mxu0 0.0
    %173 = vmatprep.subr.mxu0 0.0
    %174 = vmatpush1.msra.mxu0 0.0
    %175 = vmatprep.subr.mxu0 0.0
    %176 = vmatpush1.msra.mxu0 0.0
    %177 = vmatprep.subr.mxu0 0.0
    %178 = vmatpush1.msra.mxu0 0.0
    %179 = vmatprep.subr.mxu0 0.0
    %180 = vmatpush1.msra.mxu0 0.0
    %181 = vmatprep.subr.mxu0 0.0
    %182 = vmatpush1.msra.mxu0 0.0
    %183 = vmatprep.subr.mxu0 0.0
    %184 = vmatpush1.msra.mxu0 0.0
    %185 = vmatprep.subr.mxu0 0.0
    %186 = vmatpush1.msra.mxu0 0.0
    %187 = vmatprep.subr.mxu0 0.0
    %188 = vmatpush1.msra.mxu0 0.0
    %189 = vmatprep.subr.mxu0 0.0
    %190 = vmatpush1.msra.mxu0 0.0
    %191 = vmatprep.subr.mxu0 0.0
    %192 = vmatpush1.msra.mxu0 %v47
    %193 = vmatprep.subr.mxu0 0.0
    %194 = vmatpush1.msra.mxu0 %v44
    %195 = vmatprep.subr.mxu0 0.0
    %196 = vmatpush2.msra.mxu0 0.0
    %197 = vmatprep.subr.mxu0 0.0
    %198 = vmatpush2.msra.mxu0 0.0
    %199 = vmatprep.subr.mxu0 0.0
    %200 = vmatpush2.msra.mxu0 0.0
    %201 = vmatprep.subr.mxu0 0.0
    %202 = vmatpush2.msra.mxu0 0.0
    %203 = vmatprep.subr.mxu0 0.0
    %204 = vmatpush2.msra.mxu0 0.0
    %205 = vmatprep.subr.mxu0 0.0
    %206 = vmatpush2.msra.mxu0 0.0
    %207 = vmatprep.subr.mxu0 0.0
    %208 = vmatpush2.msra.mxu0 0.0
    %209 = vmatprep.subr.mxu0 0.0
    %210 = vmatpush2.msra.mxu0 0.0
    %211 = vmatprep.subr.mxu0 0.0
    %212 = vmatpush2.msra.mxu0 0.0
    %213 = vmatprep.subr.mxu0 0.0
    %214 = vmatpush2.msra.mxu0 0.0
    %215 = vmatprep.subr.mxu0 0.0
    %216 = vmatpush2.msra.mxu0 0.0
    %217 = vmatprep.subr.mxu0 0.0
    %218 = vmatpush2.msra.mxu0 0.0
    %219 = vmatprep.subr.mxu0 0.0
    %220 = vmatpush2.msra.mxu0 0.0
    %221 = vmatprep.subr.mxu0 0.0
    %222 = vmatpush2.msra.mxu0 0.0
    %223 = vmatprep.subr.mxu0 0.0
    %224 = vmatpush2.msra.mxu0 0.0
    %225 = vmatprep.subr.mxu0 0.0
    %226 = vmatpush2.msra.mxu0 0.0
    %227 = vmatprep.mubr.f32.mxu0 0.0
    %228 = vmatmul.mubr.f32.gmra.mxu0 %v81
    %v229 = vpop.f32.mrf.mxu0
    %v230 = vadd.f32 %v75, %v229
    %v231 = vpop.f32.mrf.mxu0
    %232 = vmatprep.mubr.f32.mxu0 0.0
    %233 = vmatmul.mubr.f32.gmra.mxu0 %v84
    %v234 = vpop.f32.mrf.mxu0
    %v235 = vadd.f32 %v75, %v234
    %v236 = vpop.f32.mrf.mxu0
    %237 = vdwg.mxu0
    %vm238 = vcmask 261120
    %v240 = vsel %vm238, 0.0, 0
    %242 = vmatprep.subr.mxu0 0.0
    %243 = vmatpush1.msra.mxu0 0.0
    %244 = vmatprep.subr.mxu0 0.0
    %245 = vmatpush1.msra.mxu0 0.0
    %246 = vmatprep.subr.mxu0 0.0
    %247 = vmatpush1.msra.mxu0 0.0
    %248 = vmatprep.subr.mxu0 0.0
    %249 = vmatpush1.msra.mxu0 0.0
    %250 = vmatprep.subr.mxu0 0.0
    %251 = vmatpush1.msra.mxu0 0.0
    %252 = vmatprep.subr.mxu0 0.0
    %253 = vmatpush1.msra.mxu0 0.0
    %254 = vmatprep.subr.mxu0 0.0
    %255 = vmatpush1.msra.mxu0 0.0
    %256 = vmatprep.subr.mxu0 0.0
    %257 = vmatpush1.msra.mxu0 0.0
    %258 = vmatprep.subr.mxu0 0.0
    %259 = vmatpush1.msra.mxu0 0.0
    %260 = vmatprep.subr.mxu0 0.0
    %261 = vmatpush1.msra.mxu0 0.0
    %262 = vmatprep.subr.mxu0 0.0
    %263 = vmatpush1.msra.mxu0 0.0
    %264 = vmatprep.subr.mxu0 0.0
    %265 = vmatpush1.msra.mxu0 0.0
    %266 = vmatprep.subr.mxu0 %v58
    %267 = vmatpush1.msra.mxu0 %v57
    %268 = vmatprep.subr.mxu0 %v55
    %269 = vmatpush1.msra.mxu0 %v54
    %270 = vmatprep.subr.mxu0 %v52
    %271 = vmatpush1.msra.mxu0 %v51
    %272 = vmatprep.subr.mxu0 %v49
    %273 = vmatpush1.msra.mxu0 %v48
    %274 = vmatprep.subr.mxu0 0.0
    %275 = vmatpush2.msra.mxu0 0.0
    %276 = vmatprep.subr.mxu0 0.0
    %277 = vmatpush2.msra.mxu0 0.0
    %278 = vmatprep.subr.mxu0 0.0
    %279 = vmatpush2.msra.mxu0 0.0
    %280 = vmatprep.subr.mxu0 0.0
    %281 = vmatpush2.msra.mxu0 0.0
    %282 = vmatprep.subr.mxu0 0.0
    %283 = vmatpush2.msra.mxu0 0.0
    %284 = vmatprep.subr.mxu0 0.0
    %285 = vmatpush2.msra.mxu0 0.0
    %286 = vmatprep.subr.mxu0 0.0
    %287 = vmatpush2.msra.mxu0 0.0
    %288 = vmatprep.subr.mxu0 0.0
    %289 = vmatpush2.msra.mxu0 0.0
    %290 = vmatprep.subr.mxu0 0.0
    %291 = vmatpush2.msra.mxu0 0.0
    %292 = vmatprep.subr.mxu0 0.0
    %293 = vmatpush2.msra.mxu0 0.0
    %294 = vmatprep.subr.mxu0 0.0
    %295 = vmatpush2.msra.mxu0 0.0
    %296 = vmatprep.subr.mxu0 0.0
    %297 = vmatpush2.msra.mxu0 0.0
    %298 = vmatprep.subr.mxu0 0.0
    %299 = vmatpush2.msra.mxu0 0.0
    %300 = vmatprep.subr.mxu0 0.0
    %301 = vmatpush2.msra.mxu0 0.0
    %302 = vmatprep.subr.mxu0 0.0
    %303 = vmatpush2.msra.mxu0 0.0
    %304 = vmatprep.subr.mxu0 0.0
    %305 = vmatpush2.msra.mxu0 0.0
    %306 = vmatprep.mubr.f32.mxu0 0.0
    %307 = vmatmul.mubr.f32.gmra.mxu0 %v240
    %v308 = vpop.f32.mrf.mxu0
    %v309 = vadd.f32 0.0, %v308
    %v310 = vpop.f32.mrf.mxu0
    %v311 = vadd.f32 0.0, %v310
    %312 = vdwg.mxu0
    %313 = vmatprep.subr.mxu0 0.0
    %314 = vmatpush1.msra.mxu0 0.0
    %315 = vmatprep.subr.mxu0 0.0
    %316 = vmatpush1.msra.mxu0 0.0
    %317 = vmatprep.subr.mxu0 0.0
    %318 = vmatpush1.msra.mxu0 0.0
    %319 = vmatprep.subr.mxu0 0.0
    %320 = vmatpush1.msra.mxu0 0.0
    %321 = vmatprep.subr.mxu0 0.0
    %322 = vmatpush1.msra.mxu0 0.0
    %323 = vmatprep.subr.mxu0 0.0
    %324 = vmatpush1.msra.mxu0 0.0
    %325 = vmatprep.subr.mxu0 0.0
    %326 = vmatpush1.msra.mxu0 0.0
    %327 = vmatprep.subr.mxu0 0.0
    %328 = vmatpush1.msra.mxu0 0.0
    %329 = vmatprep.subr.mxu0 0.0
    %330 = vmatpush1.msra.mxu0 0.0
    %331 = vmatprep.subr.mxu0 0.0
    %332 = vmatpush1.msra.mxu0 0.0
    %333 = vmatprep.subr.mxu0 0.0
    %334 = vmatpush1.msra.mxu0 0.0
    %335 = vmatprep.subr.mxu0 0.0
    %336 = vmatpush1.msra.mxu0 0.0
    %337 = vmatprep.subr.mxu0 0.0
    %338 = vmatpush1.msra.mxu0 %v59
    %339 = vmatprep.subr.mxu0 0.0
    %340 = vmatpush1.msra.mxu0 %v56
    %341 = vmatprep.subr.mxu0 0.0
    %342 = vmatpush1.msra.mxu0 %v53
    %343 = vmatprep.subr.mxu0 0.0
    %344 = vmatpush1.msra.mxu0 %v50
    %345 = vmatprep.subr.mxu0 0.0
    %346 = vmatpush2.msra.mxu0 0.0
    %347 = vmatprep.subr.mxu0 0.0
    %348 = vmatpush2.msra.mxu0 0.0
    %349 = vmatprep.subr.mxu0 0.0
    %350 = vmatpush2.msra.mxu0 0.0
    %351 = vmatprep.subr.mxu0 0.0
    %352 = vmatpush2.msra.mxu0 0.0
    %353 = vmatprep.subr.mxu0 0.0
    %354 = vmatpush2.msra.mxu0 0.0
    %355 = vmatprep.subr.mxu0 0.0
    %356 = vmatpush2.msra.mxu0 0.0
    %357 = vmatprep.subr.mxu0 0.0
    %358 = vmatpush2.msra.mxu0 0.0
    %359 = vmatprep.subr.mxu0 0.0
    %360 = vmatpush2.msra.mxu0 0.0
    %361 = vmatprep.subr.mxu0 0.0
    %362 = vmatpush2.msra.mxu0 0.0
    %363 = vmatprep.subr.mxu0 0.0
    %364 = vmatpush2.msra.mxu0 0.0
    %365 = vmatprep.subr.mxu0 0.0
    %366 = vmatpush2.msra.mxu0 0.0
    %367 = vmatprep.subr.mxu0 0.0
    %368 = vmatpush2.msra.mxu0 0.0
    %369 = vmatprep.subr.mxu0 0.0
    %370 = vmatpush2.msra.mxu0 0.0
    %371 = vmatprep.subr.mxu0 0.0
    %372 = vmatpush2.msra.mxu0 0.0
    %373 = vmatprep.subr.mxu0 0.0
    %374 = vmatpush2.msra.mxu0 0.0
    %375 = vmatprep.subr.mxu0 0.0
    %376 = vmatpush2.msra.mxu0 0.0
    %377 = vmatprep.mubr.f32.mxu0 0.0
    %378 = vmatmul.mubr.f32.gmra.mxu0 %v240
    %v379 = vpop.f32.mrf.mxu0
    %v380 = vadd.f32 0.0, %v379
    %v381 = vpop.f32.mrf.mxu0
    %382 = vdwg.mxu0
    %v383 = vadd.f32 %v153, %v309
    %v384 = vxor.u32 %v383, 2147483648
    %v385 = vmul.f32 %v384, 1.442695
    %v386 = vpow.pop %v385
    %v387 = vadd.f32 %v386, 1.0
    %v388 = vrcp.pop %v387
    %v389 = vmul.f32 1.0, %v388
    %v390 = vadd.f32 %v155, %v311
    %v391 = vxor.u32 %v390, 2147483648
    %v392 = vmul.f32 %v391, 1.442695
    %v393 = vpow.pop %v392
    %v394 = vadd.f32 %v393, 1.0
    %v395 = vrcp.pop %v394
    %v396 = vmul.f32 1.0, %v395
    %v397 = vadd.f32 %v380, %v62
    %v398 = vmul.f32 %v389, %v397
    %v399 = vadd.f32 %v230, %v398
    %v400 = vtanh.pop %v399
    %v401 = vsub.f32 1.0, %v396
    %v402 = vmul.f32 %v401, %v400
    %v403 = vmul.f32 %v396, 0.0
    %v404 = vadd.f32 %v402, %v403
    %v406 = vsel %vm238, %v404, 0
    %408 = vmatprep.subr.mxu0 0.0
    %409 = vmatpush1.msra.mxu0 0.0
    %410 = vmatprep.subr.mxu0 0.0
    %411 = vmatpush1.msra.mxu0 0.0
    %412 = vmatprep.subr.mxu0 0.0
    %413 = vmatpush1.msra.mxu0 0.0
    %414 = vmatprep.subr.mxu0 0.0
    %415 = vmatpush1.msra.mxu0 0.0
    %416 = vmatprep.subr.mxu0 0.0
    %417 = vmatpush1.msra.mxu0 0.0
    %418 = vmatprep.subr.mxu0 0.0
    %419 = vmatpush1.msra.mxu0 0.0
    %420 = vmatprep.subr.mxu0 0.0
    %421 = vmatpush1.msra.mxu0 0.0
    %422 = vmatprep.subr.mxu0 0.0
    %423 = vmatpush1.msra.mxu0 0.0
    %424 = vmatprep.subr.mxu0 0.0
    %425 = vmatpush1.msra.mxu0 0.0
    %426 = vmatprep.subr.mxu0 0.0
    %427 = vmatpush1.msra.mxu0 0.0
    %428 = vmatprep.subr.mxu0 0.0
    %429 = vmatpush1.msra.mxu0 0.0
    %430 = vmatprep.subr.mxu0 0.0
    %431 = vmatpush1.msra.mxu0 0.0
    %432 = vmatprep.subr.mxu0 %v58
    %433 = vmatpush1.msra.mxu0 %v57
    %434 = vmatprep.subr.mxu0 %v55
    %435 = vmatpush1.msra.mxu0 %v54
    %436 = vmatprep.subr.mxu0 %v52
    %437 = vmatpush1.msra.mxu0 %v51
    %438 = vmatprep.subr.mxu0 %v49
    %439 = vmatpush1.msra.mxu0 %v48
    %440 = vmatprep.subr.mxu0 0.0
    %441 = vmatpush2.msra.mxu0 0.0
    %442 = vmatprep.subr.mxu0 0.0
    %443 = vmatpush2.msra.mxu0 0.0
    %444 = vmatprep.subr.mxu0 0.0
    %445 = vmatpush2.msra.mxu0 0.0
    %446 = vmatprep.subr.mxu0 0.0
    %447 = vmatpush2.msra.mxu0 0.0
    %448 = vmatprep.subr.mxu0 0.0
    %449 = vmatpush2.msra.mxu0 0.0
    %450 = vmatprep.subr.mxu0 0.0
    %451 = vmatpush2.msra.mxu0 0.0
    %452 = vmatprep.subr.mxu0 0.0
    %453 = vmatpush2.msra.mxu0 0.0
    %454 = vmatprep.subr.mxu0 0.0
    %455 = vmatpush2.msra.mxu0 0.0
    %456 = vmatprep.subr.mxu0 0.0
    %457 = vmatpush2.msra.mxu0 0.0
    %458 = vmatprep.subr.mxu0 0.0
    %459 = vmatpush2.msra.mxu0 0.0
    %460 = vmatprep.subr.mxu0 0.0
    %461 = vmatpush2.msra.mxu0 0.0
    %462 = vmatprep.subr.mxu0 0.0
    %463 = vmatpush2.msra.mxu0 0.0
    %464 = vmatprep.subr.mxu0 0.0
    %465 = vmatpush2.msra.mxu0 0.0
    %466 = vmatprep.subr.mxu0 0.0
    %467 = vmatpush2.msra.mxu0 0.0
    %468 = vmatprep.subr.mxu0 0.0
    %469 = vmatpush2.msra.mxu0 0.0
    %470 = vmatprep.subr.mxu0 0.0
    %471 = vmatpush2.msra.mxu0 0.0
    %472 = vmatprep.mubr.f32.mxu0 0.0
    %473 = vmatmul.mubr.f32.gmra.mxu0 %v406
    %v474 = vpop.f32.mrf.mxu0
    %v475 = vadd.f32 0.0, %v474
    %v476 = vpop.f32.mrf.mxu0
    %v477 = vadd.f32 0.0, %v476
    %478 = vdwg.mxu0
    %479 = vmatprep.subr.mxu0 0.0
    %480 = vmatpush1.msra.mxu0 0.0
    %481 = vmatprep.subr.mxu0 0.0
    %482 = vmatpush1.msra.mxu0 0.0
    %483 = vmatprep.subr.mxu0 0.0
    %484 = vmatpush1.msra.mxu0 0.0
    %485 = vmatprep.subr.mxu0 0.0
    %486 = vmatpush1.msra.mxu0 0.0
    %487 = vmatprep.subr.mxu0 0.0
    %488 = vmatpush1.msra.mxu0 0.0
    %489 = vmatprep.subr.mxu0 0.0
    %490 = vmatpush1.msra.mxu0 0.0
    %491 = vmatprep.subr.mxu0 0.0
    %492 = vmatpush1.msra.mxu0 0.0
    %493 = vmatprep.subr.mxu0 0.0
    %494 = vmatpush1.msra.mxu0 0.0
    %495 = vmatprep.subr.mxu0 0.0
    %496 = vmatpush1.msra.mxu0 0.0
    %497 = vmatprep.subr.mxu0 0.0
    %498 = vmatpush1.msra.mxu0 0.0
    %499 = vmatprep.subr.mxu0 0.0
    %500 = vmatpush1.msra.mxu0 0.0
    %501 = vmatprep.subr.mxu0 0.0
    %502 = vmatpush1.msra.mxu0 0.0
    %503 = vmatprep.subr.mxu0 0.0
    %504 = vmatpush1.msra.mxu0 %v59
    %505 = vmatprep.subr.mxu0 0.0
    %506 = vmatpush1.msra.mxu0 %v56
    %507 = vmatprep.subr.mxu0 0.0
    %508 = vmatpush1.msra.mxu0 %v53
    %509 = vmatprep.subr.mxu0 0.0
    %510 = vmatpush1.msra.mxu0 %v50
    %511 = vmatprep.subr.mxu0 0.0
    %512 = vmatpush2.msra.mxu0 0.0
    %513 = vmatprep.subr.mxu0 0.0
    %514 = vmatpush2.msra.mxu0 0.0
    %515 = vmatprep.subr.mxu0 0.0
    %516 = vmatpush2.msra.mxu0 0.0
    %517 = vmatprep.subr.mxu0 0.0
    %518 = vmatpush2.msra.mxu0 0.0
    %519 = vmatprep.subr.mxu0 0.0
    %520 = vmatpush2.msra.mxu0 0.0
    %521 = vmatprep.subr.mxu0 0.0
    %522 = vmatpush2.msra.mxu0 0.0
    %523 = vmatprep.subr.mxu0 0.0
    %524 = vmatpush2.msra.mxu0 0.0
    %525 = vmatprep.subr.mxu0 0.0
    %526 = vmatpush2.msra.mxu0 0.0
    %527 = vmatprep.subr.mxu0 0.0
    %528 = vmatpush2.msra.mxu0 0.0
    %529 = vmatprep.subr.mxu0 0.0
    %530 = vmatpush2.msra.mxu0 0.0
    %531 = vmatprep.subr.mxu0 0.0
    %532 = vmatpush2.msra.mxu0 0.0
    %533 = vmatprep.subr.mxu0 0.0
    %534 = vmatpush2.msra.mxu0 0.0
    %535 = vmatprep.subr.mxu0 0.0
    %536 = vmatpush2.msra.mxu0 0.0
    %537 = vmatprep.subr.mxu0 0.0
    %538 = vmatpush2.msra.mxu0 0.0
    %539 = vmatprep.subr.mxu0 0.0
    %540 = vmatpush2.msra.mxu0 0.0
    %541 = vmatprep.subr.mxu0 0.0
    %542 = vmatpush2.msra.mxu0 0.0
    %543 = vmatprep.mubr.f32.mxu0 0.0
    %544 = vmatmul.mubr.f32.gmra.mxu0 %v406
    %v545 = vpop.f32.mrf.mxu0
    %v546 = vadd.f32 0.0, %v545
    %v547 = vpop.f32.mrf.mxu0
    %548 = vdwg.mxu0
    %v550 = vrot.slane %v475, 6
    %v552 = vadd.f32 %v153, %v550
    %v553 = vxor.u32 %v552, 2147483648
    %v554 = vmul.f32 %v553, 1.442695
    %v555 = vpow.pop %v554
    %v556 = vadd.f32 %v555, 1.0
    %v557 = vrcp.pop %v556
    %v558 = vmul.f32 1.0, %v557
    %v560 = vrot.slane %v477, 6
    %v562 = vadd.f32 %v155, %v560
    %v563 = vxor.u32 %v562, 2147483648
    %v564 = vmul.f32 %v563, 1.442695
    %v565 = vpow.pop %v564
    %v566 = vadd.f32 %v565, 1.0
    %v567 = vrcp.pop %v566
    %v568 = vmul.f32 1.0, %v567
    %v569 = vadd.f32 %v546, %v62
    %v571 = vrot.slane %v569, 6
    %v573 = vmul.f32 %v558, %v571
    %v574 = vadd.f32 %v230, %v573
    %v575 = vtanh.pop %v574
    %v576 = vsub.f32 1.0, %v568
    %v577 = vmul.f32 %v576, %v575
    %v578 = vrot.slane %v404, 6
    %v580 = vmul.f32 %v568, %v578
    %v581 = vadd.f32 %v577, %v580
    %v583 = vrot.slane %v581, 2
    %v584 = vsel %vm238, %v583, 0
    %586 = vmatprep.subr.mxu0 0.0
    %587 = vmatpush1.msra.mxu0 0.0
    %588 = vmatprep.subr.mxu0 0.0
    %589 = vmatpush1.msra.mxu0 0.0
    %590 = vmatprep.subr.mxu0 0.0
    %591 = vmatpush1.msra.mxu0 0.0
    %592 = vmatprep.subr.mxu0 0.0
    %593 = vmatpush1.msra.mxu0 0.0
    %594 = vmatprep.subr.mxu0 0.0
    %595 = vmatpush1.msra.mxu0 0.0
    %596 = vmatprep.subr.mxu0 0.0
    %597 = vmatpush1.msra.mxu0 0.0
    %598 = vmatprep.subr.mxu0 0.0
    %599 = vmatpush1.msra.mxu0 0.0
    %600 = vmatprep.subr.mxu0 0.0
    %601 = vmatpush1.msra.mxu0 0.0
    %602 = vmatprep.subr.mxu0 0.0
    %603 = vmatpush1.msra.mxu0 0.0
    %604 = vmatprep.subr.mxu0 0.0
    %605 = vmatpush1.msra.mxu0 0.0
    %606 = vmatprep.subr.mxu0 0.0
    %607 = vmatpush1.msra.mxu0 0.0
    %608 = vmatprep.subr.mxu0 0.0
    %609 = vmatpush1.msra.mxu0 0.0
    %610 = vmatprep.subr.mxu0 %v58
    %611 = vmatpush1.msra.mxu0 %v57
    %612 = vmatprep.subr.mxu0 %v55
    %613 = vmatpush1.msra.mxu0 %v54
    %614 = vmatprep.subr.mxu0 %v52
    %615 = vmatpush1.msra.mxu0 %v51
    %616 = vmatprep.subr.mxu0 %v49
    %617 = vmatpush1.msra.mxu0 %v48
    %618 = vmatprep.subr.mxu0 0.0
    %619 = vmatpush2.msra.mxu0 0.0
    %620 = vmatprep.subr.mxu0 0.0
    %621 = vmatpush2.msra.mxu0 0.0
    %622 = vmatprep.subr.mxu0 0.0
    %623 = vmatpush2.msra.mxu0 0.0
    %624 = vmatprep.subr.mxu0 0.0
    %625 = vmatpush2.msra.mxu0 0.0
    %626 = vmatprep.subr.mxu0 0.0
    %627 = vmatpush2.msra.mxu0 0.0
    %628 = vmatprep.subr.mxu0 0.0
    %629 = vmatpush2.msra.mxu0 0.0
    %630 = vmatprep.subr.mxu0 0.0
    %631 = vmatpush2.msra.mxu0 0.0
    %632 = vmatprep.subr.mxu0 0.0
    %633 = vmatpush2.msra.mxu0 0.0
    %634 = vmatprep.subr.mxu0 0.0
    %635 = vmatpush2.msra.mxu0 0.0
    %636 = vmatprep.subr.mxu0 0.0
    %637 = vmatpush2.msra.mxu0 0.0
    %638 = vmatprep.subr.mxu0 0.0
    %639 = vmatpush2.msra.mxu0 0.0
    %640 = vmatprep.subr.mxu0 0.0
    %641 = vmatpush2.msra.mxu0 0.0
    %642 = vmatprep.subr.mxu0 0.0
    %643 = vmatpush2.msra.mxu0 0.0
    %644 = vmatprep.subr.mxu0 0.0
    %645 = vmatpush2.msra.mxu0 0.0
    %646 = vmatprep.subr.mxu0 0.0
    %647 = vmatpush2.msra.mxu0 0.0
    %648 = vmatprep.subr.mxu0 0.0
    %649 = vmatpush2.msra.mxu0 0.0
    %650 = vmatprep.mubr.f32.mxu0 0.0
    %651 = vmatmul.mubr.f32.gmra.mxu0 %v584
    %v652 = vpop.f32.mrf.mxu0
    %v653 = vadd.f32 0.0, %v652
    %v654 = vpop.f32.mrf.mxu0
    %v655 = vadd.f32 0.0, %v654
    %656 = vdwg.mxu0
    %657 = vmatprep.subr.mxu0 0.0
    %658 = vmatpush1.msra.mxu0 0.0
    %659 = vmatprep.subr.mxu0 0.0
    %660 = vmatpush1.msra.mxu0 0.0
    %661 = vmatprep.subr.mxu0 0.0
    %662 = vmatpush1.msra.mxu0 0.0
    %663 = vmatprep.subr.mxu0 0.0
    %664 = vmatpush1.msra.mxu0 0.0
    %665 = vmatprep.subr.mxu0 0.0
    %666 = vmatpush1.msra.mxu0 0.0
    %667 = vmatprep.subr.mxu0 0.0
    %668 = vmatpush1.msra.mxu0 0.0
    %669 = vmatprep.subr.mxu0 0.0
    %670 = vmatpush1.msra.mxu0 0.0
    %671 = vmatprep.subr.mxu0 0.0
    %672 = vmatpush1.msra.mxu0 0.0
    %673 = vmatprep.subr.mxu0 0.0
    %674 = vmatpush1.msra.mxu0 0.0
    %675 = vmatprep.subr.mxu0 0.0
    %676 = vmatpush1.msra.mxu0 0.0
    %677 = vmatprep.subr.mxu0 0.0
    %678 = vmatpush1.msra.mxu0 0.0
    %679 = vmatprep.subr.mxu0 0.0
    %680 = vmatpush1.msra.mxu0 0.0
    %681 = vmatprep.subr.mxu0 0.0
    %682 = vmatpush1.msra.mxu0 %v59
    %683 = vmatprep.subr.mxu0 0.0
    %684 = vmatpush1.msra.mxu0 %v56
    %685 = vmatprep.subr.mxu0 0.0
    %686 = vmatpush1.msra.mxu0 %v53
    %687 = vmatprep.subr.mxu0 0.0
    %688 = vmatpush1.msra.mxu0 %v50
    %689 = vmatprep.subr.mxu0 0.0
    %690 = vmatpush2.msra.mxu0 0.0
    %691 = vmatprep.subr.mxu0 0.0
    %692 = vmatpush2.msra.mxu0 0.0
    %693 = vmatprep.subr.mxu0 0.0
    %694 = vmatpush2.msra.mxu0 0.0
    %695 = vmatprep.subr.mxu0 0.0
    %696 = vmatpush2.msra.mxu0 0.0
    %697 = vmatprep.subr.mxu0 0.0
    %698 = vmatpush2.msra.mxu0 0.0
    %699 = vmatprep.subr.mxu0 0.0
    %700 = vmatpush2.msra.mxu0 0.0
    %701 = vmatprep.subr.mxu0 0.0
    %702 = vmatpush2.msra.mxu0 0.0
    %703 = vmatprep.subr.mxu0 0.0
    %704 = vmatpush2.msra.mxu0 0.0
    %705 = vmatprep.subr.mxu0 0.0
    %706 = vmatpush2.msra.mxu0 0.0
    %707 = vmatprep.subr.mxu0 0.0
    %708 = vmatpush2.msra.mxu0 0.0
    %709 = vmatprep.subr.mxu0 0.0
    %710 = vmatpush2.msra.mxu0 0.0
    %711 = vmatprep.subr.mxu0 0.0
    %712 = vmatpush2.msra.mxu0 0.0
    %713 = vmatprep.subr.mxu0 0.0
    %714 = vmatpush2.msra.mxu0 0.0
    %715 = vmatprep.subr.mxu0 0.0
    %716 = vmatpush2.msra.mxu0 0.0
    %717 = vmatprep.subr.mxu0 0.0
    %718 = vmatpush2.msra.mxu0 0.0
    %719 = vmatprep.subr.mxu0 0.0
    %720 = vmatpush2.msra.mxu0 0.0
    %721 = vmatprep.mubr.f32.mxu0 0.0
    %722 = vmatmul.mubr.f32.gmra.mxu0 %v584
    %v723 = vpop.f32.mrf.mxu0
    %v724 = vadd.f32 0.0, %v723
    %v725 = vpop.f32.mrf.mxu0
    %726 = vdwg.mxu0
    %v728 = vrot.slane %v653, 4
    %v730 = vadd.f32 %v153, %v728
    %v731 = vxor.u32 %v730, 2147483648
    %v732 = vmul.f32 %v731, 1.442695
    %v733 = vpow.pop %v732
    %v734 = vadd.f32 %v733, 1.0
    %v735 = vrcp.pop %v734
    %v736 = vmul.f32 1.0, %v735
    %v738 = vrot.slane %v655, 4
    %v740 = vadd.f32 %v155, %v738
    %v741 = vxor.u32 %v740, 2147483648
    %v742 = vmul.f32 %v741, 1.442695
    %v743 = vpow.pop %v742
    %v744 = vadd.f32 %v743, 1.0
    %v745 = vrcp.pop %v744
    %v746 = vmul.f32 1.0, %v745
    %v747 = vadd.f32 %v724, %v62
    %v749 = vrot.slane %v747, 4
    %v751 = vmul.f32 %v736, %v749
    %v752 = vadd.f32 %v230, %v751
    %v753 = vtanh.pop %v752
    %v754 = vsub.f32 1.0, %v746
    %v755 = vmul.f32 %v754, %v753
    %v756 = vrot.slane %v581, 6
    %v758 = vmul.f32 %v746, %v756
    %v759 = vadd.f32 %v755, %v758
    %v761 = vrot.slane %v759, 4
    %v762 = vsel %vm238, %v761, 0
    %764 = vmatprep.subr.mxu0 0.0
    %765 = vmatpush1.msra.mxu0 0.0
    %766 = vmatprep.subr.mxu0 0.0
    %767 = vmatpush1.msra.mxu0 0.0
    %768 = vmatprep.subr.mxu0 0.0
    %769 = vmatpush1.msra.mxu0 0.0
    %770 = vmatprep.subr.mxu0 0.0
    %771 = vmatpush1.msra.mxu0 0.0
    %772 = vmatprep.subr.mxu0 0.0
    %773 = vmatpush1.msra.mxu0 0.0
    %774 = vmatprep.subr.mxu0 0.0
    %775 = vmatpush1.msra.mxu0 0.0
    %776 = vmatprep.subr.mxu0 0.0
    %777 = vmatpush1.msra.mxu0 0.0
    %778 = vmatprep.subr.mxu0 0.0
    %779 = vmatpush1.msra.mxu0 0.0
    %780 = vmatprep.subr.mxu0 0.0
    %781 = vmatpush1.msra.mxu0 0.0
    %782 = vmatprep.subr.mxu0 0.0
    %783 = vmatpush1.msra.mxu0 0.0
    %784 = vmatprep.subr.mxu0 0.0
    %785 = vmatpush1.msra.mxu0 0.0
    %786 = vmatprep.subr.mxu0 0.0
    %787 = vmatpush1.msra.mxu0 0.0
    %788 = vmatprep.subr.mxu0 %v58
    %789 = vmatpush1.msra.mxu0 %v57
    %790 = vmatprep.subr.mxu0 %v55
    %791 = vmatpush1.msra.mxu0 %v54
    %792 = vmatprep.subr.mxu0 %v52
    %793 = vmatpush1.msra.mxu0 %v51
    %794 = vmatprep.subr.mxu0 %v49
    %795 = vmatpush1.msra.mxu0 %v48
    %796 = vmatprep.subr.mxu0 0.0
    %797 = vmatpush2.msra.mxu0 0.0
    %798 = vmatprep.subr.mxu0 0.0
    %799 = vmatpush2.msra.mxu0 0.0
    %800 = vmatprep.subr.mxu0 0.0
    %801 = vmatpush2.msra.mxu0 0.0
    %802 = vmatprep.subr.mxu0 0.0
    %803 = vmatpush2.msra.mxu0 0.0
    %804 = vmatprep.subr.mxu0 0.0
    %805 = vmatpush2.msra.mxu0 0.0
    %806 = vmatprep.subr.mxu0 0.0
    %807 = vmatpush2.msra.mxu0 0.0
    %808 = vmatprep.subr.mxu0 0.0
    %809 = vmatpush2.msra.mxu0 0.0
    %810 = vmatprep.subr.mxu0 0.0
    %811 = vmatpush2.msra.mxu0 0.0
    %812 = vmatprep.subr.mxu0 0.0
    %813 = vmatpush2.msra.mxu0 0.0
    %814 = vmatprep.subr.mxu0 0.0
    %815 = vmatpush2.msra.mxu0 0.0
    %816 = vmatprep.subr.mxu0 0.0
    %817 = vmatpush2.msra.mxu0 0.0
    %818 = vmatprep.subr.mxu0 0.0
    %819 = vmatpush2.msra.mxu0 0.0
    %820 = vmatprep.subr.mxu0 0.0
    %821 = vmatpush2.msra.mxu0 0.0
    %822 = vmatprep.subr.mxu0 0.0
    %823 = vmatpush2.msra.mxu0 0.0
    %824 = vmatprep.subr.mxu0 0.0
    %825 = vmatpush2.msra.mxu0 0.0
    %826 = vmatprep.subr.mxu0 0.0
    %827 = vmatpush2.msra.mxu0 0.0
    %828 = vmatprep.mubr.f32.mxu0 0.0
    %829 = vmatmul.mubr.f32.gmra.mxu0 %v762
    %v830 = vpop.f32.mrf.mxu0
    %v831 = vadd.f32 0.0, %v830
    %v832 = vpop.f32.mrf.mxu0
    %v833 = vadd.f32 0.0, %v832
    %834 = vdwg.mxu0
    %835 = vmatprep.subr.mxu0 0.0
    %836 = vmatpush1.msra.mxu0 0.0
    %837 = vmatprep.subr.mxu0 0.0
    %838 = vmatpush1.msra.mxu0 0.0
    %839 = vmatprep.subr.mxu0 0.0
    %840 = vmatpush1.msra.mxu0 0.0
    %841 = vmatprep.subr.mxu0 0.0
    %842 = vmatpush1.msra.mxu0 0.0
    %843 = vmatprep.subr.mxu0 0.0
    %844 = vmatpush1.msra.mxu0 0.0
    %845 = vmatprep.subr.mxu0 0.0
    %846 = vmatpush1.msra.mxu0 0.0
    %847 = vmatprep.subr.mxu0 0.0
    %848 = vmatpush1.msra.mxu0 0.0
    %849 = vmatprep.subr.mxu0 0.0
    %850 = vmatpush1.msra.mxu0 0.0
    %851 = vmatprep.subr.mxu0 0.0
    %852 = vmatpush1.msra.mxu0 0.0
    %853 = vmatprep.subr.mxu0 0.0
    %854 = vmatpush1.msra.mxu0 0.0
    %855 = vmatprep.subr.mxu0 0.0
    %856 = vmatpush1.msra.mxu0 0.0
    %857 = vmatprep.subr.mxu0 0.0
    %858 = vmatpush1.msra.mxu0 0.0
    %859 = vmatprep.subr.mxu0 0.0
    %860 = vmatpush1.msra.mxu0 %v59
    %861 = vmatprep.subr.mxu0 0.0
    %862 = vmatpush1.msra.mxu0 %v56
    %863 = vmatprep.subr.mxu0 0.0
    %864 = vmatpush1.msra.mxu0 %v53
    %865 = vmatprep.subr.mxu0 0.0
    %866 = vmatpush1.msra.mxu0 %v50
    %867 = vmatprep.subr.mxu0 0.0
    %868 = vmatpush2.msra.mxu0 0.0
    %869 = vmatprep.subr.mxu0 0.0
    %870 = vmatpush2.msra.mxu0 0.0
    %871 = vmatprep.subr.mxu0 0.0
    %872 = vmatpush2.msra.mxu0 0.0
    %873 = vmatprep.subr.mxu0 0.0
    %874 = vmatpush2.msra.mxu0 0.0
    %875 = vmatprep.subr.mxu0 0.0
    %876 = vmatpush2.msra.mxu0 0.0
    %877 = vmatprep.subr.mxu0 0.0
    %878 = vmatpush2.msra.mxu0 0.0
    %879 = vmatprep.subr.mxu0 0.0
    %880 = vmatpush2.msra.mxu0 0.0
    %881 = vmatprep.subr.mxu0 0.0
    %882 = vmatpush2.msra.mxu0 0.0
    %883 = vmatprep.subr.mxu0 0.0
    %884 = vmatpush2.msra.mxu0 0.0
    %885 = vmatprep.subr.mxu0 0.0
    %886 = vmatpush2.msra.mxu0 0.0
    %887 = vmatprep.subr.mxu0 0.0
    %888 = vmatpush2.msra.mxu0 0.0
    %889 = vmatprep.subr.mxu0 0.0
    %890 = vmatpush2.msra.mxu0 0.0
    %891 = vmatprep.subr.mxu0 0.0
    %892 = vmatpush2.msra.mxu0 0.0
    %893 = vmatprep.subr.mxu0 0.0
    %894 = vmatpush2.msra.mxu0 0.0
    %895 = vmatprep.subr.mxu0 0.0
    %896 = vmatpush2.msra.mxu0 0.0
    %897 = vmatprep.subr.mxu0 0.0
    %898 = vmatpush2.msra.mxu0 0.0
    %899 = vmatprep.mubr.f32.mxu0 0.0
    %900 = vmatmul.mubr.f32.gmra.mxu0 %v762
    %v901 = vpop.f32.mrf.mxu0
    %v902 = vadd.f32 0.0, %v901
    %v903 = vpop.f32.mrf.mxu0
    %904 = vdwg.mxu0
    %v906 = vrot.slane %v831, 2
    %v908 = vadd.f32 %v153, %v906
    %v909 = vxor.u32 %v908, 2147483648
    %v910 = vmul.f32 %v909, 1.442695
    %v911 = vpow.pop %v910
    %v912 = vadd.f32 %v911, 1.0
    %v913 = vrcp.pop %v912
    %v914 = vmul.f32 1.0, %v913
    %v916 = vrot.slane %v833, 2
    %v918 = vadd.f32 %v155, %v916
    %v919 = vxor.u32 %v918, 2147483648
    %v920 = vmul.f32 %v919, 1.442695
    %v921 = vpow.pop %v920
    %v922 = vadd.f32 %v921, 1.0
    %v923 = vrcp.pop %v922
    %v924 = vmul.f32 1.0, %v923
    %v925 = vadd.f32 %v902, %v62
    %v927 = vrot.slane %v925, 2
    %v929 = vmul.f32 %v914, %v927
    %v930 = vadd.f32 %v230, %v929
    %v931 = vtanh.pop %v930
    %v932 = vsub.f32 1.0, %v924
    %v933 = vmul.f32 %v932, %v931
    %v934 = vrot.slane %v759, 6
    %v936 = vmul.f32 %v924, %v934
    %v937 = vadd.f32 %v933, %v936
    %v939 = vrot.slane %v937, 6
    %v940 = vsel %vm238, %v939, 0
    %942 = vmatprep.subr.mxu0 0.0
    %943 = vmatpush1.msra.mxu0 0.0
    %944 = vmatprep.subr.mxu0 0.0
    %945 = vmatpush1.msra.mxu0 0.0
    %946 = vmatprep.subr.mxu0 0.0
    %947 = vmatpush1.msra.mxu0 0.0
    %948 = vmatprep.subr.mxu0 0.0
    %949 = vmatpush1.msra.mxu0 0.0
    %950 = vmatprep.subr.mxu0 0.0
    %951 = vmatpush1.msra.mxu0 0.0
    %952 = vmatprep.subr.mxu0 0.0
    %953 = vmatpush1.msra.mxu0 0.0
    %954 = vmatprep.subr.mxu0 0.0
    %955 = vmatpush1.msra.mxu0 0.0
    %956 = vmatprep.subr.mxu0 0.0
    %957 = vmatpush1.msra.mxu0 0.0
    %958 = vmatprep.subr.mxu0 0.0
    %959 = vmatpush1.msra.mxu0 0.0
    %960 = vmatprep.subr.mxu0 0.0
    %961 = vmatpush1.msra.mxu0 0.0
    %962 = vmatprep.subr.mxu0 0.0
    %963 = vmatpush1.msra.mxu0 0.0
    %964 = vmatprep.subr.mxu0 0.0
    %965 = vmatpush1.msra.mxu0 0.0
    %966 = vmatprep.subr.mxu0 %v58
    %967 = vmatpush1.msra.mxu0 %v57
    %968 = vmatprep.subr.mxu0 %v55
    %969 = vmatpush1.msra.mxu0 %v54
    %970 = vmatprep.subr.mxu0 %v52
    %971 = vmatpush1.msra.mxu0 %v51
    %972 = vmatprep.subr.mxu0 %v49
    %973 = vmatpush1.msra.mxu0 %v48
    %974 = vmatprep.subr.mxu0 0.0
    %975 = vmatpush2.msra.mxu0 0.0
    %976 = vmatprep.subr.mxu0 0.0
    %977 = vmatpush2.msra.mxu0 0.0
    %978 = vmatprep.subr.mxu0 0.0
    %979 = vmatpush2.msra.mxu0 0.0
    %980 = vmatprep.subr.mxu0 0.0
    %981 = vmatpush2.msra.mxu0 0.0
    %982 = vmatprep.subr.mxu0 0.0
    %983 = vmatpush2.msra.mxu0 0.0
    %984 = vmatprep.subr.mxu0 0.0
    %985 = vmatpush2.msra.mxu0 0.0
    %986 = vmatprep.subr.mxu0 0.0
    %987 = vmatpush2.msra.mxu0 0.0
    %988 = vmatprep.subr.mxu0 0.0
    %989 = vmatpush2.msra.mxu0 0.0
    %990 = vmatprep.subr.mxu0 0.0
    %991 = vmatpush2.msra.mxu0 0.0
    %992 = vmatprep.subr.mxu0 0.0
    %993 = vmatpush2.msra.mxu0 0.0
    %994 = vmatprep.subr.mxu0 0.0
    %995 = vmatpush2.msra.mxu0 0.0
    %996 = vmatprep.subr.mxu0 0.0
    %997 = vmatpush2.msra.mxu0 0.0
    %998 = vmatprep.subr.mxu0 0.0
    %999 = vmatpush2.msra.mxu0 0.0
    %1000 = vmatprep.subr.mxu0 0.0
    %1001 = vmatpush2.msra.mxu0 0.0
    %1002 = vmatprep.subr.mxu0 0.0
    %1003 = vmatpush2.msra.mxu0 0.0
    %1004 = vmatprep.subr.mxu0 0.0
    %1005 = vmatpush2.msra.mxu0 0.0
    %1006 = vmatprep.mubr.f32.mxu0 0.0
    %1007 = vmatmul.mubr.f32.gmra.mxu0 %v940
    %v1008 = vpop.f32.mrf.mxu0
    %v1009 = vadd.f32 0.0, %v1008
    %v1010 = vpop.f32.mrf.mxu0
    %v1011 = vadd.f32 0.0, %v1010
    %1012 = vdwg.mxu0
    %1013 = vmatprep.subr.mxu0 0.0
    %1014 = vmatpush1.msra.mxu0 0.0
    %1015 = vmatprep.subr.mxu0 0.0
    %1016 = vmatpush1.msra.mxu0 0.0
    %1017 = vmatprep.subr.mxu0 0.0
    %1018 = vmatpush1.msra.mxu0 0.0
    %1019 = vmatprep.subr.mxu0 0.0
    %1020 = vmatpush1.msra.mxu0 0.0
    %1021 = vmatprep.subr.mxu0 0.0
    %1022 = vmatpush1.msra.mxu0 0.0
    %1023 = vmatprep.subr.mxu0 0.0
    %1024 = vmatpush1.msra.mxu0 0.0
    %1025 = vmatprep.subr.mxu0 0.0
    %1026 = vmatpush1.msra.mxu0 0.0
    %1027 = vmatprep.subr.mxu0 0.0
    %1028 = vmatpush1.msra.mxu0 0.0
    %1029 = vmatprep.subr.mxu0 0.0
    %1030 = vmatpush1.msra.mxu0 0.0
    %1031 = vmatprep.subr.mxu0 0.0
    %1032 = vmatpush1.msra.mxu0 0.0
    %1033 = vmatprep.subr.mxu0 0.0
    %1034 = vmatpush1.msra.mxu0 0.0
    %1035 = vmatprep.subr.mxu0 0.0
    %1036 = vmatpush1.msra.mxu0 0.0
    %1037 = vmatprep.subr.mxu0 0.0
    %1038 = vmatpush1.msra.mxu0 %v59
    %1039 = vmatprep.subr.mxu0 0.0
    %1040 = vmatpush1.msra.mxu0 %v56
    %1041 = vmatprep.subr.mxu0 0.0
    %1042 = vmatpush1.msra.mxu0 %v53
    %1043 = vmatprep.subr.mxu0 0.0
    %1044 = vmatpush1.msra.mxu0 %v50
    %1045 = vmatprep.subr.mxu0 0.0
    %1046 = vmatpush2.msra.mxu0 0.0
    %1047 = vmatprep.subr.mxu0 0.0
    %1048 = vmatpush2.msra.mxu0 0.0
    %1049 = vmatprep.subr.mxu0 0.0
    %1050 = vmatpush2.msra.mxu0 0.0
    %1051 = vmatprep.subr.mxu0 0.0
    %1052 = vmatpush2.msra.mxu0 0.0
    %1053 = vmatprep.subr.mxu0 0.0
    %1054 = vmatpush2.msra.mxu0 0.0
    %1055 = vmatprep.subr.mxu0 0.0
    %1056 = vmatpush2.msra.mxu0 0.0
    %1057 = vmatprep.subr.mxu0 0.0
    %1058 = vmatpush2.msra.mxu0 0.0
    %1059 = vmatprep.subr.mxu0 0.0
    %1060 = vmatpush2.msra.mxu0 0.0
    %1061 = vmatprep.subr.mxu0 0.0
    %1062 = vmatpush2.msra.mxu0 0.0
    %1063 = vmatprep.subr.mxu0 0.0
    %1064 = vmatpush2.msra.mxu0 0.0
    %1065 = vmatprep.subr.mxu0 0.0
    %1066 = vmatpush2.msra.mxu0 0.0
    %1067 = vmatprep.subr.mxu0 0.0
    %1068 = vmatpush2.msra.mxu0 0.0
    %1069 = vmatprep.subr.mxu0 0.0
    %1070 = vmatpush2.msra.mxu0 0.0
    %1071 = vmatprep.subr.mxu0 0.0
    %1072 = vmatpush2.msra.mxu0 0.0
    %1073 = vmatprep.subr.mxu0 0.0
    %1074 = vmatpush2.msra.mxu0 0.0
    %1075 = vmatprep.subr.mxu0 0.0
    %1076 = vmatpush2.msra.mxu0 0.0
    %1077 = vmatprep.mubr.f32.mxu0 0.0
    %1078 = vmatmul.mubr.f32.gmra.mxu0 %v940
    %v1079 = vpop.f32.mrf.mxu0
    %v1080 = vadd.f32 0.0, %v1079
    %v1081 = vpop.f32.mrf.mxu0
    %1082 = vdwg.mxu0
    %v1083 = vadd.f32 %v159, %v1009
    %v1084 = vxor.u32 %v1083, 2147483648
    %v1085 = vmul.f32 %v1084, 1.442695
    %v1086 = vpow.pop %v1085
    %v1087 = vadd.f32 %v1086, 1.0
    %v1088 = vrcp.pop %v1087
    %v1089 = vmul.f32 1.0, %v1088
    %v1090 = vadd.f32 %v161, %v1011
    %v1091 = vxor.u32 %v1090, 2147483648
    %v1092 = vmul.f32 %v1091, 1.442695
    %v1093 = vpow.pop %v1092
    %v1094 = vadd.f32 %v1093, 1.0
    %v1095 = vrcp.pop %v1094
    %v1096 = vmul.f32 1.0, %v1095
    %v1097 = vadd.f32 %v1080, %v62
    %v1098 = vmul.f32 %v1089, %v1097
    %v1099 = vadd.f32 %v235, %v1098
    %v1100 = vtanh.pop %v1099
    %v1101 = vsub.f32 1.0, %v1096
    %v1102 = vmul.f32 %v1101, %v1100
    %v1104 = vmul.f32 %v1096, %v939
    %v1105 = vadd.f32 %v1102, %v1104
    %v1107 = vsel %vm238, %v1105, 0
    %1109 = vmatprep.subr.mxu0 0.0
    %1110 = vmatpush1.msra.mxu0 0.0
    %1111 = vmatprep.subr.mxu0 0.0
    %1112 = vmatpush1.msra.mxu0 0.0
    %1113 = vmatprep.subr.mxu0 0.0
    %1114 = vmatpush1.msra.mxu0 0.0
    %1115 = vmatprep.subr.mxu0 0.0
    %1116 = vmatpush1.msra.mxu0 0.0
    %1117 = vmatprep.subr.mxu0 0.0
    %1118 = vmatpush1.msra.mxu0 0.0
    %1119 = vmatprep.subr.mxu0 0.0
    %1120 = vmatpush1.msra.mxu0 0.0
    %1121 = vmatprep.subr.mxu0 0.0
    %1122 = vmatpush1.msra.mxu0 0.0
    %1123 = vmatprep.subr.mxu0 0.0
    %1124 = vmatpush1.msra.mxu0 0.0
    %1125 = vmatprep.subr.mxu0 0.0
    %1126 = vmatpush1.msra.mxu0 0.0
    %1127 = vmatprep.subr.mxu0 0.0
    %1128 = vmatpush1.msra.mxu0 0.0
    %1129 = vmatprep.subr.mxu0 0.0
    %1130 = vmatpush1.msra.mxu0 0.0
    %1131 = vmatprep.subr.mxu0 0.0
    %1132 = vmatpush1.msra.mxu0 0.0
    %1133 = vmatprep.subr.mxu0 %v58
    %1134 = vmatpush1.msra.mxu0 %v57
    %1135 = vmatprep.subr.mxu0 %v55
    %1136 = vmatpush1.msra.mxu0 %v54
    %1137 = vmatprep.subr.mxu0 %v52
    %1138 = vmatpush1.msra.mxu0 %v51
    %1139 = vmatprep.subr.mxu0 %v49
    %1140 = vmatpush1.msra.mxu0 %v48
    %1141 = vmatprep.subr.mxu0 0.0
    %1142 = vmatpush2.msra.mxu0 0.0
    %1143 = vmatprep.subr.mxu0 0.0
    %1144 = vmatpush2.msra.mxu0 0.0
    %1145 = vmatprep.subr.mxu0 0.0
    %1146 = vmatpush2.msra.mxu0 0.0
    %1147 = vmatprep.subr.mxu0 0.0
    %1148 = vmatpush2.msra.mxu0 0.0
    %1149 = vmatprep.subr.mxu0 0.0
    %1150 = vmatpush2.msra.mxu0 0.0
    %1151 = vmatprep.subr.mxu0 0.0
    %1152 = vmatpush2.msra.mxu0 0.0
    %1153 = vmatprep.subr.mxu0 0.0
    %1154 = vmatpush2.msra.mxu0 0.0
    %1155 = vmatprep.subr.mxu0 0.0
    %1156 = vmatpush2.msra.mxu0 0.0
    %1157 = vmatprep.subr.mxu0 0.0
    %1158 = vmatpush2.msra.mxu0 0.0
    %1159 = vmatprep.subr.mxu0 0.0
    %1160 = vmatpush2.msra.mxu0 0.0
    %1161 = vmatprep.subr.mxu0 0.0
    %1162 = vmatpush2.msra.mxu0 0.0
    %1163 = vmatprep.subr.mxu0 0.0
    %1164 = vmatpush2.msra.mxu0 0.0
    %1165 = vmatprep.subr.mxu0 0.0
    %1166 = vmatpush2.msra.mxu0 0.0
    %1167 = vmatprep.subr.mxu0 0.0
    %1168 = vmatpush2.msra.mxu0 0.0
    %1169 = vmatprep.subr.mxu0 0.0
    %1170 = vmatpush2.msra.mxu0 0.0
    %1171 = vmatprep.subr.mxu0 0.0
    %1172 = vmatpush2.msra.mxu0 0.0
    %1173 = vmatprep.mubr.f32.mxu0 0.0
    %1174 = vmatmul.mubr.f32.gmra.mxu0 %v1107
    %v1175 = vpop.f32.mrf.mxu0
    %v1176 = vadd.f32 0.0, %v1175
    %v1177 = vpop.f32.mrf.mxu0
    %v1178 = vadd.f32 0.0, %v1177
    %1179 = vdwg.mxu0
    %1180 = vmatprep.subr.mxu0 0.0
    %1181 = vmatpush1.msra.mxu0 0.0
    %1182 = vmatprep.subr.mxu0 0.0
    %1183 = vmatpush1.msra.mxu0 0.0
    %1184 = vmatprep.subr.mxu0 0.0
    %1185 = vmatpush1.msra.mxu0 0.0
    %1186 = vmatprep.subr.mxu0 0.0
    %1187 = vmatpush1.msra.mxu0 0.0
    %1188 = vmatprep.subr.mxu0 0.0
    %1189 = vmatpush1.msra.mxu0 0.0
    %1190 = vmatprep.subr.mxu0 0.0
    %1191 = vmatpush1.msra.mxu0 0.0
    %1192 = vmatprep.subr.mxu0 0.0
    %1193 = vmatpush1.msra.mxu0 0.0
    %1194 = vmatprep.subr.mxu0 0.0
    %1195 = vmatpush1.msra.mxu0 0.0
    %1196 = vmatprep.subr.mxu0 0.0
    %1197 = vmatpush1.msra.mxu0 0.0
    %1198 = vmatprep.subr.mxu0 0.0
    %1199 = vmatpush1.msra.mxu0 0.0
    %1200 = vmatprep.subr.mxu0 0.0
    %1201 = vmatpush1.msra.mxu0 0.0
    %1202 = vmatprep.subr.mxu0 0.0
    %1203 = vmatpush1.msra.mxu0 0.0
    %1204 = vmatprep.subr.mxu0 0.0
    %1205 = vmatpush1.msra.mxu0 %v59
    %1206 = vmatprep.subr.mxu0 0.0
    %1207 = vmatpush1.msra.mxu0 %v56
    %1208 = vmatprep.subr.mxu0 0.0
    %1209 = vmatpush1.msra.mxu0 %v53
    %1210 = vmatprep.subr.mxu0 0.0
    %1211 = vmatpush1.msra.mxu0 %v50
    %1212 = vmatprep.subr.mxu0 0.0
    %1213 = vmatpush2.msra.mxu0 0.0
    %1214 = vmatprep.subr.mxu0 0.0
    %1215 = vmatpush2.msra.mxu0 0.0
    %1216 = vmatprep.subr.mxu0 0.0
    %1217 = vmatpush2.msra.mxu0 0.0
    %1218 = vmatprep.subr.mxu0 0.0
    %1219 = vmatpush2.msra.mxu0 0.0
    %1220 = vmatprep.subr.mxu0 0.0
    %1221 = vmatpush2.msra.mxu0 0.0
    %1222 = vmatprep.subr.mxu0 0.0
    %1223 = vmatpush2.msra.mxu0 0.0
    %1224 = vmatprep.subr.mxu0 0.0
    %1225 = vmatpush2.msra.mxu0 0.0
    %1226 = vmatprep.subr.mxu0 0.0
    %1227 = vmatpush2.msra.mxu0 0.0
    %1228 = vmatprep.subr.mxu0 0.0
    %1229 = vmatpush2.msra.mxu0 0.0
    %1230 = vmatprep.subr.mxu0 0.0
    %1231 = vmatpush2.msra.mxu0 0.0
    %1232 = vmatprep.subr.mxu0 0.0
    %1233 = vmatpush2.msra.mxu0 0.0
    %1234 = vmatprep.subr.mxu0 0.0
    %1235 = vmatpush2.msra.mxu0 0.0
    %1236 = vmatprep.subr.mxu0 0.0
    %1237 = vmatpush2.msra.mxu0 0.0
    %1238 = vmatprep.subr.mxu0 0.0
    %1239 = vmatpush2.msra.mxu0 0.0
    %1240 = vmatprep.subr.mxu0 0.0
    %1241 = vmatpush2.msra.mxu0 0.0
    %1242 = vmatprep.subr.mxu0 0.0
    %1243 = vmatpush2.msra.mxu0 0.0
    %1244 = vmatprep.mubr.f32.mxu0 0.0
    %1245 = vmatmul.mubr.f32.gmra.mxu0 %v1107
    %v1246 = vpop.f32.mrf.mxu0
    %v1247 = vadd.f32 0.0, %v1246
    %v1248 = vpop.f32.mrf.mxu0
    %1249 = vdwg.mxu0
    %v1251 = vrot.slane %v1176, 6
    %v1253 = vadd.f32 %v159, %v1251
    %v1254 = vxor.u32 %v1253, 2147483648
    %v1255 = vmul.f32 %v1254, 1.442695
    %v1256 = vpow.pop %v1255
    %v1257 = vadd.f32 %v1256, 1.0
    %v1258 = vrcp.pop %v1257
    %v1259 = vmul.f32 1.0, %v1258
    %v1261 = vrot.slane %v1178, 6
    %v1263 = vadd.f32 %v161, %v1261
    %v1264 = vxor.u32 %v1263, 2147483648
    %v1265 = vmul.f32 %v1264, 1.442695
    %v1266 = vpow.pop %v1265
    %v1267 = vadd.f32 %v1266, 1.0
    %v1268 = vrcp.pop %v1267
    %v1269 = vmul.f32 1.0, %v1268
    %v1270 = vadd.f32 %v1247, %v62
    %v1272 = vrot.slane %v1270, 6
    %v1274 = vmul.f32 %v1259, %v1272
    %v1275 = vadd.f32 %v235, %v1274
    %v1276 = vtanh.pop %v1275
    %v1277 = vsub.f32 1.0, %v1269
    %v1278 = vmul.f32 %v1277, %v1276
    %v1279 = vrot.slane %v1105, 6
    %v1281 = vmul.f32 %v1269, %v1279
    %v1282 = vadd.f32 %v1278, %v1281
    %v1284 = vrot.slane %v1282, 2
    %v1285 = vsel %vm238, %v1284, 0
    %1287 = vmatprep.subr.mxu0 0.0
    %1288 = vmatpush1.msra.mxu0 0.0
    %1289 = vmatprep.subr.mxu0 0.0
    %1290 = vmatpush1.msra.mxu0 0.0
    %1291 = vmatprep.subr.mxu0 0.0
    %1292 = vmatpush1.msra.mxu0 0.0
    %1293 = vmatprep.subr.mxu0 0.0
    %1294 = vmatpush1.msra.mxu0 0.0
    %1295 = vmatprep.subr.mxu0 0.0
    %1296 = vmatpush1.msra.mxu0 0.0
    %1297 = vmatprep.subr.mxu0 0.0
    %1298 = vmatpush1.msra.mxu0 0.0
    %1299 = vmatprep.subr.mxu0 0.0
    %1300 = vmatpush1.msra.mxu0 0.0
    %1301 = vmatprep.subr.mxu0 0.0
    %1302 = vmatpush1.msra.mxu0 0.0
    %1303 = vmatprep.subr.mxu0 0.0
    %1304 = vmatpush1.msra.mxu0 0.0
    %1305 = vmatprep.subr.mxu0 0.0
    %1306 = vmatpush1.msra.mxu0 0.0
    %1307 = vmatprep.subr.mxu0 0.0
    %1308 = vmatpush1.msra.mxu0 0.0
    %1309 = vmatprep.subr.mxu0 0.0
    %1310 = vmatpush1.msra.mxu0 0.0
    %1311 = vmatprep.subr.mxu0 %v58
    %1312 = vmatpush1.msra.mxu0 %v57
    %1313 = vmatprep.subr.mxu0 %v55
    %1314 = vmatpush1.msra.mxu0 %v54
    %1315 = vmatprep.subr.mxu0 %v52
    %1316 = vmatpush1.msra.mxu0 %v51
    %1317 = vmatprep.subr.mxu0 %v49
    %1318 = vmatpush1.msra.mxu0 %v48
    %1319 = vmatprep.subr.mxu0 0.0
    %1320 = vmatpush2.msra.mxu0 0.0
    %1321 = vmatprep.subr.mxu0 0.0
    %1322 = vmatpush2.msra.mxu0 0.0
    %1323 = vmatprep.subr.mxu0 0.0
    %1324 = vmatpush2.msra.mxu0 0.0
    %1325 = vmatprep.subr.mxu0 0.0
    %1326 = vmatpush2.msra.mxu0 0.0
    %1327 = vmatprep.subr.mxu0 0.0
    %1328 = vmatpush2.msra.mxu0 0.0
    %1329 = vmatprep.subr.mxu0 0.0
    %1330 = vmatpush2.msra.mxu0 0.0
    %1331 = vmatprep.subr.mxu0 0.0
    %1332 = vmatpush2.msra.mxu0 0.0
    %1333 = vmatprep.subr.mxu0 0.0
    %1334 = vmatpush2.msra.mxu0 0.0
    %1335 = vmatprep.subr.mxu0 0.0
    %1336 = vmatpush2.msra.mxu0 0.0
    %1337 = vmatprep.subr.mxu0 0.0
    %1338 = vmatpush2.msra.mxu0 0.0
    %1339 = vmatprep.subr.mxu0 0.0
    %1340 = vmatpush2.msra.mxu0 0.0
    %1341 = vmatprep.subr.mxu0 0.0
    %1342 = vmatpush2.msra.mxu0 0.0
    %1343 = vmatprep.subr.mxu0 0.0
    %1344 = vmatpush2.msra.mxu0 0.0
    %1345 = vmatprep.subr.mxu0 0.0
    %1346 = vmatpush2.msra.mxu0 0.0
    %1347 = vmatprep.subr.mxu0 0.0
    %1348 = vmatpush2.msra.mxu0 0.0
    %1349 = vmatprep.subr.mxu0 0.0
    %1350 = vmatpush2.msra.mxu0 0.0
    %1351 = vmatprep.mubr.f32.mxu0 0.0
    %1352 = vmatmul.mubr.f32.gmra.mxu0 %v1285
    %v1353 = vpop.f32.mrf.mxu0
    %v1354 = vadd.f32 0.0, %v1353
    %v1355 = vpop.f32.mrf.mxu0
    %v1356 = vadd.f32 0.0, %v1355
    %1357 = vdwg.mxu0
    %1358 = vmatprep.subr.mxu0 0.0
    %1359 = vmatpush1.msra.mxu0 0.0
    %1360 = vmatprep.subr.mxu0 0.0
    %1361 = vmatpush1.msra.mxu0 0.0
    %1362 = vmatprep.subr.mxu0 0.0
    %1363 = vmatpush1.msra.mxu0 0.0
    %1364 = vmatprep.subr.mxu0 0.0
    %1365 = vmatpush1.msra.mxu0 0.0
    %1366 = vmatprep.subr.mxu0 0.0
    %1367 = vmatpush1.msra.mxu0 0.0
    %1368 = vmatprep.subr.mxu0 0.0
    %1369 = vmatpush1.msra.mxu0 0.0
    %1370 = vmatprep.subr.mxu0 0.0
    %1371 = vmatpush1.msra.mxu0 0.0
    %1372 = vmatprep.subr.mxu0 0.0
    %1373 = vmatpush1.msra.mxu0 0.0
    %1374 = vmatprep.subr.mxu0 0.0
    %1375 = vmatpush1.msra.mxu0 0.0
    %1376 = vmatprep.subr.mxu0 0.0
    %1377 = vmatpush1.msra.mxu0 0.0
    %1378 = vmatprep.subr.mxu0 0.0
    %1379 = vmatpush1.msra.mxu0 0.0
    %1380 = vmatprep.subr.mxu0 0.0
    %1381 = vmatpush1.msra.mxu0 0.0
    %1382 = vmatprep.subr.mxu0 0.0
    %1383 = vmatpush1.msra.mxu0 %v59
    %1384 = vmatprep.subr.mxu0 0.0
    %1385 = vmatpush1.msra.mxu0 %v56
    %1386 = vmatprep.subr.mxu0 0.0
    %1387 = vmatpush1.msra.mxu0 %v53
    %1388 = vmatprep.subr.mxu0 0.0
    %1389 = vmatpush1.msra.mxu0 %v50
    %1390 = vmatprep.subr.mxu0 0.0
    %1391 = vmatpush2.msra.mxu0 0.0
    %1392 = vmatprep.subr.mxu0 0.0
    %1393 = vmatpush2.msra.mxu0 0.0
    %1394 = vmatprep.subr.mxu0 0.0
    %1395 = vmatpush2.msra.mxu0 0.0
    %1396 = vmatprep.subr.mxu0 0.0
    %1397 = vmatpush2.msra.mxu0 0.0
    %1398 = vmatprep.subr.mxu0 0.0
    %1399 = vmatpush2.msra.mxu0 0.0
    %1400 = vmatprep.subr.mxu0 0.0
    %1401 = vmatpush2.msra.mxu0 0.0
    %1402 = vmatprep.subr.mxu0 0.0
    %1403 = vmatpush2.msra.mxu0 0.0
    %1404 = vmatprep.subr.mxu0 0.0
    %1405 = vmatpush2.msra.mxu0 0.0
    %1406 = vmatprep.subr.mxu0 0.0
    %1407 = vmatpush2.msra.mxu0 0.0
    %1408 = vmatprep.subr.mxu0 0.0
    %1409 = vmatpush2.msra.mxu0 0.0
    %1410 = vmatprep.subr.mxu0 0.0
    %1411 = vmatpush2.msra.mxu0 0.0
    %1412 = vmatprep.subr.mxu0 0.0
    %1413 = vmatpush2.msra.mxu0 0.0
    %1414 = vmatprep.subr.mxu0 0.0
    %1415 = vmatpush2.msra.mxu0 0.0
    %1416 = vmatprep.subr.mxu0 0.0
    %1417 = vmatpush2.msra.mxu0 0.0
    %1418 = vmatprep.subr.mxu0 0.0
    %1419 = vmatpush2.msra.mxu0 0.0
    %1420 = vmatprep.subr.mxu0 0.0
    %1421 = vmatpush2.msra.mxu0 0.0
    %1422 = vmatprep.mubr.f32.mxu0 0.0
    %1423 = vmatmul.mubr.f32.gmra.mxu0 %v1285
    %v1424 = vpop.f32.mrf.mxu0
    %v1425 = vadd.f32 0.0, %v1424
    %v1426 = vpop.f32.mrf.mxu0
    %1427 = vdwg.mxu0
    %v1429 = vrot.slane %v1354, 4
    %v1431 = vadd.f32 %v159, %v1429
    %v1432 = vxor.u32 %v1431, 2147483648
    %v1433 = vmul.f32 %v1432, 1.442695
    %v1434 = vpow.pop %v1433
    %v1435 = vadd.f32 %v1434, 1.0
    %v1436 = vrcp.pop %v1435
    %v1437 = vmul.f32 1.0, %v1436
    %v1439 = vrot.slane %v1356, 4
    %v1441 = vadd.f32 %v161, %v1439
    %v1442 = vxor.u32 %v1441, 2147483648
    %v1443 = vmul.f32 %v1442, 1.442695
    %v1444 = vpow.pop %v1443
    %v1445 = vadd.f32 %v1444, 1.0
    %v1446 = vrcp.pop %v1445
    %v1447 = vmul.f32 1.0, %v1446
    %v1448 = vadd.f32 %v1425, %v62
    %v1450 = vrot.slane %v1448, 4
    %v1452 = vmul.f32 %v1437, %v1450
    %v1453 = vadd.f32 %v235, %v1452
    %v1454 = vtanh.pop %v1453
    %v1455 = vsub.f32 1.0, %v1447
    %v1456 = vmul.f32 %v1455, %v1454
    %v1457 = vrot.slane %v1282, 6
    %v1459 = vmul.f32 %v1447, %v1457
    %v1460 = vadd.f32 %v1456, %v1459
    %v1462 = vrot.slane %v1460, 4
    %v1463 = vsel %vm238, %v1462, 0
    %1465 = vmatprep.subr.mxu0 0.0
    %1466 = vmatpush1.msra.mxu0 0.0
    %1467 = vmatprep.subr.mxu0 0.0
    %1468 = vmatpush1.msra.mxu0 0.0
    %1469 = vmatprep.subr.mxu0 0.0
    %1470 = vmatpush1.msra.mxu0 0.0
    %1471 = vmatprep.subr.mxu0 0.0
    %1472 = vmatpush1.msra.mxu0 0.0
    %1473 = vmatprep.subr.mxu0 0.0
    %1474 = vmatpush1.msra.mxu0 0.0
    %1475 = vmatprep.subr.mxu0 0.0
    %1476 = vmatpush1.msra.mxu0 0.0
    %1477 = vmatprep.subr.mxu0 0.0
    %1478 = vmatpush1.msra.mxu0 0.0
    %1479 = vmatprep.subr.mxu0 0.0
    %1480 = vmatpush1.msra.mxu0 0.0
    %1481 = vmatprep.subr.mxu0 0.0
    %1482 = vmatpush1.msra.mxu0 0.0
    %1483 = vmatprep.subr.mxu0 0.0
    %1484 = vmatpush1.msra.mxu0 0.0
    %1485 = vmatprep.subr.mxu0 0.0
    %1486 = vmatpush1.msra.mxu0 0.0
    %1487 = vmatprep.subr.mxu0 0.0
    %1488 = vmatpush1.msra.mxu0 0.0
    %1489 = vmatprep.subr.mxu0 %v58
    %1490 = vmatpush1.msra.mxu0 %v57
    %1491 = vmatprep.subr.mxu0 %v55
    %1492 = vmatpush1.msra.mxu0 %v54
    %1493 = vmatprep.subr.mxu0 %v52
    %1494 = vmatpush1.msra.mxu0 %v51
    %1495 = vmatprep.subr.mxu0 %v49
    %1496 = vmatpush1.msra.mxu0 %v48
    %1497 = vmatprep.subr.mxu0 0.0
    %1498 = vmatpush2.msra.mxu0 0.0
    %1499 = vmatprep.subr.mxu0 0.0
    %1500 = vmatpush2.msra.mxu0 0.0
    %1501 = vmatprep.subr.mxu0 0.0
    %1502 = vmatpush2.msra.mxu0 0.0
    %1503 = vmatprep.subr.mxu0 0.0
    %1504 = vmatpush2.msra.mxu0 0.0
    %1505 = vmatprep.subr.mxu0 0.0
    %1506 = vmatpush2.msra.mxu0 0.0
    %1507 = vmatprep.subr.mxu0 0.0
    %1508 = vmatpush2.msra.mxu0 0.0
    %1509 = vmatprep.subr.mxu0 0.0
    %1510 = vmatpush2.msra.mxu0 0.0
    %1511 = vmatprep.subr.mxu0 0.0
    %1512 = vmatpush2.msra.mxu0 0.0
    %1513 = vmatprep.subr.mxu0 0.0
    %1514 = vmatpush2.msra.mxu0 0.0
    %1515 = vmatprep.subr.mxu0 0.0
    %1516 = vmatpush2.msra.mxu0 0.0
    %1517 = vmatprep.subr.mxu0 0.0
    %1518 = vmatpush2.msra.mxu0 0.0
    %1519 = vmatprep.subr.mxu0 0.0
    %1520 = vmatpush2.msra.mxu0 0.0
    %1521 = vmatprep.subr.mxu0 0.0
    %1522 = vmatpush2.msra.mxu0 0.0
    %1523 = vmatprep.subr.mxu0 0.0
    %1524 = vmatpush2.msra.mxu0 0.0
    %1525 = vmatprep.subr.mxu0 0.0
    %1526 = vmatpush2.msra.mxu0 0.0
    %1527 = vmatprep.subr.mxu0 0.0
    %1528 = vmatpush2.msra.mxu0 0.0
    %1529 = vmatprep.mubr.f32.mxu0 0.0
    %1530 = vmatmul.mubr.f32.gmra.mxu0 %v1463
    %v1531 = vpop.f32.mrf.mxu0
    %v1532 = vadd.f32 0.0, %v1531
    %v1533 = vpop.f32.mrf.mxu0
    %v1534 = vadd.f32 0.0, %v1533
    %1535 = vdwg.mxu0
    %1536 = vmatprep.subr.mxu0 0.0
    %1537 = vmatpush1.msra.mxu0 0.0
    %1538 = vmatprep.subr.mxu0 0.0
    %1539 = vmatpush1.msra.mxu0 0.0
    %1540 = vmatprep.subr.mxu0 0.0
    %1541 = vmatpush1.msra.mxu0 0.0
    %1542 = vmatprep.subr.mxu0 0.0
    %1543 = vmatpush1.msra.mxu0 0.0
    %1544 = vmatprep.subr.mxu0 0.0
    %1545 = vmatpush1.msra.mxu0 0.0
    %1546 = vmatprep.subr.mxu0 0.0
    %1547 = vmatpush1.msra.mxu0 0.0
    %1548 = vmatprep.subr.mxu0 0.0
    %1549 = vmatpush1.msra.mxu0 0.0
    %1550 = vmatprep.subr.mxu0 0.0
    %1551 = vmatpush1.msra.mxu0 0.0
    %1552 = vmatprep.subr.mxu0 0.0
    %1553 = vmatpush1.msra.mxu0 0.0
    %1554 = vmatprep.subr.mxu0 0.0
    %1555 = vmatpush1.msra.mxu0 0.0
    %1556 = vmatprep.subr.mxu0 0.0
    %1557 = vmatpush1.msra.mxu0 0.0
    %1558 = vmatprep.subr.mxu0 0.0
    %1559 = vmatpush1.msra.mxu0 0.0
    %1560 = vmatprep.subr.mxu0 0.0
    %1561 = vmatpush1.msra.mxu0 %v59
    %1562 = vmatprep.subr.mxu0 0.0
    %1563 = vmatpush1.msra.mxu0 %v56
    %1564 = vmatprep.subr.mxu0 0.0
    %1565 = vmatpush1.msra.mxu0 %v53
    %1566 = vmatprep.subr.mxu0 0.0
    %1567 = vmatpush1.msra.mxu0 %v50
    %1568 = vmatprep.subr.mxu0 0.0
    %1569 = vmatpush2.msra.mxu0 0.0
    %1570 = vmatprep.subr.mxu0 0.0
    %1571 = vmatpush2.msra.mxu0 0.0
    %1572 = vmatprep.subr.mxu0 0.0
    %1573 = vmatpush2.msra.mxu0 0.0
    %1574 = vmatprep.subr.mxu0 0.0
    %1575 = vmatpush2.msra.mxu0 0.0
    %1576 = vmatprep.subr.mxu0 0.0
    %1577 = vmatpush2.msra.mxu0 0.0
    %1578 = vmatprep.subr.mxu0 0.0
    %1579 = vmatpush2.msra.mxu0 0.0
    %1580 = vmatprep.subr.mxu0 0.0
    %1581 = vmatpush2.msra.mxu0 0.0
    %1582 = vmatprep.subr.mxu0 0.0
    %1583 = vmatpush2.msra.mxu0 0.0
    %1584 = vmatprep.subr.mxu0 0.0
    %1585 = vmatpush2.msra.mxu0 0.0
    %1586 = vmatprep.subr.mxu0 0.0
    %1587 = vmatpush2.msra.mxu0 0.0
    %1588 = vmatprep.subr.mxu0 0.0
    %1589 = vmatpush2.msra.mxu0 0.0
    %1590 = vmatprep.subr.mxu0 0.0
    %1591 = vmatpush2.msra.mxu0 0.0
    %1592 = vmatprep.subr.mxu0 0.0
    %1593 = vmatpush2.msra.mxu0 0.0
    %1594 = vmatprep.subr.mxu0 0.0
    %1595 = vmatpush2.msra.mxu0 0.0
    %1596 = vmatprep.subr.mxu0 0.0
    %1597 = vmatpush2.msra.mxu0 0.0
    %1598 = vmatprep.subr.mxu0 0.0
    %1599 = vmatpush2.msra.mxu0 0.0
    %1600 = vmatprep.mubr.f32.mxu0 0.0
    %1601 = vmatmul.mubr.f32.gmra.mxu0 %v1463
    %v1602 = vpop.f32.mrf.mxu0
    %v1603 = vadd.f32 0.0, %v1602
    %v1604 = vpop.f32.mrf.mxu0
    %1605 = vdwg.mxu0
    %v1607 = vrot.slane %v1532, 2
    %v1609 = vadd.f32 %v159, %v1607
    %v1610 = vxor.u32 %v1609, 2147483648
    %v1611 = vmul.f32 %v1610, 1.442695
    %v1612 = vpow.pop %v1611
    %v1613 = vadd.f32 %v1612, 1.0
    %v1614 = vrcp.pop %v1613
    %v1615 = vmul.f32 1.0, %v1614
    %v1617 = vrot.slane %v1534, 2
    %v1619 = vadd.f32 %v161, %v1617
    %v1620 = vxor.u32 %v1619, 2147483648
    %v1621 = vmul.f32 %v1620, 1.442695
    %v1622 = vpow.pop %v1621
    %v1623 = vadd.f32 %v1622, 1.0
    %v1624 = vrcp.pop %v1623
    %v1625 = vmul.f32 1.0, %v1624
    %v1626 = vadd.f32 %v1603, %v62
    %v1628 = vrot.slane %v1626, 2
    %v1630 = vmul.f32 %v1615, %v1628
    %v1631 = vadd.f32 %v235, %v1630
    %v1632 = vtanh.pop %v1631
    %v1633 = vsub.f32 1.0, %v1625
    %v1634 = vmul.f32 %v1633, %v1632
    %v1635 = vrot.slane %v1460, 6
    %v1637 = vmul.f32 %v1625, %v1635
    %v1638 = vadd.f32 %v1634, %v1637
    %vm1639 = vcmask 1041408
    %v1640 = vsel %vm1639, %v404, %v581
    %vm1641 = vcmask 1043456
    %v1642 = vsel %vm1641, %v1640, %v759
    %vm1643 = vcmask 1045504
    %v1644 = vsel %vm1643, %v1642, %v937
    %v1645 = vsel %vm1639, %v1105, %v1282
    %v1646 = vsel %vm1641, %v1645, %v1460
    %v1647 = vsel %vm1643, %v1646, %v1638
    %v1648 = vld [vmem:[#allocation5 + $0xa8] sm:$0xff]
    %v1649 = vld [vmem:[#allocation5 + $0xb0] sm:$0xff]
    %v1650 = vld [vmem:[#allocation5 + $0xb8] sm:$0xff]
    %v1651 = vld [vmem:[#allocation5 + $0xc0] sm:$0xff]
    %v1652 = vld [vmem:[#allocation5 + $0xc8] sm:$0xff]
    %v1653 = vld [vmem:[#allocation5 + $0xd0] sm:$0xff]
    %v1654 = vld [vmem:[#allocation5 + $0xd8] sm:$0xff]
    %v1655 = vld [vmem:[#allocation5 + $0xe0] sm:$0xff]
    %v1656 = vld [vmem:[#allocation5 + $0xe8] sm:$0xff]
    %v1657 = vld [vmem:[#allocation5 + $0xf0] sm:$0xff]
    %v1658 = vld [vmem:[#allocation5 + $0xf8] sm:$0xff]
    %v1659 = vld [vmem:[#allocation5 + $0x100] sm:$0xff]
    %v1660 = vld [vmem:[#allocation5 + $0x108] sm:$0xff]
    %v1661 = vld [vmem:[#allocation5 + $0x110] sm:$0xff]
    %v1662 = vld [vmem:[#allocation5 + $0x118] sm:$0xff]
    %v1663 = vld [vmem:[#allocation5 + $0x120] sm:$0xff]
    %v1664 = vld [vmem:[#allocation5 + $0x128] sm:$0xff]
    %v1665 = vld [vmem:[#allocation5 + $0x130] sm:$0xff]
    %v1666 = vld [vmem:[#allocation5 + $0x138] sm:$0xff]
    %v1667 = vld [vmem:[#allocation5 + $0x140] sm:$0xff]
    %v1668 = vld [vmem:[#allocation5 + $0x148] sm:$0xff]
    %v1669 = vld [vmem:[#allocation5 + $0x150] sm:$0xff]
    %v1670 = vld [vmem:[#allocation5 + $0x158] sm:$0xff]
    %v1671 = vld [vmem:[#allocation5 + $0x160] sm:$0xff]
    %s1672 = scalar_lea.vmem [#allocation5], 360
    %v1673 = vld [vmem:[%s1672] ss:$8 sm:$0x7]
    %v1674 = vld [vmem:[#allocation5 + $0x169] ss:$0 sm:$0xff]
    %v1676 = vlaneseq
    %v1677 = vshrl.u32 %v1676, 7
    %v1678 = vsub.s32 0, %v1677
    %v1679 = vrot.slane %v1673, %v1678
    %v1680 = vlaneseq
    %v1681 = vshrl.u32 %v1680, 7
    %v1682 = vsub.s32 1, %v1681
    %v1683 = vrot.slane %v1673, %v1682
    %v1684 = vlaneseq
    %v1685 = vshrl.u32 %v1684, 7
    %v1686 = vsub.s32 2, %v1685
    %v1687 = vrot.slane %v1673, %v1686
    %v1692 = vsel %vm238, %v1644, 0
    %v1695 = vsel %vm238, %v1647, 0
    %1697 = vmatprep.subr.mxu0 0.0
    %1698 = vmatpush1.msra.mxu0 0.0
    %1699 = vmatprep.subr.mxu0 0.0
    %1700 = vmatpush1.msra.mxu0 0.0
    %1701 = vmatprep.subr.mxu0 0.0
    %1702 = vmatpush1.msra.mxu0 0.0
    %1703 = vmatprep.subr.mxu0 0.0
    %1704 = vmatpush1.msra.mxu0 0.0
    %1705 = vmatprep.subr.mxu0 0.0
    %1706 = vmatpush1.msra.mxu0 0.0
    %1707 = vmatprep.subr.mxu0 0.0
    %1708 = vmatpush1.msra.mxu0 0.0
    %1709 = vmatprep.subr.mxu0 0.0
    %1710 = vmatpush1.msra.mxu0 0.0
    %1711 = vmatprep.subr.mxu0 0.0
    %1712 = vmatpush1.msra.mxu0 0.0
    %1713 = vmatprep.subr.mxu0 0.0
    %1714 = vmatpush1.msra.mxu0 0.0
    %1715 = vmatprep.subr.mxu0 0.0
    %1716 = vmatpush1.msra.mxu0 0.0
    %1717 = vmatprep.subr.mxu0 0.0
    %1718 = vmatpush1.msra.mxu0 0.0
    %1719 = vmatprep.subr.mxu0 0.0
    %1720 = vmatpush1.msra.mxu0 0.0
    %1721 = vmatprep.subr.mxu0 %v1658
    %1722 = vmatpush1.msra.mxu0 %v1657
    %1723 = vmatprep.subr.mxu0 %v1655
    %1724 = vmatpush1.msra.mxu0 %v1654
    %1725 = vmatprep.subr.mxu0 %v1652
    %1726 = vmatpush1.msra.mxu0 %v1651
    %1727 = vmatprep.subr.mxu0 %v1649
    %1728 = vmatpush1.msra.mxu0 %v1648
    %1729 = vmatprep.subr.mxu0 0.0
    %1730 = vmatpush2.msra.mxu0 0.0
    %1731 = vmatprep.subr.mxu0 0.0
    %1732 = vmatpush2.msra.mxu0 0.0
    %1733 = vmatprep.subr.mxu0 0.0
    %1734 = vmatpush2.msra.mxu0 0.0
    %1735 = vmatprep.subr.mxu0 0.0
    %1736 = vmatpush2.msra.mxu0 0.0
    %1737 = vmatprep.subr.mxu0 0.0
    %1738 = vmatpush2.msra.mxu0 0.0
    %1739 = vmatprep.subr.mxu0 0.0
    %1740 = vmatpush2.msra.mxu0 0.0
    %1741 = vmatprep.subr.mxu0 0.0
    %1742 = vmatpush2.msra.mxu0 0.0
    %1743 = vmatprep.subr.mxu0 0.0
    %1744 = vmatpush2.msra.mxu0 0.0
    %1745 = vmatprep.subr.mxu0 0.0
    %1746 = vmatpush2.msra.mxu0 0.0
    %1747 = vmatprep.subr.mxu0 0.0
    %1748 = vmatpush2.msra.mxu0 0.0
    %1749 = vmatprep.subr.mxu0 0.0
    %1750 = vmatpush2.msra.mxu0 0.0
    %1751 = vmatprep.subr.mxu0 0.0
    %1752 = vmatpush2.msra.mxu0 0.0
    %1753 = vmatprep.subr.mxu0 0.0
    %1754 = vmatpush2.msra.mxu0 0.0
    %1755 = vmatprep.subr.mxu0 0.0
    %1756 = vmatpush2.msra.mxu0 0.0
    %1757 = vmatprep.subr.mxu0 0.0
    %1758 = vmatpush2.msra.mxu0 0.0
    %1759 = vmatprep.subr.mxu0 0.0
    %1760 = vmatpush2.msra.mxu0 0.0
    %1761 = vmatprep.mubr.f32.mxu0 0.0
    %1762 = vmatmul.mubr.f32.gmra.mxu0 %v1692
    %v1763 = vpop.f32.mrf.mxu0
    %v1764 = vadd.f32 %v1679, %v1763
    %v1765 = vpop.f32.mrf.mxu0
    %v1766 = vadd.f32 %v1683, %v1765
    %1767 = vmatprep.mubr.f32.mxu0 0.0
    %1768 = vmatmul.mubr.f32.gmra.mxu0 %v1695
    %v1769 = vpop.f32.mrf.mxu0
    %v1770 = vadd.f32 %v1679, %v1769
    %v1771 = vpop.f32.mrf.mxu0
    %v1772 = vadd.f32 %v1683, %v1771
    %1773 = vdwg.mxu0
    %1774 = vmatprep.subr.mxu0 0.0
    %1775 = vmatpush1.msra.mxu0 0.0
    %1776 = vmatprep.subr.mxu0 0.0
    %1777 = vmatpush1.msra.mxu0 0.0
    %1778 = vmatprep.subr.mxu0 0.0
    %1779 = vmatpush1.msra.mxu0 0.0
    %1780 = vmatprep.subr.mxu0 0.0
    %1781 = vmatpush1.msra.mxu0 0.0
    %1782 = vmatprep.subr.mxu0 0.0
    %1783 = vmatpush1.msra.mxu0 0.0
    %1784 = vmatprep.subr.mxu0 0.0
    %1785 = vmatpush1.msra.mxu0 0.0
    %1786 = vmatprep.subr.mxu0 0.0
    %1787 = vmatpush1.msra.mxu0 0.0
    %1788 = vmatprep.subr.mxu0 0.0
    %1789 = vmatpush1.msra.mxu0 0.0
    %1790 = vmatprep.subr.mxu0 0.0
    %1791 = vmatpush1.msra.mxu0 0.0
    %1792 = vmatprep.subr.mxu0 0.0
    %1793 = vmatpush1.msra.mxu0 0.0
    %1794 = vmatprep.subr.mxu0 0.0
    %1795 = vmatpush1.msra.mxu0 0.0
    %1796 = vmatprep.subr.mxu0 0.0
    %1797 = vmatpush1.msra.mxu0 0.0
    %1798 = vmatprep.subr.mxu0 0.0
    %1799 = vmatpush1.msra.mxu0 %v1659
    %1800 = vmatprep.subr.mxu0 0.0
    %1801 = vmatpush1.msra.mxu0 %v1656
    %1802 = vmatprep.subr.mxu0 0.0
    %1803 = vmatpush1.msra.mxu0 %v1653
    %1804 = vmatprep.subr.mxu0 0.0
    %1805 = vmatpush1.msra.mxu0 %v1650
    %1806 = vmatprep.subr.mxu0 0.0
    %1807 = vmatpush2.msra.mxu0 0.0
    %1808 = vmatprep.subr.mxu0 0.0
    %1809 = vmatpush2.msra.mxu0 0.0
    %1810 = vmatprep.subr.mxu0 0.0
    %1811 = vmatpush2.msra.mxu0 0.0
    %1812 = vmatprep.subr.mxu0 0.0
    %1813 = vmatpush2.msra.mxu0 0.0
    %1814 = vmatprep.subr.mxu0 0.0
    %1815 = vmatpush2.msra.mxu0 0.0
    %1816 = vmatprep.subr.mxu0 0.0
    %1817 = vmatpush2.msra.mxu0 0.0
    %1818 = vmatprep.subr.mxu0 0.0
    %1819 = vmatpush2.msra.mxu0 0.0
    %1820 = vmatprep.subr.mxu0 0.0
    %1821 = vmatpush2.msra.mxu0 0.0
    %1822 = vmatprep.subr.mxu0 0.0
    %1823 = vmatpush2.msra.mxu0 0.0
    %1824 = vmatprep.subr.mxu0 0.0
    %1825 = vmatpush2.msra.mxu0 0.0
    %1826 = vmatprep.subr.mxu0 0.0
    %1827 = vmatpush2.msra.mxu0 0.0
    %1828 = vmatprep.subr.mxu0 0.0
    %1829 = vmatpush2.msra.mxu0 0.0
    %1830 = vmatprep.subr.mxu0 0.0
    %1831 = vmatpush2.msra.mxu0 0.0
    %1832 = vmatprep.subr.mxu0 0.0
    %1833 = vmatpush2.msra.mxu0 0.0
    %1834 = vmatprep.subr.mxu0 0.0
    %1835 = vmatpush2.msra.mxu0 0.0
    %1836 = vmatprep.subr.mxu0 0.0
    %1837 = vmatpush2.msra.mxu0 0.0
    %1838 = vmatprep.mubr.f32.mxu0 0.0
    %1839 = vmatmul.mubr.f32.gmra.mxu0 %v1692
    %v1840 = vpop.f32.mrf.mxu0
    %v1841 = vadd.f32 %v1687, %v1840
    %v1842 = vpop.f32.mrf.mxu0
    %1843 = vmatprep.mubr.f32.mxu0 0.0
    %1844 = vmatmul.mubr.f32.gmra.mxu0 %v1695
    %v1845 = vpop.f32.mrf.mxu0
    %v1846 = vadd.f32 %v1687, %v1845
    %v1847 = vpop.f32.mrf.mxu0
    %1848 = vdwg.mxu0
    %1849 = vmatprep.subr.mxu0 0.0
    %1850 = vmatpush1.msra.mxu0 0.0
    %1851 = vmatprep.subr.mxu0 0.0
    %1852 = vmatpush1.msra.mxu0 0.0
    %1853 = vmatprep.subr.mxu0 0.0
    %1854 = vmatpush1.msra.mxu0 0.0
    %1855 = vmatprep.subr.mxu0 0.0
    %1856 = vmatpush1.msra.mxu0 0.0
    %1857 = vmatprep.subr.mxu0 0.0
    %1858 = vmatpush1.msra.mxu0 0.0
    %1859 = vmatprep.subr.mxu0 0.0
    %1860 = vmatpush1.msra.mxu0 0.0
    %1861 = vmatprep.subr.mxu0 0.0
    %1862 = vmatpush1.msra.mxu0 0.0
    %1863 = vmatprep.subr.mxu0 0.0
    %1864 = vmatpush1.msra.mxu0 0.0
    %1865 = vmatprep.subr.mxu0 0.0
    %1866 = vmatpush1.msra.mxu0 0.0
    %1867 = vmatprep.subr.mxu0 0.0
    %1868 = vmatpush1.msra.mxu0 0.0
    %1869 = vmatprep.subr.mxu0 0.0
    %1870 = vmatpush1.msra.mxu0 0.0
    %1871 = vmatprep.subr.mxu0 0.0
    %1872 = vmatpush1.msra.mxu0 0.0
    %1873 = vmatprep.subr.mxu0 %v1670
    %1874 = vmatpush1.msra.mxu0 %v1669
    %1875 = vmatprep.subr.mxu0 %v1667
    %1876 = vmatpush1.msra.mxu0 %v1666
    %1877 = vmatprep.subr.mxu0 %v1664
    %1878 = vmatpush1.msra.mxu0 %v1663
    %1879 = vmatprep.subr.mxu0 %v1661
    %1880 = vmatpush1.msra.mxu0 %v1660
    %1881 = vmatprep.subr.mxu0 0.0
    %1882 = vmatpush2.msra.mxu0 0.0
    %1883 = vmatprep.subr.mxu0 0.0
    %1884 = vmatpush2.msra.mxu0 0.0
    %1885 = vmatprep.subr.mxu0 0.0
    %1886 = vmatpush2.msra.mxu0 0.0
    %1887 = vmatprep.subr.mxu0 0.0
    %1888 = vmatpush2.msra.mxu0 0.0
    %1889 = vmatprep.subr.mxu0 0.0
    %1890 = vmatpush2.msra.mxu0 0.0
    %1891 = vmatprep.subr.mxu0 0.0
    %1892 = vmatpush2.msra.mxu0 0.0
    %1893 = vmatprep.subr.mxu0 0.0
    %1894 = vmatpush2.msra.mxu0 0.0
    %1895 = vmatprep.subr.mxu0 0.0
    %1896 = vmatpush2.msra.mxu0 0.0
    %1897 = vmatprep.subr.mxu0 0.0
    %1898 = vmatpush2.msra.mxu0 0.0
    %1899 = vmatprep.subr.mxu0 0.0
    %1900 = vmatpush2.msra.mxu0 0.0
    %1901 = vmatprep.subr.mxu0 0.0
    %1902 = vmatpush2.msra.mxu0 0.0
    %1903 = vmatprep.subr.mxu0 0.0
    %1904 = vmatpush2.msra.mxu0 0.0
    %1905 = vmatprep.subr.mxu0 0.0
    %1906 = vmatpush2.msra.mxu0 0.0
    %1907 = vmatprep.subr.mxu0 0.0
    %1908 = vmatpush2.msra.mxu0 0.0
    %1909 = vmatprep.subr.mxu0 0.0
    %1910 = vmatpush2.msra.mxu0 0.0
    %1911 = vmatprep.subr.mxu0 0.0
    %1912 = vmatpush2.msra.mxu0 0.0
    %1913 = vmatprep.mubr.f32.mxu0 0.0
    %1914 = vmatmul.mubr.f32.gmra.mxu0 %v240
    %v1915 = vpop.f32.mrf.mxu0
    %v1916 = vadd.f32 0.0, %v1915
    %v1917 = vpop.f32.mrf.mxu0
    %v1918 = vadd.f32 0.0, %v1917
    %1919 = vdwg.mxu0
    %1920 = vmatprep.subr.mxu0 0.0
    %1921 = vmatpush1.msra.mxu0 0.0
    %1922 = vmatprep.subr.mxu0 0.0
    %1923 = vmatpush1.msra.mxu0 0.0
    %1924 = vmatprep.subr.mxu0 0.0
    %1925 = vmatpush1.msra.mxu0 0.0
    %1926 = vmatprep.subr.mxu0 0.0
    %1927 = vmatpush1.msra.mxu0 0.0
    %1928 = vmatprep.subr.mxu0 0.0
    %1929 = vmatpush1.msra.mxu0 0.0
    %1930 = vmatprep.subr.mxu0 0.0
    %1931 = vmatpush1.msra.mxu0 0.0
    %1932 = vmatprep.subr.mxu0 0.0
    %1933 = vmatpush1.msra.mxu0 0.0
    %1934 = vmatprep.subr.mxu0 0.0
    %1935 = vmatpush1.msra.mxu0 0.0
    %1936 = vmatprep.subr.mxu0 0.0
    %1937 = vmatpush1.msra.mxu0 0.0
    %1938 = vmatprep.subr.mxu0 0.0
    %1939 = vmatpush1.msra.mxu0 0.0
    %1940 = vmatprep.subr.mxu0 0.0
    %1941 = vmatpush1.msra.mxu0 0.0
    %1942 = vmatprep.subr.mxu0 0.0
    %1943 = vmatpush1.msra.mxu0 0.0
    %1944 = vmatprep.subr.mxu0 0.0
    %1945 = vmatpush1.msra.mxu0 %v1671
    %1946 = vmatprep.subr.mxu0 0.0
    %1947 = vmatpush1.msra.mxu0 %v1668
    %1948 = vmatprep.subr.mxu0 0.0
    %1949 = vmatpush1.msra.mxu0 %v1665
    %1950 = vmatprep.subr.mxu0 0.0
    %1951 = vmatpush1.msra.mxu0 %v1662
    %1952 = vmatprep.subr.mxu0 0.0
    %1953 = vmatpush2.msra.mxu0 0.0
    %1954 = vmatprep.subr.mxu0 0.0
    %1955 = vmatpush2.msra.mxu0 0.0
    %1956 = vmatprep.subr.mxu0 0.0
    %1957 = vmatpush2.msra.mxu0 0.0
    %1958 = vmatprep.subr.mxu0 0.0
    %1959 = vmatpush2.msra.mxu0 0.0
    %1960 = vmatprep.subr.mxu0 0.0
    %1961 = vmatpush2.msra.mxu0 0.0
    %1962 = vmatprep.subr.mxu0 0.0
    %1963 = vmatpush2.msra.mxu0 0.0
    %1964 = vmatprep.subr.mxu0 0.0
    %1965 = vmatpush2.msra.mxu0 0.0
    %1966 = vmatprep.subr.mxu0 0.0
    %1967 = vmatpush2.msra.mxu0 0.0
    %1968 = vmatprep.subr.mxu0 0.0
    %1969 = vmatpush2.msra.mxu0 0.0
    %1970 = vmatprep.subr.mxu0 0.0
    %1971 = vmatpush2.msra.mxu0 0.0
    %1972 = vmatprep.subr.mxu0 0.0
    %1973 = vmatpush2.msra.mxu0 0.0
    %1974 = vmatprep.subr.mxu0 0.0
    %1975 = vmatpush2.msra.mxu0 0.0
    %1976 = vmatprep.subr.mxu0 0.0
    %1977 = vmatpush2.msra.mxu0 0.0
    %1978 = vmatprep.subr.mxu0 0.0
    %1979 = vmatpush2.msra.mxu0 0.0
    %1980 = vmatprep.subr.mxu0 0.0
    %1981 = vmatpush2.msra.mxu0 0.0
    %1982 = vmatprep.subr.mxu0 0.0
    %1983 = vmatpush2.msra.mxu0 0.0
    %1984 = vmatprep.mubr.f32.mxu0 0.0
    %1985 = vmatmul.mubr.f32.gmra.mxu0 %v240
    %v1986 = vpop.f32.mrf.mxu0
    %v1987 = vadd.f32 0.0, %v1986
    %v1988 = vpop.f32.mrf.mxu0
    %1989 = vdwg.mxu0
    %v1990 = vadd.f32 %v1764, %v1916
    %v1991 = vxor.u32 %v1990, 2147483648
    %v1992 = vmul.f32 %v1991, 1.442695
    %v1993 = vpow.pop %v1992
    %v1994 = vadd.f32 %v1993, 1.0
    %v1995 = vrcp.pop %v1994
    %v1996 = vmul.f32 1.0, %v1995
    %v1997 = vadd.f32 %v1766, %v1918
    %v1998 = vxor.u32 %v1997, 2147483648
    %v1999 = vmul.f32 %v1998, 1.442695
    %v2000 = vpow.pop %v1999
    %v2001 = vadd.f32 %v2000, 1.0
    %v2002 = vrcp.pop %v2001
    %v2003 = vmul.f32 1.0, %v2002
    %v2004 = vadd.f32 %v1987, %v1674
    %v2005 = vmul.f32 %v1996, %v2004
    %v2006 = vadd.f32 %v1841, %v2005
    %v2007 = vtanh.pop %v2006
    %v2008 = vsub.f32 1.0, %v2003
    %v2009 = vmul.f32 %v2008, %v2007
    %v2010 = vmul.f32 %v2003, 0.0
    %v2011 = vadd.f32 %v2009, %v2010
    %v2013 = vsel %vm238, %v2011, 0
    %2015 = vmatprep.subr.mxu0 0.0
    %2016 = vmatpush1.msra.mxu0 0.0
    %2017 = vmatprep.subr.mxu0 0.0
    %2018 = vmatpush1.msra.mxu0 0.0
    %2019 = vmatprep.subr.mxu0 0.0
    %2020 = vmatpush1.msra.mxu0 0.0
    %2021 = vmatprep.subr.mxu0 0.0
    %2022 = vmatpush1.msra.mxu0 0.0
    %2023 = vmatprep.subr.mxu0 0.0
    %2024 = vmatpush1.msra.mxu0 0.0
    %2025 = vmatprep.subr.mxu0 0.0
    %2026 = vmatpush1.msra.mxu0 0.0
    %2027 = vmatprep.subr.mxu0 0.0
    %2028 = vmatpush1.msra.mxu0 0.0
    %2029 = vmatprep.subr.mxu0 0.0
    %2030 = vmatpush1.msra.mxu0 0.0
    %2031 = vmatprep.subr.mxu0 0.0
    %2032 = vmatpush1.msra.mxu0 0.0
    %2033 = vmatprep.subr.mxu0 0.0
    %2034 = vmatpush1.msra.mxu0 0.0
    %2035 = vmatprep.subr.mxu0 0.0
    %2036 = vmatpush1.msra.mxu0 0.0
    %2037 = vmatprep.subr.mxu0 0.0
    %2038 = vmatpush1.msra.mxu0 0.0
    %2039 = vmatprep.subr.mxu0 %v1670
    %2040 = vmatpush1.msra.mxu0 %v1669
    %2041 = vmatprep.subr.mxu0 %v1667
    %2042 = vmatpush1.msra.mxu0 %v1666
    %2043 = vmatprep.subr.mxu0 %v1664
    %2044 = vmatpush1.msra.mxu0 %v1663
    %2045 = vmatprep.subr.mxu0 %v1661
    %2046 = vmatpush1.msra.mxu0 %v1660
    %2047 = vmatprep.subr.mxu0 0.0
    %2048 = vmatpush2.msra.mxu0 0.0
    %2049 = vmatprep.subr.mxu0 0.0
    %2050 = vmatpush2.msra.mxu0 0.0
    %2051 = vmatprep.subr.mxu0 0.0
    %2052 = vmatpush2.msra.mxu0 0.0
    %2053 = vmatprep.subr.mxu0 0.0
    %2054 = vmatpush2.msra.mxu0 0.0
    %2055 = vmatprep.subr.mxu0 0.0
    %2056 = vmatpush2.msra.mxu0 0.0
    %2057 = vmatprep.subr.mxu0 0.0
    %2058 = vmatpush2.msra.mxu0 0.0
    %2059 = vmatprep.subr.mxu0 0.0
    %2060 = vmatpush2.msra.mxu0 0.0
    %2061 = vmatprep.subr.mxu0 0.0
    %2062 = vmatpush2.msra.mxu0 0.0
    %2063 = vmatprep.subr.mxu0 0.0
    %2064 = vmatpush2.msra.mxu0 0.0
    %2065 = vmatprep.subr.mxu0 0.0
    %2066 = vmatpush2.msra.mxu0 0.0
    %2067 = vmatprep.subr.mxu0 0.0
    %2068 = vmatpush2.msra.mxu0 0.0
    %2069 = vmatprep.subr.mxu0 0.0
    %2070 = vmatpush2.msra.mxu0 0.0
    %2071 = vmatprep.subr.mxu0 0.0
    %2072 = vmatpush2.msra.mxu0 0.0
    %2073 = vmatprep.subr.mxu0 0.0
    %2074 = vmatpush2.msra.mxu0 0.0
    %2075 = vmatprep.subr.mxu0 0.0
    %2076 = vmatpush2.msra.mxu0 0.0
    %2077 = vmatprep.subr.mxu0 0.0
    %2078 = vmatpush2.msra.mxu0 0.0
    %2079 = vmatprep.mubr.f32.mxu0 0.0
    %2080 = vmatmul.mubr.f32.gmra.mxu0 %v2013
    %v2081 = vpop.f32.mrf.mxu0
    %v2082 = vadd.f32 0.0, %v2081
    %v2083 = vpop.f32.mrf.mxu0
    %v2084 = vadd.f32 0.0, %v2083
    %2085 = vdwg.mxu0
    %2086 = vmatprep.subr.mxu0 0.0
    %2087 = vmatpush1.msra.mxu0 0.0
    %2088 = vmatprep.subr.mxu0 0.0
    %2089 = vmatpush1.msra.mxu0 0.0
    %2090 = vmatprep.subr.mxu0 0.0
    %2091 = vmatpush1.msra.mxu0 0.0
    %2092 = vmatprep.subr.mxu0 0.0
    %2093 = vmatpush1.msra.mxu0 0.0
    %2094 = vmatprep.subr.mxu0 0.0
    %2095 = vmatpush1.msra.mxu0 0.0
    %2096 = vmatprep.subr.mxu0 0.0
    %2097 = vmatpush1.msra.mxu0 0.0
    %2098 = vmatprep.subr.mxu0 0.0
    %2099 = vmatpush1.msra.mxu0 0.0
    %2100 = vmatprep.subr.mxu0 0.0
    %2101 = vmatpush1.msra.mxu0 0.0
    %2102 = vmatprep.subr.mxu0 0.0
    %2103 = vmatpush1.msra.mxu0 0.0
    %2104 = vmatprep.subr.mxu0 0.0
    %2105 = vmatpush1.msra.mxu0 0.0
    %2106 = vmatprep.subr.mxu0 0.0
    %2107 = vmatpush1.msra.mxu0 0.0
    %2108 = vmatprep.subr.mxu0 0.0
    %2109 = vmatpush1.msra.mxu0 0.0
    %2110 = vmatprep.subr.mxu0 0.0
    %2111 = vmatpush1.msra.mxu0 %v1671
    %2112 = vmatprep.subr.mxu0 0.0
    %2113 = vmatpush1.msra.mxu0 %v1668
    %2114 = vmatprep.subr.mxu0 0.0
    %2115 = vmatpush1.msra.mxu0 %v1665
    %2116 = vmatprep.subr.mxu0 0.0
    %2117 = vmatpush1.msra.mxu0 %v1662
    %2118 = vmatprep.subr.mxu0 0.0
    %2119 = vmatpush2.msra.mxu0 0.0
    %2120 = vmatprep.subr.mxu0 0.0
    %2121 = vmatpush2.msra.mxu0 0.0
    %2122 = vmatprep.subr.mxu0 0.0
    %2123 = vmatpush2.msra.mxu0 0.0
    %2124 = vmatprep.subr.mxu0 0.0
    %2125 = vmatpush2.msra.mxu0 0.0
    %2126 = vmatprep.subr.mxu0 0.0
    %2127 = vmatpush2.msra.mxu0 0.0
    %2128 = vmatprep.subr.mxu0 0.0
    %2129 = vmatpush2.msra.mxu0 0.0
    %2130 = vmatprep.subr.mxu0 0.0
    %2131 = vmatpush2.msra.mxu0 0.0
    %2132 = vmatprep.subr.mxu0 0.0
    %2133 = vmatpush2.msra.mxu0 0.0
    %2134 = vmatprep.subr.mxu0 0.0
    %2135 = vmatpush2.msra.mxu0 0.0
    %2136 = vmatprep.subr.mxu0 0.0
    %2137 = vmatpush2.msra.mxu0 0.0
    %2138 = vmatprep.subr.mxu0 0.0
    %2139 = vmatpush2.msra.mxu0 0.0
    %2140 = vmatprep.subr.mxu0 0.0
    %2141 = vmatpush2.msra.mxu0 0.0
    %2142 = vmatprep.subr.mxu0 0.0
    %2143 = vmatpush2.msra.mxu0 0.0
    %2144 = vmatprep.subr.mxu0 0.0
    %2145 = vmatpush2.msra.mxu0 0.0
    %2146 = vmatprep.subr.mxu0 0.0
    %2147 = vmatpush2.msra.mxu0 0.0
    %2148 = vmatprep.subr.mxu0 0.0
    %2149 = vmatpush2.msra.mxu0 0.0
    %2150 = vmatprep.mubr.f32.mxu0 0.0
    %2151 = vmatmul.mubr.f32.gmra.mxu0 %v2013
    %v2152 = vpop.f32.mrf.mxu0
    %v2153 = vadd.f32 0.0, %v2152
    %v2154 = vpop.f32.mrf.mxu0
    %2155 = vdwg.mxu0
    %v2157 = vrot.slane %v2082, 6
    %v2159 = vadd.f32 %v1764, %v2157
    %v2160 = vxor.u32 %v2159, 2147483648
    %v2161 = vmul.f32 %v2160, 1.442695
    %v2162 = vpow.pop %v2161
    %v2163 = vadd.f32 %v2162, 1.0
    %v2164 = vrcp.pop %v2163
    %v2165 = vmul.f32 1.0, %v2164
    %v2167 = vrot.slane %v2084, 6
    %v2169 = vadd.f32 %v1766, %v2167
    %v2170 = vxor.u32 %v2169, 2147483648
    %v2171 = vmul.f32 %v2170, 1.442695
    %v2172 = vpow.pop %v2171
    %v2173 = vadd.f32 %v2172, 1.0
    %v2174 = vrcp.pop %v2173
    %v2175 = vmul.f32 1.0, %v2174
    %v2176 = vadd.f32 %v2153, %v1674
    %v2178 = vrot.slane %v2176, 6
    %v2180 = vmul.f32 %v2165, %v2178
    %v2181 = vadd.f32 %v1841, %v2180
    %v2182 = vtanh.pop %v2181
    %v2183 = vsub.f32 1.0, %v2175
    %v2184 = vmul.f32 %v2183, %v2182
    %v2185 = vrot.slane %v2011, 6
    %v2187 = vmul.f32 %v2175, %v2185
    %v2188 = vadd.f32 %v2184, %v2187
    %v2190 = vrot.slane %v2188, 2
    %v2191 = vsel %vm238, %v2190, 0
    %2193 = vmatprep.subr.mxu0 0.0
    %2194 = vmatpush1.msra.mxu0 0.0
    %2195 = vmatprep.subr.mxu0 0.0
    %2196 = vmatpush1.msra.mxu0 0.0
    %2197 = vmatprep.subr.mxu0 0.0
    %2198 = vmatpush1.msra.mxu0 0.0
    %2199 = vmatprep.subr.mxu0 0.0
    %2200 = vmatpush1.msra.mxu0 0.0
    %2201 = vmatprep.subr.mxu0 0.0
    %2202 = vmatpush1.msra.mxu0 0.0
    %2203 = vmatprep.subr.mxu0 0.0
    %2204 = vmatpush1.msra.mxu0 0.0
    %2205 = vmatprep.subr.mxu0 0.0
    %2206 = vmatpush1.msra.mxu0 0.0
    %2207 = vmatprep.subr.mxu0 0.0
    %2208 = vmatpush1.msra.mxu0 0.0
    %2209 = vmatprep.subr.mxu0 0.0
    %2210 = vmatpush1.msra.mxu0 0.0
    %2211 = vmatprep.subr.mxu0 0.0
    %2212 = vmatpush1.msra.mxu0 0.0
    %2213 = vmatprep.subr.mxu0 0.0
    %2214 = vmatpush1.msra.mxu0 0.0
    %2215 = vmatprep.subr.mxu0 0.0
    %2216 = vmatpush1.msra.mxu0 0.0
    %2217 = vmatprep.subr.mxu0 %v1670
    %2218 = vmatpush1.msra.mxu0 %v1669
    %2219 = vmatprep.subr.mxu0 %v1667
    %2220 = vmatpush1.msra.mxu0 %v1666
    %2221 = vmatprep.subr.mxu0 %v1664
    %2222 = vmatpush1.msra.mxu0 %v1663
    %2223 = vmatprep.subr.mxu0 %v1661
    %2224 = vmatpush1.msra.mxu0 %v1660
    %2225 = vmatprep.subr.mxu0 0.0
    %2226 = vmatpush2.msra.mxu0 0.0
    %2227 = vmatprep.subr.mxu0 0.0
    %2228 = vmatpush2.msra.mxu0 0.0
    %2229 = vmatprep.subr.mxu0 0.0
    %2230 = vmatpush2.msra.mxu0 0.0
    %2231 = vmatprep.subr.mxu0 0.0
    %2232 = vmatpush2.msra.mxu0 0.0
    %2233 = vmatprep.subr.mxu0 0.0
    %2234 = vmatpush2.msra.mxu0 0.0
    %2235 = vmatprep.subr.mxu0 0.0
    %2236 = vmatpush2.msra.mxu0 0.0
    %2237 = vmatprep.subr.mxu0 0.0
    %2238 = vmatpush2.msra.mxu0 0.0
    %2239 = vmatprep.subr.mxu0 0.0
    %2240 = vmatpush2.msra.mxu0 0.0
    %2241 = vmatprep.subr.mxu0 0.0
    %2242 = vmatpush2.msra.mxu0 0.0
    %2243 = vmatprep.subr.mxu0 0.0
    %2244 = vmatpush2.msra.mxu0 0.0
    %2245 = vmatprep.subr.mxu0 0.0
    %2246 = vmatpush2.msra.mxu0 0.0
    %2247 = vmatprep.subr.mxu0 0.0
    %2248 = vmatpush2.msra.mxu0 0.0
    %2249 = vmatprep.subr.mxu0 0.0
    %2250 = vmatpush2.msra.mxu0 0.0
    %2251 = vmatprep.subr.mxu0 0.0
    %2252 = vmatpush2.msra.mxu0 0.0
    %2253 = vmatprep.subr.mxu0 0.0
    %2254 = vmatpush2.msra.mxu0 0.0
    %2255 = vmatprep.subr.mxu0 0.0
    %2256 = vmatpush2.msra.mxu0 0.0
    %2257 = vmatprep.mubr.f32.mxu0 0.0
    %2258 = vmatmul.mubr.f32.gmra.mxu0 %v2191
    %v2259 = vpop.f32.mrf.mxu0
    %v2260 = vadd.f32 0.0, %v2259
    %v2261 = vpop.f32.mrf.mxu0
    %v2262 = vadd.f32 0.0, %v2261
    %2263 = vdwg.mxu0
    %2264 = vmatprep.subr.mxu0 0.0
    %2265 = vmatpush1.msra.mxu0 0.0
    %2266 = vmatprep.subr.mxu0 0.0
    %2267 = vmatpush1.msra.mxu0 0.0
    %2268 = vmatprep.subr.mxu0 0.0
    %2269 = vmatpush1.msra.mxu0 0.0
    %2270 = vmatprep.subr.mxu0 0.0
    %2271 = vmatpush1.msra.mxu0 0.0
    %2272 = vmatprep.subr.mxu0 0.0
    %2273 = vmatpush1.msra.mxu0 0.0
    %2274 = vmatprep.subr.mxu0 0.0
    %2275 = vmatpush1.msra.mxu0 0.0
    %2276 = vmatprep.subr.mxu0 0.0
    %2277 = vmatpush1.msra.mxu0 0.0
    %2278 = vmatprep.subr.mxu0 0.0
    %2279 = vmatpush1.msra.mxu0 0.0
    %2280 = vmatprep.subr.mxu0 0.0
    %2281 = vmatpush1.msra.mxu0 0.0
    %2282 = vmatprep.subr.mxu0 0.0
    %2283 = vmatpush1.msra.mxu0 0.0
    %2284 = vmatprep.subr.mxu0 0.0
    %2285 = vmatpush1.msra.mxu0 0.0
    %2286 = vmatprep.subr.mxu0 0.0
    %2287 = vmatpush1.msra.mxu0 0.0
    %2288 = vmatprep.subr.mxu0 0.0
    %2289 = vmatpush1.msra.mxu0 %v1671
    %2290 = vmatprep.subr.mxu0 0.0
    %2291 = vmatpush1.msra.mxu0 %v1668
    %2292 = vmatprep.subr.mxu0 0.0
    %2293 = vmatpush1.msra.mxu0 %v1665
    %2294 = vmatprep.subr.mxu0 0.0
    %2295 = vmatpush1.msra.mxu0 %v1662
    %2296 = vmatprep.subr.mxu0 0.0
    %2297 = vmatpush2.msra.mxu0 0.0
    %2298 = vmatprep.subr.mxu0 0.0
    %2299 = vmatpush2.msra.mxu0 0.0
    %2300 = vmatprep.subr.mxu0 0.0
    %2301 = vmatpush2.msra.mxu0 0.0
    %2302 = vmatprep.subr.mxu0 0.0
    %2303 = vmatpush2.msra.mxu0 0.0
    %2304 = vmatprep.subr.mxu0 0.0
    %2305 = vmatpush2.msra.mxu0 0.0
    %2306 = vmatprep.subr.mxu0 0.0
    %2307 = vmatpush2.msra.mxu0 0.0
    %2308 = vmatprep.subr.mxu0 0.0
    %2309 = vmatpush2.msra.mxu0 0.0
    %2310 = vmatprep.subr.mxu0 0.0
    %2311 = vmatpush2.msra.mxu0 0.0
    %2312 = vmatprep.subr.mxu0 0.0
    %2313 = vmatpush2.msra.mxu0 0.0
    %2314 = vmatprep.subr.mxu0 0.0
    %2315 = vmatpush2.msra.mxu0 0.0
    %2316 = vmatprep.subr.mxu0 0.0
    %2317 = vmatpush2.msra.mxu0 0.0
    %2318 = vmatprep.subr.mxu0 0.0
    %2319 = vmatpush2.msra.mxu0 0.0
    %2320 = vmatprep.subr.mxu0 0.0
    %2321 = vmatpush2.msra.mxu0 0.0
    %2322 = vmatprep.subr.mxu0 0.0
    %2323 = vmatpush2.msra.mxu0 0.0
    %2324 = vmatprep.subr.mxu0 0.0
    %2325 = vmatpush2.msra.mxu0 0.0
    %2326 = vmatprep.subr.mxu0 0.0
    %2327 = vmatpush2.msra.mxu0 0.0
    %2328 = vmatprep.mubr.f32.mxu0 0.0
    %2329 = vmatmul.mubr.f32.gmra.mxu0 %v2191
    %v2330 = vpop.f32.mrf.mxu0
    %v2331 = vadd.f32 0.0, %v2330
    %v2332 = vpop.f32.mrf.mxu0
    %2333 = vdwg.mxu0
    %v2335 = vrot.slane %v2260, 4
    %v2337 = vadd.f32 %v1764, %v2335
    %v2338 = vxor.u32 %v2337, 2147483648
    %v2339 = vmul.f32 %v2338, 1.442695
    %v2340 = vpow.pop %v2339
    %v2341 = vadd.f32 %v2340, 1.0
    %v2342 = vrcp.pop %v2341
    %v2343 = vmul.f32 1.0, %v2342
    %v2345 = vrot.slane %v2262, 4
    %v2347 = vadd.f32 %v1766, %v2345
    %v2348 = vxor.u32 %v2347, 2147483648
    %v2349 = vmul.f32 %v2348, 1.442695
    %v2350 = vpow.pop %v2349
    %v2351 = vadd.f32 %v2350, 1.0
    %v2352 = vrcp.pop %v2351
    %v2353 = vmul.f32 1.0, %v2352
    %v2354 = vadd.f32 %v2331, %v1674
    %v2356 = vrot.slane %v2354, 4
    %v2358 = vmul.f32 %v2343, %v2356
    %v2359 = vadd.f32 %v1841, %v2358
    %v2360 = vtanh.pop %v2359
    %v2361 = vsub.f32 1.0, %v2353
    %v2362 = vmul.f32 %v2361, %v2360
    %v2363 = vrot.slane %v2188, 6
    %v2365 = vmul.f32 %v2353, %v2363
    %v2366 = vadd.f32 %v2362, %v2365
    %v2368 = vrot.slane %v2366, 4
    %v2369 = vsel %vm238, %v2368, 0
    %2371 = vmatprep.subr.mxu0 0.0
    %2372 = vmatpush1.msra.mxu0 0.0
    %2373 = vmatprep.subr.mxu0 0.0
    %2374 = vmatpush1.msra.mxu0 0.0
    %2375 = vmatprep.subr.mxu0 0.0
    %2376 = vmatpush1.msra.mxu0 0.0
    %2377 = vmatprep.subr.mxu0 0.0
    %2378 = vmatpush1.msra.mxu0 0.0
    %2379 = vmatprep.subr.mxu0 0.0
    %2380 = vmatpush1.msra.mxu0 0.0
    %2381 = vmatprep.subr.mxu0 0.0
    %2382 = vmatpush1.msra.mxu0 0.0
    %2383 = vmatprep.subr.mxu0 0.0
    %2384 = vmatpush1.msra.mxu0 0.0
    %2385 = vmatprep.subr.mxu0 0.0
    %2386 = vmatpush1.msra.mxu0 0.0
    %2387 = vmatprep.subr.mxu0 0.0
    %2388 = vmatpush1.msra.mxu0 0.0
    %2389 = vmatprep.subr.mxu0 0.0
    %2390 = vmatpush1.msra.mxu0 0.0
    %2391 = vmatprep.subr.mxu0 0.0
    %2392 = vmatpush1.msra.mxu0 0.0
    %2393 = vmatprep.subr.mxu0 0.0
    %2394 = vmatpush1.msra.mxu0 0.0
    %2395 = vmatprep.subr.mxu0 %v1670
    %2396 = vmatpush1.msra.mxu0 %v1669
    %2397 = vmatprep.subr.mxu0 %v1667
    %2398 = vmatpush1.msra.mxu0 %v1666
    %2399 = vmatprep.subr.mxu0 %v1664
    %2400 = vmatpush1.msra.mxu0 %v1663
    %2401 = vmatprep.subr.mxu0 %v1661
    %2402 = vmatpush1.msra.mxu0 %v1660
    %2403 = vmatprep.subr.mxu0 0.0
    %2404 = vmatpush2.msra.mxu0 0.0
    %2405 = vmatprep.subr.mxu0 0.0
    %2406 = vmatpush2.msra.mxu0 0.0
    %2407 = vmatprep.subr.mxu0 0.0
    %2408 = vmatpush2.msra.mxu0 0.0
    %2409 = vmatprep.subr.mxu0 0.0
    %2410 = vmatpush2.msra.mxu0 0.0
    %2411 = vmatprep.subr.mxu0 0.0
    %2412 = vmatpush2.msra.mxu0 0.0
    %2413 = vmatprep.subr.mxu0 0.0
    %2414 = vmatpush2.msra.mxu0 0.0
    %2415 = vmatprep.subr.mxu0 0.0
    %2416 = vmatpush2.msra.mxu0 0.0
    %2417 = vmatprep.subr.mxu0 0.0
    %2418 = vmatpush2.msra.mxu0 0.0
    %2419 = vmatprep.subr.mxu0 0.0
    %2420 = vmatpush2.msra.mxu0 0.0
    %2421 = vmatprep.subr.mxu0 0.0
    %2422 = vmatpush2.msra.mxu0 0.0
    %2423 = vmatprep.subr.mxu0 0.0
    %2424 = vmatpush2.msra.mxu0 0.0
    %2425 = vmatprep.subr.mxu0 0.0
    %2426 = vmatpush2.msra.mxu0 0.0
    %2427 = vmatprep.subr.mxu0 0.0
    %2428 = vmatpush2.msra.mxu0 0.0
    %2429 = vmatprep.subr.mxu0 0.0
    %2430 = vmatpush2.msra.mxu0 0.0
    %2431 = vmatprep.subr.mxu0 0.0
    %2432 = vmatpush2.msra.mxu0 0.0
    %2433 = vmatprep.subr.mxu0 0.0
    %2434 = vmatpush2.msra.mxu0 0.0
    %2435 = vmatprep.mubr.f32.mxu0 0.0
    %2436 = vmatmul.mubr.f32.gmra.mxu0 %v2369
    %v2437 = vpop.f32.mrf.mxu0
    %v2438 = vadd.f32 0.0, %v2437
    %v2439 = vpop.f32.mrf.mxu0
    %v2440 = vadd.f32 0.0, %v2439
    %2441 = vdwg.mxu0
    %2442 = vmatprep.subr.mxu0 0.0
    %2443 = vmatpush1.msra.mxu0 0.0
    %2444 = vmatprep.subr.mxu0 0.0
    %2445 = vmatpush1.msra.mxu0 0.0
    %2446 = vmatprep.subr.mxu0 0.0
    %2447 = vmatpush1.msra.mxu0 0.0
    %2448 = vmatprep.subr.mxu0 0.0
    %2449 = vmatpush1.msra.mxu0 0.0
    %2450 = vmatprep.subr.mxu0 0.0
    %2451 = vmatpush1.msra.mxu0 0.0
    %2452 = vmatprep.subr.mxu0 0.0
    %2453 = vmatpush1.msra.mxu0 0.0
    %2454 = vmatprep.subr.mxu0 0.0
    %2455 = vmatpush1.msra.mxu0 0.0
    %2456 = vmatprep.subr.mxu0 0.0
    %2457 = vmatpush1.msra.mxu0 0.0
    %2458 = vmatprep.subr.mxu0 0.0
    %2459 = vmatpush1.msra.mxu0 0.0
    %2460 = vmatprep.subr.mxu0 0.0
    %2461 = vmatpush1.msra.mxu0 0.0
    %2462 = vmatprep.subr.mxu0 0.0
    %2463 = vmatpush1.msra.mxu0 0.0
    %2464 = vmatprep.subr.mxu0 0.0
    %2465 = vmatpush1.msra.mxu0 0.0
    %2466 = vmatprep.subr.mxu0 0.0
    %2467 = vmatpush1.msra.mxu0 %v1671
    %2468 = vmatprep.subr.mxu0 0.0
    %2469 = vmatpush1.msra.mxu0 %v1668
    %2470 = vmatprep.subr.mxu0 0.0
    %2471 = vmatpush1.msra.mxu0 %v1665
    %2472 = vmatprep.subr.mxu0 0.0
    %2473 = vmatpush1.msra.mxu0 %v1662
    %2474 = vmatprep.subr.mxu0 0.0
    %2475 = vmatpush2.msra.mxu0 0.0
    %2476 = vmatprep.subr.mxu0 0.0
    %2477 = vmatpush2.msra.mxu0 0.0
    %2478 = vmatprep.subr.mxu0 0.0
    %2479 = vmatpush2.msra.mxu0 0.0
    %2480 = vmatprep.subr.mxu0 0.0
    %2481 = vmatpush2.msra.mxu0 0.0
    %2482 = vmatprep.subr.mxu0 0.0
    %2483 = vmatpush2.msra.mxu0 0.0
    %2484 = vmatprep.subr.mxu0 0.0
    %2485 = vmatpush2.msra.mxu0 0.0
    %2486 = vmatprep.subr.mxu0 0.0
    %2487 = vmatpush2.msra.mxu0 0.0
    %2488 = vmatprep.subr.mxu0 0.0
    %2489 = vmatpush2.msra.mxu0 0.0
    %2490 = vmatprep.subr.mxu0 0.0
    %2491 = vmatpush2.msra.mxu0 0.0
    %2492 = vmatprep.subr.mxu0 0.0
    %2493 = vmatpush2.msra.mxu0 0.0
    %2494 = vmatprep.subr.mxu0 0.0
    %2495 = vmatpush2.msra.mxu0 0.0
    %2496 = vmatprep.subr.mxu0 0.0
    %2497 = vmatpush2.msra.mxu0 0.0
    %2498 = vmatprep.subr.mxu0 0.0
    %2499 = vmatpush2.msra.mxu0 0.0
    %2500 = vmatprep.subr.mxu0 0.0
    %2501 = vmatpush2.msra.mxu0 0.0
    %2502 = vmatprep.subr.mxu0 0.0
    %2503 = vmatpush2.msra.mxu0 0.0
    %2504 = vmatprep.subr.mxu0 0.0
    %2505 = vmatpush2.msra.mxu0 0.0
    %2506 = vmatprep.mubr.f32.mxu0 0.0
    %2507 = vmatmul.mubr.f32.gmra.mxu0 %v2369
    %v2508 = vpop.f32.mrf.mxu0
    %v2509 = vadd.f32 0.0, %v2508
    %v2510 = vpop.f32.mrf.mxu0
    %2511 = vdwg.mxu0
    %v2513 = vrot.slane %v2438, 2
    %v2515 = vadd.f32 %v1764, %v2513
    %v2516 = vxor.u32 %v2515, 2147483648
    %v2517 = vmul.f32 %v2516, 1.442695
    %v2518 = vpow.pop %v2517
    %v2519 = vadd.f32 %v2518, 1.0
    %v2520 = vrcp.pop %v2519
    %v2521 = vmul.f32 1.0, %v2520
    %v2523 = vrot.slane %v2440, 2
    %v2525 = vadd.f32 %v1766, %v2523
    %v2526 = vxor.u32 %v2525, 2147483648
    %v2527 = vmul.f32 %v2526, 1.442695
    %v2528 = vpow.pop %v2527
    %v2529 = vadd.f32 %v2528, 1.0
    %v2530 = vrcp.pop %v2529
    %v2531 = vmul.f32 1.0, %v2530
    %v2532 = vadd.f32 %v2509, %v1674
    %v2534 = vrot.slane %v2532, 2
    %v2536 = vmul.f32 %v2521, %v2534
    %v2537 = vadd.f32 %v1841, %v2536
    %v2538 = vtanh.pop %v2537
    %v2539 = vsub.f32 1.0, %v2531
    %v2540 = vmul.f32 %v2539, %v2538
    %v2541 = vrot.slane %v2366, 6
    %v2543 = vmul.f32 %v2531, %v2541
    %v2544 = vadd.f32 %v2540, %v2543
    %v2546 = vrot.slane %v2544, 6
    %v2547 = vsel %vm238, %v2546, 0
    %2549 = vmatprep.subr.mxu0 0.0
    %2550 = vmatpush1.msra.mxu0 0.0
    %2551 = vmatprep.subr.mxu0 0.0
    %2552 = vmatpush1.msra.mxu0 0.0
    %2553 = vmatprep.subr.mxu0 0.0
    %2554 = vmatpush1.msra.mxu0 0.0
    %2555 = vmatprep.subr.mxu0 0.0
    %2556 = vmatpush1.msra.mxu0 0.0
    %2557 = vmatprep.subr.mxu0 0.0
    %2558 = vmatpush1.msra.mxu0 0.0
    %2559 = vmatprep.subr.mxu0 0.0
    %2560 = vmatpush1.msra.mxu0 0.0
    %2561 = vmatprep.subr.mxu0 0.0
    %2562 = vmatpush1.msra.mxu0 0.0
    %2563 = vmatprep.subr.mxu0 0.0
    %2564 = vmatpush1.msra.mxu0 0.0
    %2565 = vmatprep.subr.mxu0 0.0
    %2566 = vmatpush1.msra.mxu0 0.0
    %2567 = vmatprep.subr.mxu0 0.0
    %2568 = vmatpush1.msra.mxu0 0.0
    %2569 = vmatprep.subr.mxu0 0.0
    %2570 = vmatpush1.msra.mxu0 0.0
    %2571 = vmatprep.subr.mxu0 0.0
    %2572 = vmatpush1.msra.mxu0 0.0
    %2573 = vmatprep.subr.mxu0 %v1670
    %2574 = vmatpush1.msra.mxu0 %v1669
    %2575 = vmatprep.subr.mxu0 %v1667
    %2576 = vmatpush1.msra.mxu0 %v1666
    %2577 = vmatprep.subr.mxu0 %v1664
    %2578 = vmatpush1.msra.mxu0 %v1663
    %2579 = vmatprep.subr.mxu0 %v1661
    %2580 = vmatpush1.msra.mxu0 %v1660
    %2581 = vmatprep.subr.mxu0 0.0
    %2582 = vmatpush2.msra.mxu0 0.0
    %2583 = vmatprep.subr.mxu0 0.0
    %2584 = vmatpush2.msra.mxu0 0.0
    %2585 = vmatprep.subr.mxu0 0.0
    %2586 = vmatpush2.msra.mxu0 0.0
    %2587 = vmatprep.subr.mxu0 0.0
    %2588 = vmatpush2.msra.mxu0 0.0
    %2589 = vmatprep.subr.mxu0 0.0
    %2590 = vmatpush2.msra.mxu0 0.0
    %2591 = vmatprep.subr.mxu0 0.0
    %2592 = vmatpush2.msra.mxu0 0.0
    %2593 = vmatprep.subr.mxu0 0.0
    %2594 = vmatpush2.msra.mxu0 0.0
    %2595 = vmatprep.subr.mxu0 0.0
    %2596 = vmatpush2.msra.mxu0 0.0
    %2597 = vmatprep.subr.mxu0 0.0
    %2598 = vmatpush2.msra.mxu0 0.0
    %2599 = vmatprep.subr.mxu0 0.0
    %2600 = vmatpush2.msra.mxu0 0.0
    %2601 = vmatprep.subr.mxu0 0.0
    %2602 = vmatpush2.msra.mxu0 0.0
    %2603 = vmatprep.subr.mxu0 0.0
    %2604 = vmatpush2.msra.mxu0 0.0
    %2605 = vmatprep.subr.mxu0 0.0
    %2606 = vmatpush2.msra.mxu0 0.0
    %2607 = vmatprep.subr.mxu0 0.0
    %2608 = vmatpush2.msra.mxu0 0.0
    %2609 = vmatprep.subr.mxu0 0.0
    %2610 = vmatpush2.msra.mxu0 0.0
    %2611 = vmatprep.subr.mxu0 0.0
    %2612 = vmatpush2.msra.mxu0 0.0
    %2613 = vmatprep.mubr.f32.mxu0 0.0
    %2614 = vmatmul.mubr.f32.gmra.mxu0 %v2547
    %v2615 = vpop.f32.mrf.mxu0
    %v2616 = vadd.f32 0.0, %v2615
    %v2617 = vpop.f32.mrf.mxu0
    %v2618 = vadd.f32 0.0, %v2617
    %2619 = vdwg.mxu0
    %2620 = vmatprep.subr.mxu0 0.0
    %2621 = vmatpush1.msra.mxu0 0.0
    %2622 = vmatprep.subr.mxu0 0.0
    %2623 = vmatpush1.msra.mxu0 0.0
    %2624 = vmatprep.subr.mxu0 0.0
    %2625 = vmatpush1.msra.mxu0 0.0
    %2626 = vmatprep.subr.mxu0 0.0
    %2627 = vmatpush1.msra.mxu0 0.0
    %2628 = vmatprep.subr.mxu0 0.0
    %2629 = vmatpush1.msra.mxu0 0.0
    %2630 = vmatprep.subr.mxu0 0.0
    %2631 = vmatpush1.msra.mxu0 0.0
    %2632 = vmatprep.subr.mxu0 0.0
    %2633 = vmatpush1.msra.mxu0 0.0
    %2634 = vmatprep.subr.mxu0 0.0
    %2635 = vmatpush1.msra.mxu0 0.0
    %2636 = vmatprep.subr.mxu0 0.0
    %2637 = vmatpush1.msra.mxu0 0.0
    %2638 = vmatprep.subr.mxu0 0.0
    %2639 = vmatpush1.msra.mxu0 0.0
    %2640 = vmatprep.subr.mxu0 0.0
    %2641 = vmatpush1.msra.mxu0 0.0
    %2642 = vmatprep.subr.mxu0 0.0
    %2643 = vmatpush1.msra.mxu0 0.0
    %2644 = vmatprep.subr.mxu0 0.0
    %2645 = vmatpush1.msra.mxu0 %v1671
    %2646 = vmatprep.subr.mxu0 0.0
    %2647 = vmatpush1.msra.mxu0 %v1668
    %2648 = vmatprep.subr.mxu0 0.0
    %2649 = vmatpush1.msra.mxu0 %v1665
    %2650 = vmatprep.subr.mxu0 0.0
    %2651 = vmatpush1.msra.mxu0 %v1662
    %2652 = vmatprep.subr.mxu0 0.0
    %2653 = vmatpush2.msra.mxu0 0.0
    %2654 = vmatprep.subr.mxu0 0.0
    %2655 = vmatpush2.msra.mxu0 0.0
    %2656 = vmatprep.subr.mxu0 0.0
    %2657 = vmatpush2.msra.mxu0 0.0
    %2658 = vmatprep.subr.mxu0 0.0
    %2659 = vmatpush2.msra.mxu0 0.0
    %2660 = vmatprep.subr.mxu0 0.0
    %2661 = vmatpush2.msra.mxu0 0.0
    %2662 = vmatprep.subr.mxu0 0.0
    %2663 = vmatpush2.msra.mxu0 0.0
    %2664 = vmatprep.subr.mxu0 0.0
    %2665 = vmatpush2.msra.mxu0 0.0
    %2666 = vmatprep.subr.mxu0 0.0
    %2667 = vmatpush2.msra.mxu0 0.0
    %2668 = vmatprep.subr.mxu0 0.0
    %2669 = vmatpush2.msra.mxu0 0.0
    %2670 = vmatprep.subr.mxu0 0.0
    %2671 = vmatpush2.msra.mxu0 0.0
    %2672 = vmatprep.subr.mxu0 0.0
    %2673 = vmatpush2.msra.mxu0 0.0
    %2674 = vmatprep.subr.mxu0 0.0
    %2675 = vmatpush2.msra.mxu0 0.0
    %2676 = vmatprep.subr.mxu0 0.0
    %2677 = vmatpush2.msra.mxu0 0.0
    %2678 = vmatprep.subr.mxu0 0.0
    %2679 = vmatpush2.msra.mxu0 0.0
    %2680 = vmatprep.subr.mxu0 0.0
    %2681 = vmatpush2.msra.mxu0 0.0
    %2682 = vmatprep.subr.mxu0 0.0
    %2683 = vmatpush2.msra.mxu0 0.0
    %2684 = vmatprep.mubr.f32.mxu0 0.0
    %2685 = vmatmul.mubr.f32.gmra.mxu0 %v2547
    %v2686 = vpop.f32.mrf.mxu0
    %v2687 = vadd.f32 0.0, %v2686
    %v2688 = vpop.f32.mrf.mxu0
    %2689 = vdwg.mxu0
    %v2690 = vadd.f32 %v1770, %v2616
    %v2691 = vxor.u32 %v2690, 2147483648
    %v2692 = vmul.f32 %v2691, 1.442695
    %v2693 = vpow.pop %v2692
    %v2694 = vadd.f32 %v2693, 1.0
    %v2695 = vrcp.pop %v2694
    %v2696 = vmul.f32 1.0, %v2695
    %v2697 = vadd.f32 %v1772, %v2618
    %v2698 = vxor.u32 %v2697, 2147483648
    %v2699 = vmul.f32 %v2698, 1.442695
    %v2700 = vpow.pop %v2699
    %v2701 = vadd.f32 %v2700, 1.0
    %v2702 = vrcp.pop %v2701
    %v2703 = vmul.f32 1.0, %v2702
    %v2704 = vadd.f32 %v2687, %v1674
    %v2705 = vmul.f32 %v2696, %v2704
    %v2706 = vadd.f32 %v1846, %v2705
    %v2707 = vtanh.pop %v2706
    %v2708 = vsub.f32 1.0, %v2703
    %v2709 = vmul.f32 %v2708, %v2707
    %v2711 = vmul.f32 %v2703, %v2546
    %v2712 = vadd.f32 %v2709, %v2711
    %v2714 = vsel %vm238, %v2712, 0
    %2716 = vmatprep.subr.mxu0 0.0
    %2717 = vmatpush1.msra.mxu0 0.0
    %2718 = vmatprep.subr.mxu0 0.0
    %2719 = vmatpush1.msra.mxu0 0.0
    %2720 = vmatprep.subr.mxu0 0.0
    %2721 = vmatpush1.msra.mxu0 0.0
    %2722 = vmatprep.subr.mxu0 0.0
    %2723 = vmatpush1.msra.mxu0 0.0
    %2724 = vmatprep.subr.mxu0 0.0
    %2725 = vmatpush1.msra.mxu0 0.0
    %2726 = vmatprep.subr.mxu0 0.0
    %2727 = vmatpush1.msra.mxu0 0.0
    %2728 = vmatprep.subr.mxu0 0.0
    %2729 = vmatpush1.msra.mxu0 0.0
    %2730 = vmatprep.subr.mxu0 0.0
    %2731 = vmatpush1.msra.mxu0 0.0
    %2732 = vmatprep.subr.mxu0 0.0
    %2733 = vmatpush1.msra.mxu0 0.0
    %2734 = vmatprep.subr.mxu0 0.0
    %2735 = vmatpush1.msra.mxu0 0.0
    %2736 = vmatprep.subr.mxu0 0.0
    %2737 = vmatpush1.msra.mxu0 0.0
    %2738 = vmatprep.subr.mxu0 0.0
    %2739 = vmatpush1.msra.mxu0 0.0
    %2740 = vmatprep.subr.mxu0 %v1670
    %2741 = vmatpush1.msra.mxu0 %v1669
    %2742 = vmatprep.subr.mxu0 %v1667
    %2743 = vmatpush1.msra.mxu0 %v1666
    %2744 = vmatprep.subr.mxu0 %v1664
    %2745 = vmatpush1.msra.mxu0 %v1663
    %2746 = vmatprep.subr.mxu0 %v1661
    %2747 = vmatpush1.msra.mxu0 %v1660
    %2748 = vmatprep.subr.mxu0 0.0
    %2749 = vmatpush2.msra.mxu0 0.0
    %2750 = vmatprep.subr.mxu0 0.0
    %2751 = vmatpush2.msra.mxu0 0.0
    %2752 = vmatprep.subr.mxu0 0.0
    %2753 = vmatpush2.msra.mxu0 0.0
    %2754 = vmatprep.subr.mxu0 0.0
    %2755 = vmatpush2.msra.mxu0 0.0
    %2756 = vmatprep.subr.mxu0 0.0
    %2757 = vmatpush2.msra.mxu0 0.0
    %2758 = vmatprep.subr.mxu0 0.0
    %2759 = vmatpush2.msra.mxu0 0.0
    %2760 = vmatprep.subr.mxu0 0.0
    %2761 = vmatpush2.msra.mxu0 0.0
    %2762 = vmatprep.subr.mxu0 0.0
    %2763 = vmatpush2.msra.mxu0 0.0
    %2764 = vmatprep.subr.mxu0 0.0
    %2765 = vmatpush2.msra.mxu0 0.0
    %2766 = vmatprep.subr.mxu0 0.0
    %2767 = vmatpush2.msra.mxu0 0.0
    %2768 = vmatprep.subr.mxu0 0.0
    %2769 = vmatpush2.msra.mxu0 0.0
    %2770 = vmatprep.subr.mxu0 0.0
    %2771 = vmatpush2.msra.mxu0 0.0
    %2772 = vmatprep.subr.mxu0 0.0
    %2773 = vmatpush2.msra.mxu0 0.0
    %2774 = vmatprep.subr.mxu0 0.0
    %2775 = vmatpush2.msra.mxu0 0.0
    %2776 = vmatprep.subr.mxu0 0.0
    %2777 = vmatpush2.msra.mxu0 0.0
    %2778 = vmatprep.subr.mxu0 0.0
    %2779 = vmatpush2.msra.mxu0 0.0
    %2780 = vmatprep.mubr.f32.mxu0 0.0
    %2781 = vmatmul.mubr.f32.gmra.mxu0 %v2714
    %v2782 = vpop.f32.mrf.mxu0
    %v2783 = vadd.f32 0.0, %v2782
    %v2784 = vpop.f32.mrf.mxu0
    %v2785 = vadd.f32 0.0, %v2784
    %2786 = vdwg.mxu0
    %2787 = vmatprep.subr.mxu0 0.0
    %2788 = vmatpush1.msra.mxu0 0.0
    %2789 = vmatprep.subr.mxu0 0.0
    %2790 = vmatpush1.msra.mxu0 0.0
    %2791 = vmatprep.subr.mxu0 0.0
    %2792 = vmatpush1.msra.mxu0 0.0
    %2793 = vmatprep.subr.mxu0 0.0
    %2794 = vmatpush1.msra.mxu0 0.0
    %2795 = vmatprep.subr.mxu0 0.0
    %2796 = vmatpush1.msra.mxu0 0.0
    %2797 = vmatprep.subr.mxu0 0.0
    %2798 = vmatpush1.msra.mxu0 0.0
    %2799 = vmatprep.subr.mxu0 0.0
    %2800 = vmatpush1.msra.mxu0 0.0
    %2801 = vmatprep.subr.mxu0 0.0
    %2802 = vmatpush1.msra.mxu0 0.0
    %2803 = vmatprep.subr.mxu0 0.0
    %2804 = vmatpush1.msra.mxu0 0.0
    %2805 = vmatprep.subr.mxu0 0.0
    %2806 = vmatpush1.msra.mxu0 0.0
    %2807 = vmatprep.subr.mxu0 0.0
    %2808 = vmatpush1.msra.mxu0 0.0
    %2809 = vmatprep.subr.mxu0 0.0
    %2810 = vmatpush1.msra.mxu0 0.0
    %2811 = vmatprep.subr.mxu0 0.0
    %2812 = vmatpush1.msra.mxu0 %v1671
    %2813 = vmatprep.subr.mxu0 0.0
    %2814 = vmatpush1.msra.mxu0 %v1668
    %2815 = vmatprep.subr.mxu0 0.0
    %2816 = vmatpush1.msra.mxu0 %v1665
    %2817 = vmatprep.subr.mxu0 0.0
    %2818 = vmatpush1.msra.mxu0 %v1662
    %2819 = vmatprep.subr.mxu0 0.0
    %2820 = vmatpush2.msra.mxu0 0.0
    %2821 = vmatprep.subr.mxu0 0.0
    %2822 = vmatpush2.msra.mxu0 0.0
    %2823 = vmatprep.subr.mxu0 0.0
    %2824 = vmatpush2.msra.mxu0 0.0
    %2825 = vmatprep.subr.mxu0 0.0
    %2826 = vmatpush2.msra.mxu0 0.0
    %2827 = vmatprep.subr.mxu0 0.0
    %2828 = vmatpush2.msra.mxu0 0.0
    %2829 = vmatprep.subr.mxu0 0.0
    %2830 = vmatpush2.msra.mxu0 0.0
    %2831 = vmatprep.subr.mxu0 0.0
    %2832 = vmatpush2.msra.mxu0 0.0
    %2833 = vmatprep.subr.mxu0 0.0
    %2834 = vmatpush2.msra.mxu0 0.0
    %2835 = vmatprep.subr.mxu0 0.0
    %2836 = vmatpush2.msra.mxu0 0.0
    %2837 = vmatprep.subr.mxu0 0.0
    %2838 = vmatpush2.msra.mxu0 0.0
    %2839 = vmatprep.subr.mxu0 0.0
    %2840 = vmatpush2.msra.mxu0 0.0
    %2841 = vmatprep.subr.mxu0 0.0
    %2842 = vmatpush2.msra.mxu0 0.0
    %2843 = vmatprep.subr.mxu0 0.0
    %2844 = vmatpush2.msra.mxu0 0.0
    %2845 = vmatprep.subr.mxu0 0.0
    %2846 = vmatpush2.msra.mxu0 0.0
    %2847 = vmatprep.subr.mxu0 0.0
    %2848 = vmatpush2.msra.mxu0 0.0
    %2849 = vmatprep.subr.mxu0 0.0
    %2850 = vmatpush2.msra.mxu0 0.0
    %2851 = vmatprep.mubr.f32.mxu0 0.0
    %2852 = vmatmul.mubr.f32.gmra.mxu0 %v2714
    %v2853 = vpop.f32.mrf.mxu0
    %v2854 = vadd.f32 0.0, %v2853
    %v2855 = vpop.f32.mrf.mxu0
    %2856 = vdwg.mxu0
    %v2858 = vrot.slane %v2783, 6
    %v2860 = vadd.f32 %v1770, %v2858
    %v2861 = vxor.u32 %v2860, 2147483648
    %v2862 = vmul.f32 %v2861, 1.442695
    %v2863 = vpow.pop %v2862
    %v2864 = vadd.f32 %v2863, 1.0
    %v2865 = vrcp.pop %v2864
    %v2866 = vmul.f32 1.0, %v2865
    %v2868 = vrot.slane %v2785, 6
    %v2870 = vadd.f32 %v1772, %v2868
    %v2871 = vxor.u32 %v2870, 2147483648
    %v2872 = vmul.f32 %v2871, 1.442695
    %v2873 = vpow.pop %v2872
    %v2874 = vadd.f32 %v2873, 1.0
    %v2875 = vrcp.pop %v2874
    %v2876 = vmul.f32 1.0, %v2875
    %v2877 = vadd.f32 %v2854, %v1674
    %v2879 = vrot.slane %v2877, 6
    %v2881 = vmul.f32 %v2866, %v2879
    %v2882 = vadd.f32 %v1846, %v2881
    %v2883 = vtanh.pop %v2882
    %v2884 = vsub.f32 1.0, %v2876
    %v2885 = vmul.f32 %v2884, %v2883
    %v2886 = vrot.slane %v2712, 6
    %v2888 = vmul.f32 %v2876, %v2886
    %v2889 = vadd.f32 %v2885, %v2888
    %v2891 = vrot.slane %v2889, 2
    %v2892 = vsel %vm238, %v2891, 0
    %2894 = vmatprep.subr.mxu0 0.0
    %2895 = vmatpush1.msra.mxu0 0.0
    %2896 = vmatprep.subr.mxu0 0.0
    %2897 = vmatpush1.msra.mxu0 0.0
    %2898 = vmatprep.subr.mxu0 0.0
    %2899 = vmatpush1.msra.mxu0 0.0
    %2900 = vmatprep.subr.mxu0 0.0
    %2901 = vmatpush1.msra.mxu0 0.0
    %2902 = vmatprep.subr.mxu0 0.0
    %2903 = vmatpush1.msra.mxu0 0.0
    %2904 = vmatprep.subr.mxu0 0.0
    %2905 = vmatpush1.msra.mxu0 0.0
    %2906 = vmatprep.subr.mxu0 0.0
    %2907 = vmatpush1.msra.mxu0 0.0
    %2908 = vmatprep.subr.mxu0 0.0
    %2909 = vmatpush1.msra.mxu0 0.0
    %2910 = vmatprep.subr.mxu0 0.0
    %2911 = vmatpush1.msra.mxu0 0.0
    %2912 = vmatprep.subr.mxu0 0.0
    %2913 = vmatpush1.msra.mxu0 0.0
    %2914 = vmatprep.subr.mxu0 0.0
    %2915 = vmatpush1.msra.mxu0 0.0
    %2916 = vmatprep.subr.mxu0 0.0
    %2917 = vmatpush1.msra.mxu0 0.0
    %2918 = vmatprep.subr.mxu0 %v1670
    %2919 = vmatpush1.msra.mxu0 %v1669
    %2920 = vmatprep.subr.mxu0 %v1667
    %2921 = vmatpush1.msra.mxu0 %v1666
    %2922 = vmatprep.subr.mxu0 %v1664
    %2923 = vmatpush1.msra.mxu0 %v1663
    %2924 = vmatprep.subr.mxu0 %v1661
    %2925 = vmatpush1.msra.mxu0 %v1660
    %2926 = vmatprep.subr.mxu0 0.0
    %2927 = vmatpush2.msra.mxu0 0.0
    %2928 = vmatprep.subr.mxu0 0.0
    %2929 = vmatpush2.msra.mxu0 0.0
    %2930 = vmatprep.subr.mxu0 0.0
    %2931 = vmatpush2.msra.mxu0 0.0
    %2932 = vmatprep.subr.mxu0 0.0
    %2933 = vmatpush2.msra.mxu0 0.0
    %2934 = vmatprep.subr.mxu0 0.0
    %2935 = vmatpush2.msra.mxu0 0.0
    %2936 = vmatprep.subr.mxu0 0.0
    %2937 = vmatpush2.msra.mxu0 0.0
    %2938 = vmatprep.subr.mxu0 0.0
    %2939 = vmatpush2.msra.mxu0 0.0
    %2940 = vmatprep.subr.mxu0 0.0
    %2941 = vmatpush2.msra.mxu0 0.0
    %2942 = vmatprep.subr.mxu0 0.0
    %2943 = vmatpush2.msra.mxu0 0.0
    %2944 = vmatprep.subr.mxu0 0.0
    %2945 = vmatpush2.msra.mxu0 0.0
    %2946 = vmatprep.subr.mxu0 0.0
    %2947 = vmatpush2.msra.mxu0 0.0
    %2948 = vmatprep.subr.mxu0 0.0
    %2949 = vmatpush2.msra.mxu0 0.0
    %2950 = vmatprep.subr.mxu0 0.0
    %2951 = vmatpush2.msra.mxu0 0.0
    %2952 = vmatprep.subr.mxu0 0.0
    %2953 = vmatpush2.msra.mxu0 0.0
    %2954 = vmatprep.subr.mxu0 0.0
    %2955 = vmatpush2.msra.mxu0 0.0
    %2956 = vmatprep.subr.mxu0 0.0
    %2957 = vmatpush2.msra.mxu0 0.0
    %2958 = vmatprep.mubr.f32.mxu0 0.0
    %2959 = vmatmul.mubr.f32.gmra.mxu0 %v2892
    %v2960 = vpop.f32.mrf.mxu0
    %v2961 = vadd.f32 0.0, %v2960
    %v2962 = vpop.f32.mrf.mxu0
    %v2963 = vadd.f32 0.0, %v2962
    %2964 = vdwg.mxu0
    %2965 = vmatprep.subr.mxu0 0.0
    %2966 = vmatpush1.msra.mxu0 0.0
    %2967 = vmatprep.subr.mxu0 0.0
    %2968 = vmatpush1.msra.mxu0 0.0
    %2969 = vmatprep.subr.mxu0 0.0
    %2970 = vmatpush1.msra.mxu0 0.0
    %2971 = vmatprep.subr.mxu0 0.0
    %2972 = vmatpush1.msra.mxu0 0.0
    %2973 = vmatprep.subr.mxu0 0.0
    %2974 = vmatpush1.msra.mxu0 0.0
    %2975 = vmatprep.subr.mxu0 0.0
    %2976 = vmatpush1.msra.mxu0 0.0
    %2977 = vmatprep.subr.mxu0 0.0
    %2978 = vmatpush1.msra.mxu0 0.0
    %2979 = vmatprep.subr.mxu0 0.0
    %2980 = vmatpush1.msra.mxu0 0.0
    %2981 = vmatprep.subr.mxu0 0.0
    %2982 = vmatpush1.msra.mxu0 0.0
    %2983 = vmatprep.subr.mxu0 0.0
    %2984 = vmatpush1.msra.mxu0 0.0
    %2985 = vmatprep.subr.mxu0 0.0
    %2986 = vmatpush1.msra.mxu0 0.0
    %2987 = vmatprep.subr.mxu0 0.0
    %2988 = vmatpush1.msra.mxu0 0.0
    %2989 = vmatprep.subr.mxu0 0.0
    %2990 = vmatpush1.msra.mxu0 %v1671
    %2991 = vmatprep.subr.mxu0 0.0
    %2992 = vmatpush1.msra.mxu0 %v1668
    %2993 = vmatprep.subr.mxu0 0.0
    %2994 = vmatpush1.msra.mxu0 %v1665
    %2995 = vmatprep.subr.mxu0 0.0
    %2996 = vmatpush1.msra.mxu0 %v1662
    %2997 = vmatprep.subr.mxu0 0.0
    %2998 = vmatpush2.msra.mxu0 0.0
    %2999 = vmatprep.subr.mxu0 0.0
    %3000 = vmatpush2.msra.mxu0 0.0
    %3001 = vmatprep.subr.mxu0 0.0
    %3002 = vmatpush2.msra.mxu0 0.0
    %3003 = vmatprep.subr.mxu0 0.0
    %3004 = vmatpush2.msra.mxu0 0.0
    %3005 = vmatprep.subr.mxu0 0.0
    %3006 = vmatpush2.msra.mxu0 0.0
    %3007 = vmatprep.subr.mxu0 0.0
    %3008 = vmatpush2.msra.mxu0 0.0
    %3009 = vmatprep.subr.mxu0 0.0
    %3010 = vmatpush2.msra.mxu0 0.0
    %3011 = vmatprep.subr.mxu0 0.0
    %3012 = vmatpush2.msra.mxu0 0.0
    %3013 = vmatprep.subr.mxu0 0.0
    %3014 = vmatpush2.msra.mxu0 0.0
    %3015 = vmatprep.subr.mxu0 0.0
    %3016 = vmatpush2.msra.mxu0 0.0
    %3017 = vmatprep.subr.mxu0 0.0
    %3018 = vmatpush2.msra.mxu0 0.0
    %3019 = vmatprep.subr.mxu0 0.0
    %3020 = vmatpush2.msra.mxu0 0.0
    %3021 = vmatprep.subr.mxu0 0.0
    %3022 = vmatpush2.msra.mxu0 0.0
    %3023 = vmatprep.subr.mxu0 0.0
    %3024 = vmatpush2.msra.mxu0 0.0
    %3025 = vmatprep.subr.mxu0 0.0
    %3026 = vmatpush2.msra.mxu0 0.0
    %3027 = vmatprep.subr.mxu0 0.0
    %3028 = vmatpush2.msra.mxu0 0.0
    %3029 = vmatprep.mubr.f32.mxu0 0.0
    %3030 = vmatmul.mubr.f32.gmra.mxu0 %v2892
    %v3031 = vpop.f32.mrf.mxu0
    %v3032 = vadd.f32 0.0, %v3031
    %v3033 = vpop.f32.mrf.mxu0
    %3034 = vdwg.mxu0
    %v3036 = vrot.slane %v2961, 4
    %v3038 = vadd.f32 %v1770, %v3036
    %v3039 = vxor.u32 %v3038, 2147483648
    %v3040 = vmul.f32 %v3039, 1.442695
    %v3041 = vpow.pop %v3040
    %v3042 = vadd.f32 %v3041, 1.0
    %v3043 = vrcp.pop %v3042
    %v3044 = vmul.f32 1.0, %v3043
    %v3046 = vrot.slane %v2963, 4
    %v3048 = vadd.f32 %v1772, %v3046
    %v3049 = vxor.u32 %v3048, 2147483648
    %v3050 = vmul.f32 %v3049, 1.442695
    %v3051 = vpow.pop %v3050
    %v3052 = vadd.f32 %v3051, 1.0
    %v3053 = vrcp.pop %v3052
    %v3054 = vmul.f32 1.0, %v3053
    %v3055 = vadd.f32 %v3032, %v1674
    %v3057 = vrot.slane %v3055, 4
    %v3059 = vmul.f32 %v3044, %v3057
    %v3060 = vadd.f32 %v1846, %v3059
    %v3061 = vtanh.pop %v3060
    %v3062 = vsub.f32 1.0, %v3054
    %v3063 = vmul.f32 %v3062, %v3061
    %v3064 = vrot.slane %v2889, 6
    %v3066 = vmul.f32 %v3054, %v3064
    %v3067 = vadd.f32 %v3063, %v3066
    %v3069 = vrot.slane %v3067, 4
    %v3070 = vsel %vm238, %v3069, 0
    %3072 = vmatprep.subr.mxu0 0.0
    %3073 = vmatpush1.msra.mxu0 0.0
    %3074 = vmatprep.subr.mxu0 0.0
    %3075 = vmatpush1.msra.mxu0 0.0
    %3076 = vmatprep.subr.mxu0 0.0
    %3077 = vmatpush1.msra.mxu0 0.0
    %3078 = vmatprep.subr.mxu0 0.0
    %3079 = vmatpush1.msra.mxu0 0.0
    %3080 = vmatprep.subr.mxu0 0.0
    %3081 = vmatpush1.msra.mxu0 0.0
    %3082 = vmatprep.subr.mxu0 0.0
    %3083 = vmatpush1.msra.mxu0 0.0
    %3084 = vmatprep.subr.mxu0 0.0
    %3085 = vmatpush1.msra.mxu0 0.0
    %3086 = vmatprep.subr.mxu0 0.0
    %3087 = vmatpush1.msra.mxu0 0.0
    %3088 = vmatprep.subr.mxu0 0.0
    %3089 = vmatpush1.msra.mxu0 0.0
    %3090 = vmatprep.subr.mxu0 0.0
    %3091 = vmatpush1.msra.mxu0 0.0
    %3092 = vmatprep.subr.mxu0 0.0
    %3093 = vmatpush1.msra.mxu0 0.0
    %3094 = vmatprep.subr.mxu0 0.0
    %3095 = vmatpush1.msra.mxu0 0.0
    %3096 = vmatprep.subr.mxu0 %v1670
    %3097 = vmatpush1.msra.mxu0 %v1669
    %3098 = vmatprep.subr.mxu0 %v1667
    %3099 = vmatpush1.msra.mxu0 %v1666
    %3100 = vmatprep.subr.mxu0 %v1664
    %3101 = vmatpush1.msra.mxu0 %v1663
    %3102 = vmatprep.subr.mxu0 %v1661
    %3103 = vmatpush1.msra.mxu0 %v1660
    %3104 = vmatprep.subr.mxu0 0.0
    %3105 = vmatpush2.msra.mxu0 0.0
    %3106 = vmatprep.subr.mxu0 0.0
    %3107 = vmatpush2.msra.mxu0 0.0
    %3108 = vmatprep.subr.mxu0 0.0
    %3109 = vmatpush2.msra.mxu0 0.0
    %3110 = vmatprep.subr.mxu0 0.0
    %3111 = vmatpush2.msra.mxu0 0.0
    %3112 = vmatprep.subr.mxu0 0.0
    %3113 = vmatpush2.msra.mxu0 0.0
    %3114 = vmatprep.subr.mxu0 0.0
    %3115 = vmatpush2.msra.mxu0 0.0
    %3116 = vmatprep.subr.mxu0 0.0
    %3117 = vmatpush2.msra.mxu0 0.0
    %3118 = vmatprep.subr.mxu0 0.0
    %3119 = vmatpush2.msra.mxu0 0.0
    %3120 = vmatprep.subr.mxu0 0.0
    %3121 = vmatpush2.msra.mxu0 0.0
    %3122 = vmatprep.subr.mxu0 0.0
    %3123 = vmatpush2.msra.mxu0 0.0
    %3124 = vmatprep.subr.mxu0 0.0
    %3125 = vmatpush2.msra.mxu0 0.0
    %3126 = vmatprep.subr.mxu0 0.0
    %3127 = vmatpush2.msra.mxu0 0.0
    %3128 = vmatprep.subr.mxu0 0.0
    %3129 = vmatpush2.msra.mxu0 0.0
    %3130 = vmatprep.subr.mxu0 0.0
    %3131 = vmatpush2.msra.mxu0 0.0
    %3132 = vmatprep.subr.mxu0 0.0
    %3133 = vmatpush2.msra.mxu0 0.0
    %3134 = vmatprep.subr.mxu0 0.0
    %3135 = vmatpush2.msra.mxu0 0.0
    %3136 = vmatprep.mubr.f32.mxu0 0.0
    %3137 = vmatmul.mubr.f32.gmra.mxu0 %v3070
    %v3138 = vpop.f32.mrf.mxu0
    %v3139 = vadd.f32 0.0, %v3138
    %v3140 = vpop.f32.mrf.mxu0
    %v3141 = vadd.f32 0.0, %v3140
    %3142 = vdwg.mxu0
    %3143 = vmatprep.subr.mxu0 0.0
    %3144 = vmatpush1.msra.mxu0 0.0
    %3145 = vmatprep.subr.mxu0 0.0
    %3146 = vmatpush1.msra.mxu0 0.0
    %3147 = vmatprep.subr.mxu0 0.0
    %3148 = vmatpush1.msra.mxu0 0.0
    %3149 = vmatprep.subr.mxu0 0.0
    %3150 = vmatpush1.msra.mxu0 0.0
    %3151 = vmatprep.subr.mxu0 0.0
    %3152 = vmatpush1.msra.mxu0 0.0
    %3153 = vmatprep.subr.mxu0 0.0
    %3154 = vmatpush1.msra.mxu0 0.0
    %3155 = vmatprep.subr.mxu0 0.0
    %3156 = vmatpush1.msra.mxu0 0.0
    %3157 = vmatprep.subr.mxu0 0.0
    %3158 = vmatpush1.msra.mxu0 0.0
    %3159 = vmatprep.subr.mxu0 0.0
    %3160 = vmatpush1.msra.mxu0 0.0
    %3161 = vmatprep.subr.mxu0 0.0
    %3162 = vmatpush1.msra.mxu0 0.0
    %3163 = vmatprep.subr.mxu0 0.0
    %3164 = vmatpush1.msra.mxu0 0.0
    %3165 = vmatprep.subr.mxu0 0.0
    %3166 = vmatpush1.msra.mxu0 0.0
    %3167 = vmatprep.subr.mxu0 0.0
    %3168 = vmatpush1.msra.mxu0 %v1671
    %3169 = vmatprep.subr.mxu0 0.0
    %3170 = vmatpush1.msra.mxu0 %v1668
    %3171 = vmatprep.subr.mxu0 0.0
    %3172 = vmatpush1.msra.mxu0 %v1665
    %3173 = vmatprep.subr.mxu0 0.0
    %3174 = vmatpush1.msra.mxu0 %v1662
    %3175 = vmatprep.subr.mxu0 0.0
    %3176 = vmatpush2.msra.mxu0 0.0
    %3177 = vmatprep.subr.mxu0 0.0
    %3178 = vmatpush2.msra.mxu0 0.0
    %3179 = vmatprep.subr.mxu0 0.0
    %3180 = vmatpush2.msra.mxu0 0.0
    %3181 = vmatprep.subr.mxu0 0.0
    %3182 = vmatpush2.msra.mxu0 0.0
    %3183 = vmatprep.subr.mxu0 0.0
    %3184 = vmatpush2.msra.mxu0 0.0
    %3185 = vmatprep.subr.mxu0 0.0
    %3186 = vmatpush2.msra.mxu0 0.0
    %3187 = vmatprep.subr.mxu0 0.0
    %3188 = vmatpush2.msra.mxu0 0.0
    %3189 = vmatprep.subr.mxu0 0.0
    %3190 = vmatpush2.msra.mxu0 0.0
    %3191 = vmatprep.subr.mxu0 0.0
    %3192 = vmatpush2.msra.mxu0 0.0
    %3193 = vmatprep.subr.mxu0 0.0
    %3194 = vmatpush2.msra.mxu0 0.0
    %3195 = vmatprep.subr.mxu0 0.0
    %3196 = vmatpush2.msra.mxu0 0.0
    %3197 = vmatprep.subr.mxu0 0.0
    %3198 = vmatpush2.msra.mxu0 0.0
    %3199 = vmatprep.subr.mxu0 0.0
    %3200 = vmatpush2.msra.mxu0 0.0
    %3201 = vmatprep.subr.mxu0 0.0
    %3202 = vmatpush2.msra.mxu0 0.0
    %3203 = vmatprep.subr.mxu0 0.0
    %3204 = vmatpush2.msra.mxu0 0.0
    %3205 = vmatprep.subr.mxu0 0.0
    %3206 = vmatpush2.msra.mxu0 0.0
    %3207 = vmatprep.mubr.f32.mxu0 0.0
    %3208 = vmatmul.mubr.f32.gmra.mxu0 %v3070
    %v3209 = vpop.f32.mrf.mxu0
    %v3210 = vadd.f32 0.0, %v3209
    %v3211 = vpop.f32.mrf.mxu0
    %3212 = vdwg.mxu0
    %v3214 = vrot.slane %v3139, 2
    %v3216 = vadd.f32 %v1770, %v3214
    %v3217 = vxor.u32 %v3216, 2147483648
    %v3218 = vmul.f32 %v3217, 1.442695
    %v3219 = vpow.pop %v3218
    %v3220 = vadd.f32 %v3219, 1.0
    %v3221 = vrcp.pop %v3220
    %v3222 = vmul.f32 1.0, %v3221
    %v3224 = vrot.slane %v3141, 2
    %v3226 = vadd.f32 %v1772, %v3224
    %v3227 = vxor.u32 %v3226, 2147483648
    %v3228 = vmul.f32 %v3227, 1.442695
    %v3229 = vpow.pop %v3228
    %v3230 = vadd.f32 %v3229, 1.0
    %v3231 = vrcp.pop %v3230
    %v3232 = vmul.f32 1.0, %v3231
    %v3233 = vadd.f32 %v3210, %v1674
    %v3235 = vrot.slane %v3233, 2
    %v3237 = vmul.f32 %v3222, %v3235
    %v3238 = vadd.f32 %v1846, %v3237
    %v3239 = vtanh.pop %v3238
    %v3240 = vsub.f32 1.0, %v3232
    %v3241 = vmul.f32 %v3240, %v3239
    %v3242 = vrot.slane %v3067, 6
    %v3244 = vmul.f32 %v3232, %v3242
    %v3245 = vadd.f32 %v3241, %v3244
    %v3246 = vld [vmem:[#allocation5 + $0x180] sm:$0xff]
    %v3247 = vld [vmem:[#allocation5 + $0x198] sm:$0xff]
    %v3248 = vld [vmem:[#allocation5 + $0x1b0] sm:$0xff]
    %v3249 = vld [vmem:[#allocation5 + $0x1c8] sm:$0xff]
    %v3250 = vld [vmem:[#allocation5 + $0x1e0] ss:$0 sm:$0xff]
    %v3251 = vmax.f32 %v3245, 0.0
    %v3253 = vrot.slane %v3251, 6
    %v3254 = vsel %vm238, %v3253, 0
    %3256 = vmatprep.subr.mxu0 0.0
    %3257 = vmatpush1.msra.mxu0 0.0
    %3258 = vmatprep.subr.mxu0 0.0
    %3259 = vmatpush1.msra.mxu0 0.0
    %3260 = vmatprep.subr.mxu0 0.0
    %3261 = vmatpush1.msra.mxu0 0.0
    %3262 = vmatprep.subr.mxu0 0.0
    %3263 = vmatpush1.msra.mxu0 0.0
    %3264 = vmatprep.subr.mxu0 0.0
    %3265 = vmatpush1.msra.mxu0 0.0
    %3266 = vmatprep.subr.mxu0 0.0
    %3267 = vmatpush1.msra.mxu0 0.0
    %3268 = vmatprep.subr.mxu0 0.0
    %3269 = vmatpush1.msra.mxu0 0.0
    %3270 = vmatprep.subr.mxu0 0.0
    %3271 = vmatpush1.msra.mxu0 0.0
    %3272 = vmatprep.subr.mxu0 0.0
    %3273 = vmatpush1.msra.mxu0 0.0
    %3274 = vmatprep.subr.mxu0 0.0
    %3275 = vmatpush1.msra.mxu0 0.0
    %3276 = vmatprep.subr.mxu0 0.0
    %3277 = vmatpush1.msra.mxu0 0.0
    %3278 = vmatprep.subr.mxu0 0.0
    %3279 = vmatpush1.msra.mxu0 0.0
    %3280 = vmatprep.subr.mxu0 0.0
    %3281 = vmatpush1.msra.mxu0 %v3249
    %3282 = vmatprep.subr.mxu0 0.0
    %3283 = vmatpush1.msra.mxu0 %v3248
    %3284 = vmatprep.subr.mxu0 0.0
    %3285 = vmatpush1.msra.mxu0 %v3247
    %3286 = vmatprep.subr.mxu0 0.0
    %3287 = vmatpush1.msra.mxu0 %v3246
    %3288 = vmatprep.subr.mxu0 0.0
    %3289 = vmatpush2.msra.mxu0 0.0
    %3290 = vmatprep.subr.mxu0 0.0
    %3291 = vmatpush2.msra.mxu0 0.0
    %3292 = vmatprep.subr.mxu0 0.0
    %3293 = vmatpush2.msra.mxu0 0.0
    %3294 = vmatprep.subr.mxu0 0.0
    %3295 = vmatpush2.msra.mxu0 0.0
    %3296 = vmatprep.subr.mxu0 0.0
    %3297 = vmatpush2.msra.mxu0 0.0
    %3298 = vmatprep.subr.mxu0 0.0
    %3299 = vmatpush2.msra.mxu0 0.0
    %3300 = vmatprep.subr.mxu0 0.0
    %3301 = vmatpush2.msra.mxu0 0.0
    %3302 = vmatprep.subr.mxu0 0.0
    %3303 = vmatpush2.msra.mxu0 0.0
    %3304 = vmatprep.subr.mxu0 0.0
    %3305 = vmatpush2.msra.mxu0 0.0
    %3306 = vmatprep.subr.mxu0 0.0
    %3307 = vmatpush2.msra.mxu0 0.0
    %3308 = vmatprep.subr.mxu0 0.0
    %3309 = vmatpush2.msra.mxu0 0.0
    %3310 = vmatprep.subr.mxu0 0.0
    %3311 = vmatpush2.msra.mxu0 0.0
    %3312 = vmatprep.subr.mxu0 0.0
    %3313 = vmatpush2.msra.mxu0 0.0
    %3314 = vmatprep.subr.mxu0 0.0
    %3315 = vmatpush2.msra.mxu0 0.0
    %3316 = vmatprep.subr.mxu0 0.0
    %3317 = vmatpush2.msra.mxu0 0.0
    %3318 = vmatprep.subr.mxu0 0.0
    %3319 = vmatpush2.msra.mxu0 0.0
    %3320 = vmatprep.mubr.f32.mxu0 0.0
    %3321 = vmatmul.mubr.f32.gmra.mxu0 %v3254
    %v3322 = vpop.f32.mrf.mxu0
    %v3323 = vadd.f32 %v3250, %v3322
    %v3324 = vpop.f32.mrf.mxu0
    %3325 = vdwg.mxu0
    %vm3326 = vcmask 74752
    %v3327 = vsel %vm3326, %v3323, -inf
    %3328 = vmax.xlane.f32.xlu0 %v3327
    %v3329 = vpop.xlane.xlu0 %3328
    %v3330 = vsub.f32 %v3323, %v3329
    %v3331 = vmul.f32 %v3330, 1.442695
    %v3332 = vpow.pop %v3331
    %v3333 = vsel %vm3326, %v3332, 0.0
    %3334 = vadd.xlane.f32.xlu0 %v3333
    %v3335 = vpop.xlane.xlu0 %3334
    %v3336 = vlog2.pop %v3335
    %v3337 = vmul.f32 %v3336, 0.6931472
    %v3338 = vsub.f32 %v3330, %v3337
    %3339 = vst.msk [vmem:[#allocation7] sm:$0x3] %vm3326, %v3338
    // Predicated region
    $region18: #{tpu_custom_call.1} parent=1 // pred_check
      _
    $region19: #{tpu_custom_call.1} parent=1 // pred_check_branch
      %3341 = sbr.rel (0) target = $region21
    $region20: #{tpu_custom_call.1} parent=1 // pred_region
      %s3343 = ssub.s32 32, 32
      %3344 = vsyncadd [#allocation4], %s3343
      %s3346 = sshll.u32 [#allocation7], 4
      %s3347 = int_to_ptr.vmem [resolvable:$true] %s3346
      %3349 = dma.vmem_to_hbm [thread:$0]  %s3347, 32, %s2, [#allocation4]
    $region21: #{tpu_custom_call.1} parent=1 // pred_fallthru
      _
    // Predicated region
    $region22: #{tpu_custom_call.1} parent=1 // pred_check
      _
    $region23: #{tpu_custom_call.1} parent=1 // pred_check_branch
      %3351 = sbr.rel (0) target = $region25
    $region24: #{tpu_custom_call.1} parent=1 // pred_region
      %3352 = dma.done [#allocation4], 32
    $region25: #{tpu_custom_call.1} parent=1 // pred_fallthru
      _
    %3353 = vsyncpa [#allocation3], 1
    %3354 = vsyncpa [#allocation6], 1
    %3355 = vsyncpa [#allocation4], 1

</llo_original>
